<compile_context>
chip_gen: v7x
topology: tpu7x:2x2x1
jax: 0.10.0
libtpu: 0.0.40
codegen_flags: <defaults>
</compile_context>

<pallas_src>
import functools

import jax
import jax.numpy as jnp
import numpy as np
from jax.experimental import pallas as pl
from jax.experimental.pallas import tpu as pltpu

EPS = 1e-5
LANE = 128


def _round_up(x, m):
    return (x + m - 1) // m * m


def _pad_lane(a, lane_target):
    pad = lane_target - a.shape[-1]
    if pad == 0:
        return a
    widths = [(0, 0)] * (a.ndim - 1) + [(0, pad)]
    return jnp.pad(a, widths)


# ------------------------------ Pallas kernels ------------------------------ #
def _conv_stats_kernel(*refs, taps, ho, wo, ckp, cp, with_proj, sc_off):
    """Per-image multi-tap conv (MXU matmul per tap) + per-image partial BN stats.
    Optionally also computes the 1x1 projection shortcut from the same resident
    input block (plus its partial stats)."""
    if with_proj:
        (x_ref, w_ref, ws_ref,
         c_ref, s_ref, q_ref, cs_ref, ss_ref, qs_ref) = refs
    else:
        x_ref, w_ref, c_ref, s_ref, q_ref = refs

    m = ho * wo
    acc = jnp.zeros((m, cp), jnp.float32)
    for kh, kw in taps:
        win = x_ref[0, kh:kh + ho, kw:kw + wo, :].reshape(m, ckp)
        acc += jnp.dot(win.astype(jnp.bfloat16), w_ref[kh, kw],
                       preferred_element_type=jnp.float32)
    c_ref[...] = acc.reshape(1, ho, wo, cp)
    s = jnp.sum(acc, axis=0, keepdims=True)
    q = jnp.sum(acc * acc, axis=0, keepdims=True)
    s_ref[0] = jnp.broadcast_to(s, (8, cp))
    q_ref[0] = jnp.broadcast_to(q, (8, cp))

    if with_proj:
        dh, dw = sc_off
        win = x_ref[0, dh:dh + ho, dw:dw + wo, :].reshape(m, ckp)
        accs = jnp.dot(win.astype(jnp.bfloat16), ws_ref[...],
                       preferred_element_type=jnp.float32)
        cs_ref[...] = accs.reshape(1, ho, wo, cp)
        ss = jnp.sum(accs, axis=0, keepdims=True)
        qs = jnp.sum(accs * accs, axis=0, keepdims=True)
        ss_ref[0] = jnp.broadcast_to(ss, (8, cp))
        qs_ref[0] = jnp.broadcast_to(qs, (8, cp))


def _bn_relu_conv_stats_kernel(c1_ref, scale_ref, shift_ref, w_ref,
                               c2_ref, s_ref, q_ref, pad_ref, *, ho, wo, cp):
    """Fused bn1+ReLU prologue (scale/shift precomputed from batch stats) + 3x3
    conv2 as 9-tap MXU matmul from a VMEM-padded scratch + bn2 partial stats."""
    m = ho * wo
    a = c1_ref[0].reshape(m, cp)
    y = jnp.maximum(a * scale_ref[0:1, :] + shift_ref[0:1, :], 0.0)

    pad_ref[...] = jnp.zeros(pad_ref.shape, pad_ref.dtype)
    pad_ref[1:ho + 1, 1:wo + 1, :] = y.reshape(ho, wo, cp)

    acc = jnp.zeros((m, cp), jnp.float32)
    for kh in range(3):
        for kw in range(3):
            win = pad_ref[kh:kh + ho, kw:kw + wo, :].reshape(m, cp)
            acc += jnp.dot(win.astype(jnp.bfloat16), w_ref[kh, kw],
                           preferred_element_type=jnp.float32)
    c2_ref[...] = acc.reshape(1, ho, wo, cp)
    s = jnp.sum(acc, axis=0, keepdims=True)
    q = jnp.sum(acc * acc, axis=0, keepdims=True)
    s_ref[0] = jnp.broadcast_to(s, (8, cp))
    q_ref[0] = jnp.broadcast_to(q, (8, cp))


def _finalize_kernel(c2_ref, s2_ref, t2_ref, id_ref, si_ref, ti_ref, o_ref):
    """bn2 + residual (shortcut-BN or identity) + final ReLU, lane-dense tiles."""
    y = c2_ref[...] * s2_ref[0:1, :] + t2_ref[0:1, :]
    idn = id_ref[...] * si_ref[0:1, :] + ti_ref[0:1, :]
    o_ref[...] = jnp.maximum(y + idn, 0.0)


# ------------------------------ pallas_call glue ----------------------------- #
def _conv1_call(xin, w1, ws_full, *, taps, ho, wo, with_proj, sc_off):
    n = xin.shape[0]
    ckp = xin.shape[-1]
    cp = w1.shape[-1]

    kernel = functools.partial(_conv_stats_kernel, taps=taps, ho=ho, wo=wo,
                               ckp=ckp, cp=cp, with_proj=with_proj,
                               sc_off=sc_off)

    x_spec = pl.BlockSpec((1,) + xin.shape[1:], lambda i: (i, 0, 0, 0))
    w_spec = pl.BlockSpec(w1.shape, lambda i: (0, 0, 0, 0))   # weight stays resident
    feat = jax.ShapeDtypeStruct((n, ho, wo, cp), jnp.float32)
    stat = jax.ShapeDtypeStruct((n, 8, cp), jnp.float32)
    feat_spec = pl.BlockSpec((1, ho, wo, cp), lambda i: (i, 0, 0, 0))
    stat_spec = pl.BlockSpec((1, 8, cp), lambda i: (i, 0, 0))

    in_specs = [x_spec, w_spec]
    inputs = [xin, w1]
    out_shapes = [feat, stat, stat]
    out_specs = [feat_spec, stat_spec, stat_spec]
    if with_proj:
        in_specs.append(pl.BlockSpec(ws_full.shape, lambda i: (0, 0)))
        inputs.append(ws_full)
        out_shapes += [feat, stat, stat]
        out_specs += [feat_spec, stat_spec, stat_spec]

    n_mm = len(taps) + (1 if with_proj else 0)
    flops = int(2 * n * ho * wo * ckp * cp * n_mm)
    bytes_acc = int(xin.size * 4 + w1.size * 2 + n * ho * wo * cp * 4 * (2 if with_proj else 1))
    return pl.pallas_call(
        kernel,
        grid=(n,),
        in_specs=in_specs,
        out_specs=tuple(out_specs),
        out_shape=tuple(out_shapes),
        compiler_params=pltpu.CompilerParams(dimension_semantics=("parallel",)),
        cost_estimate=pl.CostEstimate(flops=flops, transcendentals=0,
                                      bytes_accessed=bytes_acc),
    )(*inputs)


def _conv2_call(c1_raw, scale1, shift1, w2, *, ho, wo):
    n = c1_raw.shape[0]
    cp = c1_raw.shape[-1]
    kernel = functools.partial(_bn_relu_conv_stats_kernel, ho=ho, wo=wo, cp=cp)
    feat = jax.ShapeDtypeStruct((n, ho, wo, cp), jnp.float32)
    stat = jax.ShapeDtypeStruct((n, 8, cp), jnp.float32)
    flops = int(2 * n * ho * wo * cp * cp * 9)
    bytes_acc = int(c1_raw.size * 4 + w2.size * 2 + n * ho * wo * cp * 4)
    return pl.pallas_call(
        kernel,
        grid=(n,),
        in_specs=[
            pl.BlockSpec((1, ho, wo, cp), lambda i: (i, 0, 0, 0)),
            pl.BlockSpec((8, cp), lambda i: (0, 0)),
            pl.BlockSpec((8, cp), lambda i: (0, 0)),
            pl.BlockSpec(w2.shape, lambda i: (0, 0, 0, 0)),
        ],
        out_specs=(
            pl.BlockSpec((1, ho, wo, cp), lambda i: (i, 0, 0, 0)),
            pl.BlockSpec((1, 8, cp), lambda i: (i, 0, 0)),
            pl.BlockSpec((1, 8, cp), lambda i: (i, 0, 0)),
        ),
        out_shape=(feat, stat, stat),
        scratch_shapes=[pltpu.VMEM((ho + 2, wo + 2, cp), jnp.float32)],
        compiler_params=pltpu.CompilerParams(dimension_semantics=("parallel",)),
        cost_estimate=pl.CostEstimate(flops=flops, transcendentals=0,
                                      bytes_accessed=bytes_acc),
    )(c1_raw, scale1, shift1, w2)


def _finalize_call(c2_flat, scale2, shift2, id_flat, id_scale, id_shift, rows):
    m, cp = c2_flat.shape
    row_spec = pl.BlockSpec((rows, cp), lambda i: (i, 0))
    vec_spec = pl.BlockSpec((8, cp), lambda i: (0, 0))
    return pl.pallas_call(
        _finalize_kernel,
        grid=(m // rows,),
        in_specs=[row_spec, vec_spec, vec_spec, row_spec, vec_spec, vec_spec],
        out_specs=row_spec,
        out_shape=jax.ShapeDtypeStruct((m, cp), jnp.float32),
        compiler_params=pltpu.CompilerParams(dimension_semantics=("parallel",)),
    )(c2_flat, scale2, shift2, id_flat, id_scale, id_shift)


def _affine_from_stats(s, q, count, gamma, beta, cp):
    """Per-channel batch stats -> (scale, shift) for y = x*scale + shift, as
    lane-dense (8, Cp) arrays (padded channels get gamma=0 -> scale=shift=0)."""
    mean = s / count
    var = jnp.maximum(q / count - mean * mean, 0.0)
    g = _pad_lane(gamma.astype(jnp.float32), cp)
    b = _pad_lane(beta.astype(jnp.float32), cp)
    scale = g * jax.lax.rsqrt(var + EPS)
    shift = b - mean * scale
    return jnp.broadcast_to(scale, (8, cp)), jnp.broadcast_to(shift, (8, cp))


# --------------------------------- forward ---------------------------------- #
def basic_block_forward(x_nchw, params, stride):
    x = jnp.transpose(x_nchw, (0, 2, 3, 1)).astype(jnp.float32)   # NHWC
    n, h, w, cin = x.shape
    cout = params["w1"].shape[0]
    cp = _round_up(cout, LANE)
    with_proj = (stride != 1) or (cin != cout)

    wt = jnp.transpose(params["w1"], (2, 3, 1, 0)).astype(jnp.float32)  # [3,3,Cin,Cout]
    if stride == 1:
        ho, wo = h, w
        xin = jnp.pad(x, ((0, 0), (1, 1), (1, 1), (0, 0)))
        w1 = wt
        taps = [(kh, kw) for kh in range(3) for kw in range(3)]
        ck = cin
        sc_off = (1, 1)
        sc_rows = 0
    elif stride == 2:
        ho, wo = (h - 1) // 2 + 1, (w - 1) // 2 + 1
        xp = jnp.pad(x, ((0, 0), (1, 1), (1, 1), (0, 0)))
        hp, wp = xp.shape[1], xp.shape[2]
        xp = jnp.pad(xp, ((0, 0), (0, hp % 2), (0, wp % 2), (0, 0)))
        h2, w2_ = xp.shape[1] // 2, xp.shape[2] // 2
        # space-to-depth: stride-2 3x3 conv -> stride-1 2x2-tap conv over 4*Cin
        xin = xp.reshape(n, h2, 2, w2_, 2, cin).transpose(0, 1, 3, 2, 4, 5)
        xin = xin.reshape(n, h2, w2_, 4 * cin)
        ck = 4 * cin
        w1 = jnp.zeros((2, 2, ck, cout), jnp.float32)
        for dh in range(2):
            for dw in range(2):
                for a in range(2):
                    for b in range(2):
                        kh, kw = 2 * dh + a, 2 * dw + b
                        if kh < 3 and kw < 3:
                            sl = (a * 2 + b) * cin
                            w1 = w1.at[dh, dw, sl:sl + cin, :].set(wt[kh, kw])
        taps = [(0, 0), (0, 1), (1, 0), (1, 1)]
        sc_off = (0, 0)
        sc_rows = 3 * cin          # x[2i,2j] lives in the (1,1) phase channels
    else:
        raise NotImplementedError("BasicBlock uses stride 1 or 2")

    ckp = _round_up(ck, LANE)
    xin_f = _pad_lane(xin, ckp)                                         # f32 in HBM
    w1_b = jnp.pad(w1, ((0, 0), (0, 0), (0, ckp - ck), (0, cp - cout))).astype(jnp.bfloat16)

    ws_b = None
    if with_proj:
        ws = jnp.transpose(params["ws"][:, :, 0, 0], (1, 0)).astype(jnp.float32)  # [Cin,Cout]
        ws_full = jnp.zeros((ckp, cp), jnp.float32).at[sc_rows:sc_rows + cin, :cout].set(ws)
        ws_b = ws_full.astype(jnp.bfloat16)

    outs = _conv1_call(xin_f, w1_b, ws_b, taps=taps, ho=ho, wo=wo,
                       with_proj=with_proj, sc_off=sc_off)
    if with_proj:
        c1_raw, s1, q1, sc_raw, ss, qs = outs
    else:
        c1_raw, s1, q1 = outs

    count = n * ho * wo
    scale1, shift1 = _affine_from_stats(s1[:, 0, :].sum(0), q1[:, 0, :].sum(0),
                                        count, params["g1"], params["b1"], cp)

    w2_t = jnp.transpose(params["w2"], (2, 3, 1, 0)).astype(jnp.float32)
    w2_b = jnp.pad(w2_t, ((0, 0), (0, 0), (0, cp - cout), (0, cp - cout))).astype(jnp.bfloat16)
    c2_raw, s2, q2 = _conv2_call(c1_raw, scale1, shift1, w2_b, ho=ho, wo=wo)
    scale2, shift2 = _affine_from_stats(s2[:, 0, :].sum(0), q2[:, 0, :].sum(0),
                                        count, params["g2"], params["b2"], cp)

    if with_proj:
        id_flat = sc_raw.reshape(count, cp)
        id_scale, id_shift = _affine_from_stats(ss[:, 0, :].sum(0), qs[:, 0, :].sum(0),
                                                count, params["gs"], params["bs"], cp)
    else:
        id_flat = _pad_lane(x, cp).reshape(count, cp)
        id_scale = jnp.ones((8, cp), jnp.float32)
        id_shift = jnp.zeros((8, cp), jnp.float32)

    rows = ho * wo if (ho * wo) % 8 == 0 else count
    out = _finalize_call(c2_raw.reshape(count, cp), scale2, shift2,
                         id_flat, id_scale, id_shift, rows)

    out = out.reshape(n, ho, wo, cp)[..., :cout]
    return jnp.transpose(out, (0, 3, 1, 2))                             # NCHW


# ----------------------------- pure-JAX reference ---------------------------- #
def _ref_forward(x_nchw, params, stride):
    def conv(x, w, s, pad):
        return jax.lax.conv_general_dilated(
            x, w, (s, s), [(pad, pad), (pad, pad)],
            dimension_numbers=("NCHW", "OIHW", "NCHW"))

    def bn(x, g, b):
        mean = x.mean(axis=(0, 2, 3), keepdims=True)
        var = ((x - mean) ** 2).mean(axis=(0, 2, 3), keepdims=True)
        return (x - mean) * jax.lax.rsqrt(var + EPS) * g.reshape(1, -1, 1, 1) + b.reshape(1, -1, 1, 1)

    cin, cout = params["w1"].shape[1], params["w1"].shape[0]
    if stride != 1 or cin != cout:
        identity = bn(conv(x_nchw, params["ws"], stride, 0), params["gs"], params["bs"])
    else:
        identity = x_nchw
    out = jnp.maximum(bn(conv(x_nchw, params["w1"], stride, 1), params["g1"], params["b1"]), 0.0)
    out = bn(conv(out, params["w2"], 1, 1), params["g2"], params["b2"])
    return jnp.maximum(out + identity, 0.0)


# ------------------------------------ main ----------------------------------- #
if __name__ == "__main__":
    key = jax.random.PRNGKey(0)
    ks = jax.random.split(key, 10)

    N, Cin, H, W = 2, 4, 16, 16
    Cout, stride = 8, 2   # exercises the projection shortcut

    x = jax.random.normal(ks[0], (N, Cin, H, W), jnp.float32)
    params = {
        "w1": 0.1 * jax.random.normal(ks[1], (Cout, Cin, 3, 3), jnp.float32),
        "g1": 1.0 + 0.1 * jax.random.normal(ks[2], (Cout,), jnp.float32),
        "b1": 0.1 * jax.random.normal(ks[3], (Cout,), jnp.float32),
        "w2": 0.1 * jax.random.normal(ks[4], (Cout, Cout, 3, 3), jnp.float32),
        "g2": 1.0 + 0.1 * jax.random.normal(ks[5], (Cout,), jnp.float32),
        "b2": 0.1 * jax.random.normal(ks[6], (Cout,), jnp.float32),
        "ws": 0.1 * jax.random.normal(ks[7], (Cout, Cin, 1, 1), jnp.float32),
        "gs": 1.0 + 0.1 * jax.random.normal(ks[8], (Cout,), jnp.float32),
        "bs": 0.1 * jax.random.normal(ks[9], (Cout,), jnp.float32),
    }

    fwd = jax.jit(basic_block_forward, static_argnames=("stride",))
    out = jax.block_until_ready(fwd(x, params, stride=stride))
    ref = jax.block_until_ready(_ref_forward(x, params, stride))

    assert out.shape == (N, Cout, H // stride, W // stride), out.shape
    # bf16 MXU operands -> relaxed but still tight tolerance vs f32 reference
    np.testing.assert_allclose(np.asarray(out), np.asarray(ref), atol=5e-2, rtol=5e-2)

    print("KERNEL_OK")
</pallas_src>

<mosaic_0001>
module attributes {stable_mosaic.version = 11 : i64} {
  func.func @_conv_stats_kernel(%arg0: i32, %arg1: memref<1x9x9x128xf32, #tpu.memory_space<vmem>>, %arg2: memref<2x2x128x128xbf16, #tpu.memory_space<vmem>>, %arg3: memref<128x128xbf16, #tpu.memory_space<vmem>>, %arg4: memref<1x8x8x128xf32, #tpu.memory_space<vmem>>, %arg5: memref<1x8x128xf32, #tpu.memory_space<vmem>>, %arg6: memref<1x8x128xf32, #tpu.memory_space<vmem>>, %arg7: memref<1x8x8x128xf32, #tpu.memory_space<vmem>>, %arg8: memref<1x8x128xf32, #tpu.memory_space<vmem>>, %arg9: memref<1x8x128xf32, #tpu.memory_space<vmem>>) attributes {dimension_semantics = [#tpu.dimension_semantics<parallel>], iteration_bounds = array<i64: 2>, scalar_prefetch = 0 : i64, scratch_operands = 0 : i64, tpu.core_type = #tpu.core_type<tc>, window_params = [{transform_indices = @transform_0, window_bounds = array<i64: 1, 9, 9, 128>}, {pipeline_mode = #tpu.pipeline_mode<synchronous>, transform_indices = @transform_1, window_bounds = array<i64: 2, 2, 128, 128>}, {pipeline_mode = #tpu.pipeline_mode<synchronous>, transform_indices = @transform_2, window_bounds = array<i64: 128, 128>}, {transform_indices = @transform_3, window_bounds = array<i64: 1, 8, 8, 128>}, {transform_indices = @transform_4, window_bounds = array<i64: 1, 8, 128>}, {transform_indices = @transform_5, window_bounds = array<i64: 1, 8, 128>}, {transform_indices = @transform_6, window_bounds = array<i64: 1, 8, 8, 128>}, {transform_indices = @transform_7, window_bounds = array<i64: 1, 8, 128>}, {transform_indices = @transform_8, window_bounds = array<i64: 1, 8, 128>}]} {
    %cst = arith.constant 0.000000e+00 : f32
    %0 = vector.broadcast %cst : f32 to vector<64x128xf32>
    %c0 = arith.constant 0 : index
    %c0_0 = arith.constant 0 : index
    %c0_1 = arith.constant 0 : index
    %c0_2 = arith.constant 0 : index
    %1 = vector.load %arg1[%c0, %c0_0, %c0_1, %c0_2] : memref<1x9x9x128xf32, #tpu.memory_space<vmem>>, vector<1x8x8x128xf32>
    %2 = vector.shape_cast %1 : vector<1x8x8x128xf32> to vector<8x8x128xf32>
    %3 = vector.shape_cast %2 : vector<8x8x128xf32> to vector<64x128xf32>
    %4 = arith.truncf %3 : vector<64x128xf32> to vector<64x128xbf16>
    %c0_3 = arith.constant 0 : index
    %c0_4 = arith.constant 0 : index
    %c0_5 = arith.constant 0 : index
    %c0_6 = arith.constant 0 : index
    %5 = vector.load %arg2[%c0_3, %c0_4, %c0_5, %c0_6] : memref<2x2x128x128xbf16, #tpu.memory_space<vmem>>, vector<1x1x128x128xbf16>
    %6 = vector.shape_cast %5 : vector<1x1x128x128xbf16> to vector<128x128xbf16>
    %cst_7 = arith.constant dense<0.000000e+00> : vector<64x128xf32>
    %7 = tpu.matmul %4, %6, %cst_7 {dimension_numbers = #tpu.dot_dimension_numbers<[1], [0], [0], [1], [0, 0, 1, 1], [], []>} : vector<64x128xbf16>, vector<128x128xbf16>, vector<64x128xf32> -> vector<64x128xf32>
    %8 = arith.addf %0, %7 : vector<64x128xf32>
    %c0_8 = arith.constant 0 : index
    %c0_9 = arith.constant 0 : index
    %c1 = arith.constant 1 : index
    %c0_10 = arith.constant 0 : index
    %9 = vector.load %arg1[%c0_8, %c0_9, %c1, %c0_10] : memref<1x9x9x128xf32, #tpu.memory_space<vmem>>, vector<1x8x8x128xf32>
    %10 = vector.shape_cast %9 : vector<1x8x8x128xf32> to vector<8x8x128xf32>
    %11 = vector.shape_cast %10 : vector<8x8x128xf32> to vector<64x128xf32>
    %12 = arith.truncf %11 : vector<64x128xf32> to vector<64x128xbf16>
    %c0_11 = arith.constant 0 : index
    %c1_12 = arith.constant 1 : index
    %c0_13 = arith.constant 0 : index
    %c0_14 = arith.constant 0 : index
    %13 = vector.load %arg2[%c0_11, %c1_12, %c0_13, %c0_14] : memref<2x2x128x128xbf16, #tpu.memory_space<vmem>>, vector<1x1x128x128xbf16>
    %14 = vector.shape_cast %13 : vector<1x1x128x128xbf16> to vector<128x128xbf16>
    %cst_15 = arith.constant dense<0.000000e+00> : vector<64x128xf32>
    %15 = tpu.matmul %12, %14, %cst_15 {dimension_numbers = #tpu.dot_dimension_numbers<[1], [0], [0], [1], [0, 0, 1, 1], [], []>} : vector<64x128xbf16>, vector<128x128xbf16>, vector<64x128xf32> -> vector<64x128xf32>
    %16 = arith.addf %8, %15 : vector<64x128xf32>
    %c0_16 = arith.constant 0 : index
    %c1_17 = arith.constant 1 : index
    %c0_18 = arith.constant 0 : index
    %c0_19 = arith.constant 0 : index
    %17 = vector.load %arg1[%c0_16, %c1_17, %c0_18, %c0_19] : memref<1x9x9x128xf32, #tpu.memory_space<vmem>>, vector<1x8x8x128xf32>
    %18 = vector.shape_cast %17 : vector<1x8x8x128xf32> to vector<8x8x128xf32>
    %19 = vector.shape_cast %18 : vector<8x8x128xf32> to vector<64x128xf32>
    %20 = arith.truncf %19 : vector<64x128xf32> to vector<64x128xbf16>
    %c1_20 = arith.constant 1 : index
    %c0_21 = arith.constant 0 : index
    %c0_22 = arith.constant 0 : index
    %c0_23 = arith.constant 0 : index
    %21 = vector.load %arg2[%c1_20, %c0_21, %c0_22, %c0_23] : memref<2x2x128x128xbf16, #tpu.memory_space<vmem>>, vector<1x1x128x128xbf16>
    %22 = vector.shape_cast %21 : vector<1x1x128x128xbf16> to vector<128x128xbf16>
    %cst_24 = arith.constant dense<0.000000e+00> : vector<64x128xf32>
    %23 = tpu.matmul %20, %22, %cst_24 {dimension_numbers = #tpu.dot_dimension_numbers<[1], [0], [0], [1], [0, 0, 1, 1], [], []>} : vector<64x128xbf16>, vector<128x128xbf16>, vector<64x128xf32> -> vector<64x128xf32>
    %24 = arith.addf %16, %23 : vector<64x128xf32>
    %c0_25 = arith.constant 0 : index
    %c1_26 = arith.constant 1 : index
    %c1_27 = arith.constant 1 : index
    %c0_28 = arith.constant 0 : index
    %25 = vector.load %arg1[%c0_25, %c1_26, %c1_27, %c0_28] : memref<1x9x9x128xf32, #tpu.memory_space<vmem>>, vector<1x8x8x128xf32>
    %26 = vector.shape_cast %25 : vector<1x8x8x128xf32> to vector<8x8x128xf32>
    %27 = vector.shape_cast %26 : vector<8x8x128xf32> to vector<64x128xf32>
    %28 = arith.truncf %27 : vector<64x128xf32> to vector<64x128xbf16>
    %c1_29 = arith.constant 1 : index
    %c1_30 = arith.constant 1 : index
    %c0_31 = arith.constant 0 : index
    %c0_32 = arith.constant 0 : index
    %29 = vector.load %arg2[%c1_29, %c1_30, %c0_31, %c0_32] : memref<2x2x128x128xbf16, #tpu.memory_space<vmem>>, vector<1x1x128x128xbf16>
    %30 = vector.shape_cast %29 : vector<1x1x128x128xbf16> to vector<128x128xbf16>
    %cst_33 = arith.constant dense<0.000000e+00> : vector<64x128xf32>
    %31 = tpu.matmul %28, %30, %cst_33 {dimension_numbers = #tpu.dot_dimension_numbers<[1], [0], [0], [1], [0, 0, 1, 1], [], []>} : vector<64x128xbf16>, vector<128x128xbf16>, vector<64x128xf32> -> vector<64x128xf32>
    %32 = arith.addf %24, %31 : vector<64x128xf32>
    %33 = vector.shape_cast %32 : vector<64x128xf32> to vector<1x8x8x128xf32>
    %c0_34 = arith.constant 0 : index
    %c0_35 = arith.constant 0 : index
    %c0_36 = arith.constant 0 : index
    %c0_37 = arith.constant 0 : index
    %34 = vector.load %arg4[%c0_34, %c0_35, %c0_36, %c0_37] : memref<1x8x8x128xf32, #tpu.memory_space<vmem>>, vector<1x8x8x128xf32>
    tpu.vector_store %arg4[%c0_34, %c0_35, %c0_36, %c0_37], %33 {strides = array<i32>} : memref<1x8x8x128xf32, #tpu.memory_space<vmem>>, vector<1x8x8x128xf32>,
    %cst_38 = arith.constant dense<0.000000e+00> : vector<128xf32>
    %35 = vector.multi_reduction <add>, %32, %cst_38 [0] : vector<64x128xf32> to vector<128xf32>
    %36 = vector.shape_cast %35 : vector<128xf32> to vector<1x128xf32>
    %37 = arith.mulf %32, %32 : vector<64x128xf32>
    %cst_39 = arith.constant dense<0.000000e+00> : vector<128xf32>
    %38 = vector.multi_reduction <add>, %37, %cst_39 [0] : vector<64x128xf32> to vector<128xf32>
    %39 = vector.shape_cast %38 : vector<128xf32> to vector<1x128xf32>
    %40 = vector.shape_cast %36 : vector<1x128xf32> to vector<1x128xf32>
    %41 = vector.broadcast %40 : vector<1x128xf32> to vector<8x128xf32>
    %c0_40 = arith.constant 0 : index
    %c0_41 = arith.constant 0 : index
    %c0_42 = arith.constant 0 : index
    %42 = vector.load %arg5[%c0_40, %c0_41, %c0_42] : memref<1x8x128xf32, #tpu.memory_space<vmem>>, vector<1x8x128xf32>
    %43 = vector.shape_cast %42 : vector<1x8x128xf32> to vector<8x128xf32>
    %44 = vector.shape_cast %41 : vector<8x128xf32> to vector<1x8x128xf32>
    tpu.vector_store %arg5[%c0_40, %c0_41, %c0_42], %44 {strides = array<i32>} : memref<1x8x128xf32, #tpu.memory_space<vmem>>, vector<1x8x128xf32>,
    %45 = vector.shape_cast %39 : vector<1x128xf32> to vector<1x128xf32>
    %46 = vector.broadcast %45 : vector<1x128xf32> to vector<8x128xf32>
    %c0_43 = arith.constant 0 : index
    %c0_44 = arith.constant 0 : index
    %c0_45 = arith.constant 0 : index
    %47 = vector.load %arg6[%c0_43, %c0_44, %c0_45] : memref<1x8x128xf32, #tpu.memory_space<vmem>>, vector<1x8x128xf32>
    %48 = vector.shape_cast %47 : vector<1x8x128xf32> to vector<8x128xf32>
    %49 = vector.shape_cast %46 : vector<8x128xf32> to vector<1x8x128xf32>
    tpu.vector_store %arg6[%c0_43, %c0_44, %c0_45], %49 {strides = array<i32>} : memref<1x8x128xf32, #tpu.memory_space<vmem>>, vector<1x8x128xf32>,
    %c0_46 = arith.constant 0 : index
    %c0_47 = arith.constant 0 : index
    %c0_48 = arith.constant 0 : index
    %c0_49 = arith.constant 0 : index
    %50 = vector.load %arg1[%c0_46, %c0_47, %c0_48, %c0_49] : memref<1x9x9x128xf32, #tpu.memory_space<vmem>>, vector<1x8x8x128xf32>
    %51 = vector.shape_cast %50 : vector<1x8x8x128xf32> to vector<8x8x128xf32>
    %52 = vector.shape_cast %51 : vector<8x8x128xf32> to vector<64x128xf32>
    %53 = arith.truncf %52 : vector<64x128xf32> to vector<64x128xbf16>
    %c0_50 = arith.constant 0 : index
    %c0_51 = arith.constant 0 : index
    %54 = vector.load %arg3[%c0_50, %c0_51] : memref<128x128xbf16, #tpu.memory_space<vmem>>, vector<128x128xbf16>
    %cst_52 = arith.constant dense<0.000000e+00> : vector<64x128xf32>
    %55 = tpu.matmul %53, %54, %cst_52 {dimension_numbers = #tpu.dot_dimension_numbers<[1], [0], [0], [1], [0, 0, 1, 1], [], []>} : vector<64x128xbf16>, vector<128x128xbf16>, vector<64x128xf32> -> vector<64x128xf32>
    %56 = vector.shape_cast %55 : vector<64x128xf32> to vector<1x8x8x128xf32>
    %c0_53 = arith.constant 0 : index
    %c0_54 = arith.constant 0 : index
    %c0_55 = arith.constant 0 : index
    %c0_56 = arith.constant 0 : index
    %57 = vector.load %arg7[%c0_53, %c0_54, %c0_55, %c0_56] : memref<1x8x8x128xf32, #tpu.memory_space<vmem>>, vector<1x8x8x128xf32>
    tpu.vector_store %arg7[%c0_53, %c0_54, %c0_55, %c0_56], %56 {strides = array<i32>} : memref<1x8x8x128xf32, #tpu.memory_space<vmem>>, vector<1x8x8x128xf32>,
    %cst_57 = arith.constant dense<0.000000e+00> : vector<128xf32>
    %58 = vector.multi_reduction <add>, %55, %cst_57 [0] : vector<64x128xf32> to vector<128xf32>
    %59 = vector.shape_cast %58 : vector<128xf32> to vector<1x128xf32>
    %60 = arith.mulf %55, %55 : vector<64x128xf32>
    %cst_58 = arith.constant dense<0.000000e+00> : vector<128xf32>
    %61 = vector.multi_reduction <add>, %60, %cst_58 [0] : vector<64x128xf32> to vector<128xf32>
    %62 = vector.shape_cast %61 : vector<128xf32> to vector<1x128xf32>
    %63 = vector.shape_cast %59 : vector<1x128xf32> to vector<1x128xf32>
    %64 = vector.broadcast %63 : vector<1x128xf32> to vector<8x128xf32>
    %c0_59 = arith.constant 0 : index
    %c0_60 = arith.constant 0 : index
    %c0_61 = arith.constant 0 : index
    %65 = vector.load %arg8[%c0_59, %c0_60, %c0_61] : memref<1x8x128xf32, #tpu.memory_space<vmem>>, vector<1x8x128xf32>
    %66 = vector.shape_cast %65 : vector<1x8x128xf32> to vector<8x128xf32>
    %67 = vector.shape_cast %64 : vector<8x128xf32> to vector<1x8x128xf32>
    tpu.vector_store %arg8[%c0_59, %c0_60, %c0_61], %67 {strides = array<i32>} : memref<1x8x128xf32, #tpu.memory_space<vmem>>, vector<1x8x128xf32>,
    %68 = vector.shape_cast %62 : vector<1x128xf32> to vector<1x128xf32>
    %69 = vector.broadcast %68 : vector<1x128xf32> to vector<8x128xf32>
    %c0_62 = arith.constant 0 : index
    %c0_63 = arith.constant 0 : index
    %c0_64 = arith.constant 0 : index
    %70 = vector.load %arg9[%c0_62, %c0_63, %c0_64] : memref<1x8x128xf32, #tpu.memory_space<vmem>>, vector<1x8x128xf32>
    %71 = vector.shape_cast %70 : vector<1x8x128xf32> to vector<8x128xf32>
    %72 = vector.shape_cast %69 : vector<8x128xf32> to vector<1x8x128xf32>
    tpu.vector_store %arg9[%c0_62, %c0_63, %c0_64], %72 {strides = array<i32>} : memref<1x8x128xf32, #tpu.memory_space<vmem>>, vector<1x8x128xf32>,
    return
  }
  func.func @transform_0(%arg0: i32) -> (i32, i32, i32, i32) {
    %c0_i32 = arith.constant 0 : i32
    %c0_i32_0 = arith.constant 0 : i32
    %c0_i32_1 = arith.constant 0 : i32
    %c0_i32_2 = arith.constant 0 : i32
    return %arg0, %c0_i32, %c0_i32_0, %c0_i32_1 : i32, i32, i32, i32
  }
  func.func @transform_1(%arg0: i32) -> (i32, i32, i32, i32) {
    %c0_i32 = arith.constant 0 : i32
    %c0_i32_0 = arith.constant 0 : i32
    %c0_i32_1 = arith.constant 0 : i32
    %c0_i32_2 = arith.constant 0 : i32
    %c0_i32_3 = arith.constant 0 : i32
    return %c0_i32, %c0_i32_0, %c0_i32_1, %c0_i32_2 : i32, i32, i32, i32
  }
  func.func @transform_2(%arg0: i32) -> (i32, i32) {
    %c0_i32 = arith.constant 0 : i32
    %c0_i32_0 = arith.constant 0 : i32
    %c0_i32_1 = arith.constant 0 : i32
    return %c0_i32, %c0_i32_0 : i32, i32
  }
  func.func @transform_3(%arg0: i32) -> (i32, i32, i32, i32) {
    %c0_i32 = arith.constant 0 : i32
    %c0_i32_0 = arith.constant 0 : i32
    %c0_i32_1 = arith.constant 0 : i32
    %c0_i32_2 = arith.constant 0 : i32
    return %arg0, %c0_i32, %c0_i32_0, %c0_i32_1 : i32, i32, i32, i32
  }
  func.func @transform_4(%arg0: i32) -> (i32, i32, i32) {
    %c0_i32 = arith.constant 0 : i32
    %c0_i32_0 = arith.constant 0 : i32
    %c0_i32_1 = arith.constant 0 : i32
    return %arg0, %c0_i32, %c0_i32_0 : i32, i32, i32
  }
  func.func @transform_5(%arg0: i32) -> (i32, i32, i32) {
    %c0_i32 = arith.constant 0 : i32
    %c0_i32_0 = arith.constant 0 : i32
    %c0_i32_1 = arith.constant 0 : i32
    return %arg0, %c0_i32, %c0_i32_0 : i32, i32, i32
  }
  func.func @transform_6(%arg0: i32) -> (i32, i32, i32, i32) {
    %c0_i32 = arith.constant 0 : i32
    %c0_i32_0 = arith.constant 0 : i32
    %c0_i32_1 = arith.constant 0 : i32
    %c0_i32_2 = arith.constant 0 : i32
    return %arg0, %c0_i32, %c0_i32_0, %c0_i32_1 : i32, i32, i32, i32
  }
  func.func @transform_7(%arg0: i32) -> (i32, i32, i32) {
    %c0_i32 = arith.constant 0 : i32
    %c0_i32_0 = arith.constant 0 : i32
    %c0_i32_1 = arith.constant 0 : i32
    return %arg0, %c0_i32, %c0_i32_0 : i32, i32, i32
  }
  func.func @transform_8(%arg0: i32) -> (i32, i32, i32) {
    %c0_i32 = arith.constant 0 : i32
    %c0_i32_0 = arith.constant 0 : i32
    %c0_i32_1 = arith.constant 0 : i32
    return %arg0, %c0_i32, %c0_i32_0 : i32, i32, i32
  }
}

module attributes {stable_mosaic.version = 11 : i64} {
  func.func @_finalize_kernel(%arg0: i32, %arg1: memref<64x128xf32, #tpu.memory_space<vmem>>, %arg2: memref<8x128xf32, #tpu.memory_space<vmem>>, %arg3: memref<8x128xf32, #tpu.memory_space<vmem>>, %arg4: memref<64x128xf32, #tpu.memory_space<vmem>>, %arg5: memref<8x128xf32, #tpu.memory_space<vmem>>, %arg6: memref<8x128xf32, #tpu.memory_space<vmem>>, %arg7: memref<64x128xf32, #tpu.memory_space<vmem>>) attributes {dimension_semantics = [#tpu.dimension_semantics<parallel>], iteration_bounds = array<i64: 2>, scalar_prefetch = 0 : i64, scratch_operands = 0 : i64, tpu.core_type = #tpu.core_type<tc>, window_params = [{transform_indices = @transform_0, window_bounds = array<i64: 64, 128>}, {pipeline_mode = #tpu.pipeline_mode<synchronous>, transform_indices = @transform_1, window_bounds = array<i64: 8, 128>}, {pipeline_mode = #tpu.pipeline_mode<synchronous>, transform_indices = @transform_2, window_bounds = array<i64: 8, 128>}, {transform_indices = @transform_3, window_bounds = array<i64: 64, 128>}, {pipeline_mode = #tpu.pipeline_mode<synchronous>, transform_indices = @transform_4, window_bounds = array<i64: 8, 128>}, {pipeline_mode = #tpu.pipeline_mode<synchronous>, transform_indices = @transform_5, window_bounds = array<i64: 8, 128>}, {transform_indices = @transform_6, window_bounds = array<i64: 64, 128>}]} {
    %c0 = arith.constant 0 : index
    %c0_0 = arith.constant 0 : index
    %0 = vector.load %arg1[%c0, %c0_0] : memref<64x128xf32, #tpu.memory_space<vmem>>, vector<64x128xf32>
    %c0_1 = arith.constant 0 : index
    %c0_2 = arith.constant 0 : index
    %1 = vector.load %arg2[%c0_1, %c0_2] : memref<8x128xf32, #tpu.memory_space<vmem>>, vector<1x128xf32>
    %2 = vector.broadcast %1 : vector<1x128xf32> to vector<64x128xf32>
    %3 = arith.mulf %0, %2 : vector<64x128xf32>
    %c0_3 = arith.constant 0 : index
    %c0_4 = arith.constant 0 : index
    %4 = vector.load %arg3[%c0_3, %c0_4] : memref<8x128xf32, #tpu.memory_space<vmem>>, vector<1x128xf32>
    %5 = vector.broadcast %4 : vector<1x128xf32> to vector<64x128xf32>
    %6 = arith.addf %3, %5 : vector<64x128xf32>
    %c0_5 = arith.constant 0 : index
    %c0_6 = arith.constant 0 : index
    %7 = vector.load %arg4[%c0_5, %c0_6] : memref<64x128xf32, #tpu.memory_space<vmem>>, vector<64x128xf32>
    %c0_7 = arith.constant 0 : index
    %c0_8 = arith.constant 0 : index
    %8 = vector.load %arg5[%c0_7, %c0_8] : memref<8x128xf32, #tpu.memory_space<vmem>>, vector<1x128xf32>
    %9 = vector.broadcast %8 : vector<1x128xf32> to vector<64x128xf32>
    %10 = arith.mulf %7, %9 : vector<64x128xf32>
    %c0_9 = arith.constant 0 : index
    %c0_10 = arith.constant 0 : index
    %11 = vector.load %arg6[%c0_9, %c0_10] : memref<8x128xf32, #tpu.memory_space<vmem>>, vector<1x128xf32>
    %12 = vector.broadcast %11 : vector<1x128xf32> to vector<64x128xf32>
    %13 = arith.addf %10, %12 : vector<64x128xf32>
    %14 = arith.addf %6, %13 : vector<64x128xf32>
    %cst = arith.constant 0.000000e+00 : f32
    %15 = vector.broadcast %cst : f32 to vector<64x128xf32>
    %16 = arith.maximumf %14, %15 : vector<64x128xf32>
    %c0_11 = arith.constant 0 : index
    %c0_12 = arith.constant 0 : index
    %17 = vector.load %arg7[%c0_11, %c0_12] : memref<64x128xf32, #tpu.memory_space<vmem>>, vector<64x128xf32>
    tpu.vector_store %arg7[%c0_11, %c0_12], %16 {strides = array<i32>} : memref<64x128xf32, #tpu.memory_space<vmem>>, vector<64x128xf32>,
    return
  }
  func.func @transform_0(%arg0: i32) -> (i32, i32) {
    %c0_i32 = arith.constant 0 : i32
    %c0_i32_0 = arith.constant 0 : i32
    return %arg0, %c0_i32 : i32, i32
  }
  func.func @transform_1(%arg0: i32) -> (i32, i32) {
    %c0_i32 = arith.constant 0 : i32
    %c0_i32_0 = arith.constant 0 : i32
    %c0_i32_1 = arith.constant 0 : i32
    return %c0_i32, %c0_i32_0 : i32, i32
  }
  func.func @transform_2(%arg0: i32) -> (i32, i32) {
    %c0_i32 = arith.constant 0 : i32
    %c0_i32_0 = arith.constant 0 : i32
    %c0_i32_1 = arith.constant 0 : i32
    return %c0_i32, %c0_i32_0 : i32, i32
  }
  func.func @transform_3(%arg0: i32) -> (i32, i32) {
    %c0_i32 = arith.constant 0 : i32
    %c0_i32_0 = arith.constant 0 : i32
    return %arg0, %c0_i32 : i32, i32
  }
  func.func @transform_4(%arg0: i32) -> (i32, i32) {
    %c0_i32 = arith.constant 0 : i32
    %c0_i32_0 = arith.constant 0 : i32
    %c0_i32_1 = arith.constant 0 : i32
    return %c0_i32, %c0_i32_0 : i32, i32
  }
  func.func @transform_5(%arg0: i32) -> (i32, i32) {
    %c0_i32 = arith.constant 0 : i32
    %c0_i32_0 = arith.constant 0 : i32
    %c0_i32_1 = arith.constant 0 : i32
    return %c0_i32, %c0_i32_0 : i32, i32
  }
  func.func @transform_6(%arg0: i32) -> (i32, i32) {
    %c0_i32 = arith.constant 0 : i32
    %c0_i32_0 = arith.constant 0 : i32
    return %arg0, %c0_i32 : i32, i32
  }
}

module attributes {stable_mosaic.version = 11 : i64} {
  func.func @_bn_relu_conv_stats_kernel(%arg0: i32, %arg1: memref<1x8x8x128xf32, #tpu.memory_space<vmem>>, %arg2: memref<8x128xf32, #tpu.memory_space<vmem>>, %arg3: memref<8x128xf32, #tpu.memory_space<vmem>>, %arg4: memref<3x3x128x128xbf16, #tpu.memory_space<vmem>>, %arg5: memref<1x8x8x128xf32, #tpu.memory_space<vmem>>, %arg6: memref<1x8x128xf32, #tpu.memory_space<vmem>>, %arg7: memref<1x8x128xf32, #tpu.memory_space<vmem>>, %arg8: memref<10x10x128xf32, #tpu.memory_space<vmem>>) attributes {dimension_semantics = [#tpu.dimension_semantics<parallel>], iteration_bounds = array<i64: 2>, scalar_prefetch = 0 : i64, scratch_operands = 1 : i64, tpu.core_type = #tpu.core_type<tc>, window_params = [{transform_indices = @transform_0, window_bounds = array<i64: 1, 8, 8, 128>}, {pipeline_mode = #tpu.pipeline_mode<synchronous>, transform_indices = @transform_1, window_bounds = array<i64: 8, 128>}, {pipeline_mode = #tpu.pipeline_mode<synchronous>, transform_indices = @transform_2, window_bounds = array<i64: 8, 128>}, {pipeline_mode = #tpu.pipeline_mode<synchronous>, transform_indices = @transform_3, window_bounds = array<i64: 3, 3, 128, 128>}, {transform_indices = @transform_4, window_bounds = array<i64: 1, 8, 8, 128>}, {transform_indices = @transform_5, window_bounds = array<i64: 1, 8, 128>}, {transform_indices = @transform_6, window_bounds = array<i64: 1, 8, 128>}]} {
    %c0 = arith.constant 0 : index
    %c0_0 = arith.constant 0 : index
    %c0_1 = arith.constant 0 : index
    %c0_2 = arith.constant 0 : index
    %0 = vector.load %arg1[%c0, %c0_0, %c0_1, %c0_2] : memref<1x8x8x128xf32, #tpu.memory_space<vmem>>, vector<1x8x8x128xf32>
    %1 = vector.shape_cast %0 : vector<1x8x8x128xf32> to vector<8x8x128xf32>
    %2 = vector.shape_cast %1 : vector<8x8x128xf32> to vector<64x128xf32>
    %c0_3 = arith.constant 0 : index
    %c0_4 = arith.constant 0 : index
    %3 = vector.load %arg2[%c0_3, %c0_4] : memref<8x128xf32, #tpu.memory_space<vmem>>, vector<1x128xf32>
    %4 = vector.broadcast %3 : vector<1x128xf32> to vector<64x128xf32>
    %5 = arith.mulf %2, %4 : vector<64x128xf32>
    %c0_5 = arith.constant 0 : index
    %c0_6 = arith.constant 0 : index
    %6 = vector.load %arg3[%c0_5, %c0_6] : memref<8x128xf32, #tpu.memory_space<vmem>>, vector<1x128xf32>
    %7 = vector.broadcast %6 : vector<1x128xf32> to vector<64x128xf32>
    %8 = arith.addf %5, %7 : vector<64x128xf32>
    %cst = arith.constant 0.000000e+00 : f32
    %9 = vector.broadcast %cst : f32 to vector<64x128xf32>
    %10 = arith.maximumf %8, %9 : vector<64x128xf32>
    %cst_7 = arith.constant 0.000000e+00 : f32
    %11 = vector.broadcast %cst_7 : f32 to vector<10x10x128xf32>
    %c0_8 = arith.constant 0 : index
    %c0_9 = arith.constant 0 : index
    %c0_10 = arith.constant 0 : index
    %12 = vector.load %arg8[%c0_8, %c0_9, %c0_10] : memref<10x10x128xf32, #tpu.memory_space<vmem>>, vector<10x10x128xf32>
    tpu.vector_store %arg8[%c0_8, %c0_9, %c0_10], %11 {strides = array<i32>} : memref<10x10x128xf32, #tpu.memory_space<vmem>>, vector<10x10x128xf32>,
    %13 = vector.shape_cast %10 : vector<64x128xf32> to vector<8x8x128xf32>
    %c1 = arith.constant 1 : index
    %c1_11 = arith.constant 1 : index
    %c0_12 = arith.constant 0 : index
    %14 = vector.load %arg8[%c1, %c1_11, %c0_12] : memref<10x10x128xf32, #tpu.memory_space<vmem>>, vector<8x8x128xf32>
    tpu.vector_store %arg8[%c1, %c1_11, %c0_12], %13 {strides = array<i32>} : memref<10x10x128xf32, #tpu.memory_space<vmem>>, vector<8x8x128xf32>,
    %cst_13 = arith.constant 0.000000e+00 : f32
    %15 = vector.broadcast %cst_13 : f32 to vector<64x128xf32>
    %c0_14 = arith.constant 0 : index
    %c0_15 = arith.constant 0 : index
    %c0_16 = arith.constant 0 : index
    %16 = vector.load %arg8[%c0_14, %c0_15, %c0_16] : memref<10x10x128xf32, #tpu.memory_space<vmem>>, vector<8x8x128xf32>
    %17 = vector.shape_cast %16 : vector<8x8x128xf32> to vector<64x128xf32>
    %18 = arith.truncf %17 : vector<64x128xf32> to vector<64x128xbf16>
    %c0_17 = arith.constant 0 : index
    %c0_18 = arith.constant 0 : index
    %c0_19 = arith.constant 0 : index
    %c0_20 = arith.constant 0 : index
    %19 = vector.load %arg4[%c0_17, %c0_18, %c0_19, %c0_20] : memref<3x3x128x128xbf16, #tpu.memory_space<vmem>>, vector<1x1x128x128xbf16>
    %20 = vector.shape_cast %19 : vector<1x1x128x128xbf16> to vector<128x128xbf16>
    %cst_21 = arith.constant dense<0.000000e+00> : vector<64x128xf32>
    %21 = tpu.matmul %18, %20, %cst_21 {dimension_numbers = #tpu.dot_dimension_numbers<[1], [0], [0], [1], [0, 0, 1, 1], [], []>} : vector<64x128xbf16>, vector<128x128xbf16>, vector<64x128xf32> -> vector<64x128xf32>
    %22 = arith.addf %15, %21 : vector<64x128xf32>
    %c0_22 = arith.constant 0 : index
    %c1_23 = arith.constant 1 : index
    %c0_24 = arith.constant 0 : index
    %23 = vector.load %arg8[%c0_22, %c1_23, %c0_24] : memref<10x10x128xf32, #tpu.memory_space<vmem>>, vector<8x8x128xf32>
    %24 = vector.shape_cast %23 : vector<8x8x128xf32> to vector<64x128xf32>
    %25 = arith.truncf %24 : vector<64x128xf32> to vector<64x128xbf16>
    %c0_25 = arith.constant 0 : index
    %c1_26 = arith.constant 1 : index
    %c0_27 = arith.constant 0 : index
    %c0_28 = arith.constant 0 : index
    %26 = vector.load %arg4[%c0_25, %c1_26, %c0_27, %c0_28] : memref<3x3x128x128xbf16, #tpu.memory_space<vmem>>, vector<1x1x128x128xbf16>
    %27 = vector.shape_cast %26 : vector<1x1x128x128xbf16> to vector<128x128xbf16>
    %cst_29 = arith.constant dense<0.000000e+00> : vector<64x128xf32>
    %28 = tpu.matmul %25, %27, %cst_29 {dimension_numbers = #tpu.dot_dimension_numbers<[1], [0], [0], [1], [0, 0, 1, 1], [], []>} : vector<64x128xbf16>, vector<128x128xbf16>, vector<64x128xf32> -> vector<64x128xf32>
    %29 = arith.addf %22, %28 : vector<64x128xf32>
    %c0_30 = arith.constant 0 : index
    %c2 = arith.constant 2 : index
    %c0_31 = arith.constant 0 : index
    %30 = vector.load %arg8[%c0_30, %c2, %c0_31] : memref<10x10x128xf32, #tpu.memory_space<vmem>>, vector<8x8x128xf32>
    %31 = vector.shape_cast %30 : vector<8x8x128xf32> to vector<64x128xf32>
    %32 = arith.truncf %31 : vector<64x128xf32> to vector<64x128xbf16>
    %c0_32 = arith.constant 0 : index
    %c2_33 = arith.constant 2 : index
    %c0_34 = arith.constant 0 : index
    %c0_35 = arith.constant 0 : index
    %33 = vector.load %arg4[%c0_32, %c2_33, %c0_34, %c0_35] : memref<3x3x128x128xbf16, #tpu.memory_space<vmem>>, vector<1x1x128x128xbf16>
    %34 = vector.shape_cast %33 : vector<1x1x128x128xbf16> to vector<128x128xbf16>
    %cst_36 = arith.constant dense<0.000000e+00> : vector<64x128xf32>
    %35 = tpu.matmul %32, %34, %cst_36 {dimension_numbers = #tpu.dot_dimension_numbers<[1], [0], [0], [1], [0, 0, 1, 1], [], []>} : vector<64x128xbf16>, vector<128x128xbf16>, vector<64x128xf32> -> vector<64x128xf32>
    %36 = arith.addf %29, %35 : vector<64x128xf32>
    %c1_37 = arith.constant 1 : index
    %c0_38 = arith.constant 0 : index
    %c0_39 = arith.constant 0 : index
    %37 = vector.load %arg8[%c1_37, %c0_38, %c0_39] : memref<10x10x128xf32, #tpu.memory_space<vmem>>, vector<8x8x128xf32>
    %38 = vector.shape_cast %37 : vector<8x8x128xf32> to vector<64x128xf32>
    %39 = arith.truncf %38 : vector<64x128xf32> to vector<64x128xbf16>
    %c1_40 = arith.constant 1 : index
    %c0_41 = arith.constant 0 : index
    %c0_42 = arith.constant 0 : index
    %c0_43 = arith.constant 0 : index
    %40 = vector.load %arg4[%c1_40, %c0_41, %c0_42, %c0_43] : memref<3x3x128x128xbf16, #tpu.memory_space<vmem>>, vector<1x1x128x128xbf16>
    %41 = vector.shape_cast %40 : vector<1x1x128x128xbf16> to vector<128x128xbf16>
    %cst_44 = arith.constant dense<0.000000e+00> : vector<64x128xf32>
    %42 = tpu.matmul %39, %41, %cst_44 {dimension_numbers = #tpu.dot_dimension_numbers<[1], [0], [0], [1], [0, 0, 1, 1], [], []>} : vector<64x128xbf16>, vector<128x128xbf16>, vector<64x128xf32> -> vector<64x128xf32>
    %43 = arith.addf %36, %42 : vector<64x128xf32>
    %c1_45 = arith.constant 1 : index
    %c1_46 = arith.constant 1 : index
    %c0_47 = arith.constant 0 : index
    %44 = vector.load %arg8[%c1_45, %c1_46, %c0_47] : memref<10x10x128xf32, #tpu.memory_space<vmem>>, vector<8x8x128xf32>
    %45 = vector.shape_cast %44 : vector<8x8x128xf32> to vector<64x128xf32>
    %46 = arith.truncf %45 : vector<64x128xf32> to vector<64x128xbf16>
    %c1_48 = arith.constant 1 : index
    %c1_49 = arith.constant 1 : index
    %c0_50 = arith.constant 0 : index
    %c0_51 = arith.constant 0 : index
    %47 = vector.load %arg4[%c1_48, %c1_49, %c0_50, %c0_51] : memref<3x3x128x128xbf16, #tpu.memory_space<vmem>>, vector<1x1x128x128xbf16>
    %48 = vector.shape_cast %47 : vector<1x1x128x128xbf16> to vector<128x128xbf16>
    %cst_52 = arith.constant dense<0.000000e+00> : vector<64x128xf32>
    %49 = tpu.matmul %46, %48, %cst_52 {dimension_numbers = #tpu.dot_dimension_numbers<[1], [0], [0], [1], [0, 0, 1, 1], [], []>} : vector<64x128xbf16>, vector<128x128xbf16>, vector<64x128xf32> -> vector<64x128xf32>
    %50 = arith.addf %43, %49 : vector<64x128xf32>
    %c1_53 = arith.constant 1 : index
    %c2_54 = arith.constant 2 : index
    %c0_55 = arith.constant 0 : index
    %51 = vector.load %arg8[%c1_53, %c2_54, %c0_55] : memref<10x10x128xf32, #tpu.memory_space<vmem>>, vector<8x8x128xf32>
    %52 = vector.shape_cast %51 : vector<8x8x128xf32> to vector<64x128xf32>
    %53 = arith.truncf %52 : vector<64x128xf32> to vector<64x128xbf16>
    %c1_56 = arith.constant 1 : index
    %c2_57 = arith.constant 2 : index
    %c0_58 = arith.constant 0 : index
    %c0_59 = arith.constant 0 : index
    %54 = vector.load %arg4[%c1_56, %c2_57, %c0_58, %c0_59] : memref<3x3x128x128xbf16, #tpu.memory_space<vmem>>, vector<1x1x128x128xbf16>
    %55 = vector.shape_cast %54 : vector<1x1x128x128xbf16> to vector<128x128xbf16>
    %cst_60 = arith.constant dense<0.000000e+00> : vector<64x128xf32>
    %56 = tpu.matmul %53, %55, %cst_60 {dimension_numbers = #tpu.dot_dimension_numbers<[1], [0], [0], [1], [0, 0, 1, 1], [], []>} : vector<64x128xbf16>, vector<128x128xbf16>, vector<64x128xf32> -> vector<64x128xf32>
    %57 = arith.addf %50, %56 : vector<64x128xf32>
    %c2_61 = arith.constant 2 : index
    %c0_62 = arith.constant 0 : index
    %c0_63 = arith.constant 0 : index
    %58 = vector.load %arg8[%c2_61, %c0_62, %c0_63] : memref<10x10x128xf32, #tpu.memory_space<vmem>>, vector<8x8x128xf32>
    %59 = vector.shape_cast %58 : vector<8x8x128xf32> to vector<64x128xf32>
    %60 = arith.truncf %59 : vector<64x128xf32> to vector<64x128xbf16>
    %c2_64 = arith.constant 2 : index
    %c0_65 = arith.constant 0 : index
    %c0_66 = arith.constant 0 : index
    %c0_67 = arith.constant 0 : index
    %61 = vector.load %arg4[%c2_64, %c0_65, %c0_66, %c0_67] : memref<3x3x128x128xbf16, #tpu.memory_space<vmem>>, vector<1x1x128x128xbf16>
    %62 = vector.shape_cast %61 : vector<1x1x128x128xbf16> to vector<128x128xbf16>
    %cst_68 = arith.constant dense<0.000000e+00> : vector<64x128xf32>
    %63 = tpu.matmul %60, %62, %cst_68 {dimension_numbers = #tpu.dot_dimension_numbers<[1], [0], [0], [1], [0, 0, 1, 1], [], []>} : vector<64x128xbf16>, vector<128x128xbf16>, vector<64x128xf32> -> vector<64x128xf32>
    %64 = arith.addf %57, %63 : vector<64x128xf32>
    %c2_69 = arith.constant 2 : index
    %c1_70 = arith.constant 1 : index
    %c0_71 = arith.constant 0 : index
    %65 = vector.load %arg8[%c2_69, %c1_70, %c0_71] : memref<10x10x128xf32, #tpu.memory_space<vmem>>, vector<8x8x128xf32>
    %66 = vector.shape_cast %65 : vector<8x8x128xf32> to vector<64x128xf32>
    %67 = arith.truncf %66 : vector<64x128xf32> to vector<64x128xbf16>
    %c2_72 = arith.constant 2 : index
    %c1_73 = arith.constant 1 : index
    %c0_74 = arith.constant 0 : index
    %c0_75 = arith.constant 0 : index
    %68 = vector.load %arg4[%c2_72, %c1_73, %c0_74, %c0_75] : memref<3x3x128x128xbf16, #tpu.memory_space<vmem>>, vector<1x1x128x128xbf16>
    %69 = vector.shape_cast %68 : vector<1x1x128x128xbf16> to vector<128x128xbf16>
    %cst_76 = arith.constant dense<0.000000e+00> : vector<64x128xf32>
    %70 = tpu.matmul %67, %69, %cst_76 {dimension_numbers = #tpu.dot_dimension_numbers<[1], [0], [0], [1], [0, 0, 1, 1], [], []>} : vector<64x128xbf16>, vector<128x128xbf16>, vector<64x128xf32> -> vector<64x128xf32>
    %71 = arith.addf %64, %70 : vector<64x128xf32>
    %c2_77 = arith.constant 2 : index
    %c2_78 = arith.constant 2 : index
    %c0_79 = arith.constant 0 : index
    %72 = vector.load %arg8[%c2_77, %c2_78, %c0_79] : memref<10x10x128xf32, #tpu.memory_space<vmem>>, vector<8x8x128xf32>
    %73 = vector.shape_cast %72 : vector<8x8x128xf32> to vector<64x128xf32>
    %74 = arith.truncf %73 : vector<64x128xf32> to vector<64x128xbf16>
    %c2_80 = arith.constant 2 : index
    %c2_81 = arith.constant 2 : index
    %c0_82 = arith.constant 0 : index
    %c0_83 = arith.constant 0 : index
    %75 = vector.load %arg4[%c2_80, %c2_81, %c0_82, %c0_83] : memref<3x3x128x128xbf16, #tpu.memory_space<vmem>>, vector<1x1x128x128xbf16>
    %76 = vector.shape_cast %75 : vector<1x1x128x128xbf16> to vector<128x128xbf16>
    %cst_84 = arith.constant dense<0.000000e+00> : vector<64x128xf32>
    %77 = tpu.matmul %74, %76, %cst_84 {dimension_numbers = #tpu.dot_dimension_numbers<[1], [0], [0], [1], [0, 0, 1, 1], [], []>} : vector<64x128xbf16>, vector<128x128xbf16>, vector<64x128xf32> -> vector<64x128xf32>
    %78 = arith.addf %71, %77 : vector<64x128xf32>
    %79 = vector.shape_cast %78 : vector<64x128xf32> to vector<1x8x8x128xf32>
    %c0_85 = arith.constant 0 : index
    %c0_86 = arith.constant 0 : index
    %c0_87 = arith.constant 0 : index
    %c0_88 = arith.constant 0 : index
    %80 = vector.load %arg5[%c0_85, %c0_86, %c0_87, %c0_88] : memref<1x8x8x128xf32, #tpu.memory_space<vmem>>, vector<1x8x8x128xf32>
    tpu.vector_store %arg5[%c0_85, %c0_86, %c0_87, %c0_88], %79 {strides = array<i32>} : memref<1x8x8x128xf32, #tpu.memory_space<vmem>>, vector<1x8x8x128xf32>,
    %cst_89 = arith.constant dense<0.000000e+00> : vector<128xf32>
    %81 = vector.multi_reduction <add>, %78, %cst_89 [0] : vector<64x128xf32> to vector<128xf32>
    %82 = vector.shape_cast %81 : vector<128xf32> to vector<1x128xf32>
    %83 = arith.mulf %78, %78 : vector<64x128xf32>
    %cst_90 = arith.constant dense<0.000000e+00> : vector<128xf32>
    %84 = vector.multi_reduction <add>, %83, %cst_90 [0] : vector<64x128xf32> to vector<128xf32>
    %85 = vector.shape_cast %84 : vector<128xf32> to vector<1x128xf32>
    %86 = vector.shape_cast %82 : vector<1x128xf32> to vector<1x128xf32>
    %87 = vector.broadcast %86 : vector<1x128xf32> to vector<8x128xf32>
    %c0_91 = arith.constant 0 : index
    %c0_92 = arith.constant 0 : index
    %c0_93 = arith.constant 0 : index
    %88 = vector.load %arg6[%c0_91, %c0_92, %c0_93] : memref<1x8x128xf32, #tpu.memory_space<vmem>>, vector<1x8x128xf32>
    %89 = vector.shape_cast %88 : vector<1x8x128xf32> to vector<8x128xf32>
    %90 = vector.shape_cast %87 : vector<8x128xf32> to vector<1x8x128xf32>
    tpu.vector_store %arg6[%c0_91, %c0_92, %c0_93], %90 {strides = array<i32>} : memref<1x8x128xf32, #tpu.memory_space<vmem>>, vector<1x8x128xf32>,
    %91 = vector.shape_cast %85 : vector<1x128xf32> to vector<1x128xf32>
    %92 = vector.broadcast %91 : vector<1x128xf32> to vector<8x128xf32>
    %c0_94 = arith.constant 0 : index
    %c0_95 = arith.constant 0 : index
    %c0_96 = arith.constant 0 : index
    %93 = vector.load %arg7[%c0_94, %c0_95, %c0_96] : memref<1x8x128xf32, #tpu.memory_space<vmem>>, vector<1x8x128xf32>
    %94 = vector.shape_cast %93 : vector<1x8x128xf32> to vector<8x128xf32>
    %95 = vector.shape_cast %92 : vector<8x128xf32> to vector<1x8x128xf32>
    tpu.vector_store %arg7[%c0_94, %c0_95, %c0_96], %95 {strides = array<i32>} : memref<1x8x128xf32, #tpu.memory_space<vmem>>, vector<1x8x128xf32>,
    return
  }
  func.func @transform_0(%arg0: i32) -> (i32, i32, i32, i32) {
    %c0_i32 = arith.constant 0 : i32
    %c0_i32_0 = arith.constant 0 : i32
    %c0_i32_1 = arith.constant 0 : i32
    %c0_i32_2 = arith.constant 0 : i32
    return %arg0, %c0_i32, %c0_i32_0, %c0_i32_1 : i32, i32, i32, i32
  }
  func.func @transform_1(%arg0: i32) -> (i32, i32) {
    %c0_i32 = arith.constant 0 : i32
    %c0_i32_0 = arith.constant 0 : i32
    %c0_i32_1 = arith.constant 0 : i32
    return %c0_i32, %c0_i32_0 : i32, i32
  }
  func.func @transform_2(%arg0: i32) -> (i32, i32) {
    %c0_i32 = arith.constant 0 : i32
    %c0_i32_0 = arith.constant 0 : i32
    %c0_i32_1 = arith.constant 0 : i32
    return %c0_i32, %c0_i32_0 : i32, i32
  }
  func.func @transform_3(%arg0: i32) -> (i32, i32, i32, i32) {
    %c0_i32 = arith.constant 0 : i32
    %c0_i32_0 = arith.constant 0 : i32
    %c0_i32_1 = arith.constant 0 : i32
    %c0_i32_2 = arith.constant 0 : i32
    %c0_i32_3 = arith.constant 0 : i32
    return %c0_i32, %c0_i32_0, %c0_i32_1, %c0_i32_2 : i32, i32, i32, i32
  }
  func.func @transform_4(%arg0: i32) -> (i32, i32, i32, i32) {
    %c0_i32 = arith.constant 0 : i32
    %c0_i32_0 = arith.constant 0 : i32
    %c0_i32_1 = arith.constant 0 : i32
    %c0_i32_2 = arith.constant 0 : i32
    return %arg0, %c0_i32, %c0_i32_0, %c0_i32_1 : i32, i32, i32, i32
  }
  func.func @transform_5(%arg0: i32) -> (i32, i32, i32) {
    %c0_i32 = arith.constant 0 : i32
    %c0_i32_0 = arith.constant 0 : i32
    %c0_i32_1 = arith.constant 0 : i32
    return %arg0, %c0_i32, %c0_i32_0 : i32, i32, i32
  }
  func.func @transform_6(%arg0: i32) -> (i32, i32, i32) {
    %c0_i32 = arith.constant 0 : i32
    %c0_i32_0 = arith.constant 0 : i32
    %c0_i32_1 = arith.constant 0 : i32
    return %arg0, %c0_i32, %c0_i32_0 : i32, i32, i32
  }
}

</mosaic_0001>

<llo_original>
// kernel: basic_block_forward.5
$region0: #{basic_block_forward.5}
  #allocation0 [shape = 'u32[]', space=smem, size = 0x4, offset = 0x4, fixed_abs, tag = 'smem constant byte address 0x4 - core index']
  #allocation1 [shape = 'u32[144,128]{1,0:T(1,128)}', space=vmem, size = 0x12000, scoped, tag = 'internal scratch']
  %s0 = inlined_call_operand.vmem [shape: f32[128,128], index: 0, kind: input, shape index: {}]
  %s1 = inlined_call_operand.vmem [shape: f32[8,128], index: 1, kind: input, shape index: {}]
  %s2 = inlined_call_operand.vmem [shape: f32[8,128], index: 2, kind: input, shape index: {}]
  %s3 = inlined_call_operand.vmem [shape: f32[128,128], index: 3, kind: input, shape index: {}]
  %s4 = inlined_call_operand.vmem [shape: f32[8,128], index: 4, kind: input, shape index: {}]
  %s5 = inlined_call_operand.vmem [shape: f32[8,128], index: 5, kind: input, shape index: {}]
  %s6 = inlined_call_operand.vmem [shape: f32[128,128], index: 6, kind: output, shape index: {}]
  %s7 = sld [smem:[#allocation0]]
  $region57: #{basic_block_forward.5} parent=0
    _
  %s9 = ssub.s32 1, %s7
  %s10 = scalar_select 0, %s9, %s7
  loop: start=0, step=1, limit=4
  $region2: #{basic_block_forward.5} parent=0 // loop_pre_header
    _
  $region3: #{basic_block_forward.5} parent=0 // loop_header
    %s12 = sphi 0, %s16
    %p13 = scmp.ge.s32.totalorder %s12, 4
    %s22 = sphi 0, %s24
    %s25 = sphi 0, %s22
    %s26 = sphi 0, %s25
    %s42 = sphi 0, %s26
    %s46 = sphi 0, %s46
    %s48 = sphi 0, %s46
    %s49 = sphi 0, %s48
    %s63 = sphi 0, %s49
    %s67 = sphi 0, %s67
    %s69 = sphi 0, %s67
    %s70 = sphi 0, %s69
    %s84 = sphi 0, %s70
    %s90 = sphi 0, %s92
    %s93 = sphi 0, %s90
    %s94 = sphi 0, %s93
    %s110 = sphi 0, %s94
    %s114 = sphi 0, %s114
    %s116 = sphi 0, %s114
    %s117 = sphi 0, %s116
    %s131 = sphi 0, %s117
    %s135 = sphi 0, %s135
    %s137 = sphi 0, %s135
    %s138 = sphi 0, %s137
    %s152 = sphi 0, %s138
    %s158 = sphi 0, %s160
    %s161 = sphi 0, %s158
    %s162 = sphi 0, %s161
    %s178 = sphi 0, %s162
  $region4: #{basic_block_forward.5} parent=0 // loop_header_branch
    %15 = sbr.rel (%p13) target = $region8
  $region5: #{basic_block_forward.5} parent=0 // loop_body
    %s17 = ssub.s32 %s12, 1
    %s18 = ssub.s32 %s12, 2
    %s19 = sadd.s32 %s12, 1
    %s20 = ssub.s32 %s12, %s19
    %p21 = scmp.eq.s32.totalorder %s20, 0
    %s23 = sadd.s32 %s22, 1
    %s24 = scalar_select %p21, %s22, %s23
    %p27 = pneg %p21
    %p28 = scmp.eq.s32.totalorder %s12, 1
    %p29 = por %p27, %p28
    %p30 = scmp.ne.s32.totalorder %s22, %s25
    %p31 = scmp.eq.s32.totalorder %s12, 0
    %p32 = por %p30, %p31
    %p33 = scmp.ne.s32.totalorder %s22, %s25
    %p34 = scmp.eq.s32.totalorder %s17, 1
    %p35 = por %p33, %p34
    %p36 = scmp.ne.s32.totalorder %s25, %s26
    %p37 = scmp.eq.s32.totalorder %s17, 0
    %p38 = por %p36, %p37
    %p39 = scmp.ne.s32.totalorder %s25, %s26
    %p40 = scmp.eq.s32.totalorder %s18, 1
    %p41 = por %p39, %p40
    %p43 = scmp.ne.s32.totalorder %s26, %s42
    %p44 = scmp.eq.s32.totalorder %s18, 0
    %p45 = por %p43, %p44
    %s47 = sadd.s32 %s46, 1
    %p50 = scmp.eq.s32.totalorder %s12, 1
    %p51 = scmp.ne.s32.totalorder %s46, %s48
    %p52 = scmp.eq.s32.totalorder %s12, 0
    %p53 = por %p51, %p52
    %p54 = scmp.ne.s32.totalorder %s46, %s48
    %p55 = scmp.eq.s32.totalorder %s17, 1
    %p56 = por %p54, %p55
    %p57 = scmp.ne.s32.totalorder %s48, %s49
    %p58 = scmp.eq.s32.totalorder %s17, 0
    %p59 = por %p57, %p58
    %p60 = scmp.ne.s32.totalorder %s48, %s49
    %p61 = scmp.eq.s32.totalorder %s18, 1
    %p62 = por %p60, %p61
    %p64 = scmp.ne.s32.totalorder %s49, %s63
    %p65 = scmp.eq.s32.totalorder %s18, 0
    %p66 = por %p64, %p65
    %s68 = sadd.s32 %s67, 1
    %p71 = scmp.eq.s32.totalorder %s12, 1
    %p72 = scmp.ne.s32.totalorder %s67, %s69
    %p73 = scmp.eq.s32.totalorder %s12, 0
    %p74 = por %p72, %p73
    %p75 = scmp.ne.s32.totalorder %s67, %s69
    %p76 = scmp.eq.s32.totalorder %s17, 1
    %p77 = por %p75, %p76
    %p78 = scmp.ne.s32.totalorder %s69, %s70
    %p79 = scmp.eq.s32.totalorder %s17, 0
    %p80 = por %p78, %p79
    %p81 = scmp.ne.s32.totalorder %s69, %s70
    %p82 = scmp.eq.s32.totalorder %s18, 1
    %p83 = por %p81, %p82
    %p85 = scmp.ne.s32.totalorder %s70, %s84
    %p86 = scmp.eq.s32.totalorder %s18, 0
    %p87 = por %p85, %p86
    %s88 = ssub.s32 %s12, %s19
    %p89 = scmp.eq.s32.totalorder %s88, 0
    %s91 = sadd.s32 %s90, 1
    %s92 = scalar_select %p89, %s90, %s91
    %p95 = pneg %p89
    %p96 = scmp.eq.s32.totalorder %s12, 1
    %p97 = por %p95, %p96
    %p98 = scmp.ne.s32.totalorder %s90, %s93
    %p99 = scmp.eq.s32.totalorder %s12, 0
    %p100 = por %p98, %p99
    %p101 = scmp.ne.s32.totalorder %s90, %s93
    %p102 = scmp.eq.s32.totalorder %s17, 1
    %p103 = por %p101, %p102
    %p104 = scmp.ne.s32.totalorder %s93, %s94
    %p105 = scmp.eq.s32.totalorder %s17, 0
    %p106 = por %p104, %p105
    %p107 = scmp.ne.s32.totalorder %s93, %s94
    %p108 = scmp.eq.s32.totalorder %s18, 1
    %p109 = por %p107, %p108
    %p111 = scmp.ne.s32.totalorder %s94, %s110
    %p112 = scmp.eq.s32.totalorder %s18, 0
    %p113 = por %p111, %p112
    %s115 = sadd.s32 %s114, 1
    %p118 = scmp.eq.s32.totalorder %s12, 1
    %p119 = scmp.ne.s32.totalorder %s114, %s116
    %p120 = scmp.eq.s32.totalorder %s12, 0
    %p121 = por %p119, %p120
    %p122 = scmp.ne.s32.totalorder %s114, %s116
    %p123 = scmp.eq.s32.totalorder %s17, 1
    %p124 = por %p122, %p123
    %p125 = scmp.ne.s32.totalorder %s116, %s117
    %p126 = scmp.eq.s32.totalorder %s17, 0
    %p127 = por %p125, %p126
    %p128 = scmp.ne.s32.totalorder %s116, %s117
    %p129 = scmp.eq.s32.totalorder %s18, 1
    %p130 = por %p128, %p129
    %p132 = scmp.ne.s32.totalorder %s117, %s131
    %p133 = scmp.eq.s32.totalorder %s18, 0
    %p134 = por %p132, %p133
    %s136 = sadd.s32 %s135, 1
    %p139 = scmp.eq.s32.totalorder %s12, 1
    %p140 = scmp.ne.s32.totalorder %s135, %s137
    %p141 = scmp.eq.s32.totalorder %s12, 0
    %p142 = por %p140, %p141
    %p143 = scmp.ne.s32.totalorder %s135, %s137
    %p144 = scmp.eq.s32.totalorder %s17, 1
    %p145 = por %p143, %p144
    %p146 = scmp.ne.s32.totalorder %s137, %s138
    %p147 = scmp.eq.s32.totalorder %s17, 0
    %p148 = por %p146, %p147
    %p149 = scmp.ne.s32.totalorder %s137, %s138
    %p150 = scmp.eq.s32.totalorder %s18, 1
    %p151 = por %p149, %p150
    %p153 = scmp.ne.s32.totalorder %s138, %s152
    %p154 = scmp.eq.s32.totalorder %s18, 0
    %p155 = por %p153, %p154
    %s156 = ssub.s32 %s12, %s19
    %p157 = scmp.eq.s32.totalorder %s156, 0
    %s159 = sadd.s32 %s158, 1
    %s160 = scalar_select %p157, %s158, %s159
    %p163 = pneg %p157
    %p164 = scmp.eq.s32.totalorder %s12, 1
    %p165 = por %p163, %p164
    %p166 = scmp.ne.s32.totalorder %s158, %s161
    %p167 = scmp.eq.s32.totalorder %s12, 0
    %p168 = por %p166, %p167
    %p169 = scmp.ne.s32.totalorder %s158, %s161
    %p170 = scmp.eq.s32.totalorder %s17, 1
    %p171 = por %p169, %p170
    %p172 = scmp.ne.s32.totalorder %s161, %s162
    %p173 = scmp.eq.s32.totalorder %s17, 0
    %p174 = por %p172, %p173
    %p175 = scmp.ne.s32.totalorder %s161, %s162
    %p176 = scmp.eq.s32.totalorder %s18, 1
    %p177 = por %p175, %p176
    %p179 = scmp.ne.s32.totalorder %s162, %s178
    %p180 = scmp.eq.s32.totalorder %s18, 0
    %p181 = por %p179, %p180
    %p182 = scmp.le.s32.totalorder 1, %s12
    %p183 = scmp.lt.s32.totalorder %s12, 3
    %p184 = pnand %p182, %p183
    %p185 = pneg %p184
    // Predicated region
    $region9: #{basic_block_forward.5} parent=5 // pred_check
      _
    $region10: #{basic_block_forward.5} parent=5 // pred_check_branch
      %187 = sbr.rel (%p184) target = $region12
    $region11: #{basic_block_forward.5} parent=5 // pred_region
      %s188 = ssub.s32 %s12, 1
      // Predicated region
      $region13: #{basic_block_forward.5} parent=11 // pred_check
        %p189 = pneg %p59
      $region14: #{basic_block_forward.5} parent=11 // pred_check_branch
        %191 = sbr.rel (%p189) target = $region16
      $region15: #{basic_block_forward.5} parent=11 // pred_region
        _
      $region16: #{basic_block_forward.5} parent=11 // pred_fallthru
        _
      // Predicated region
      $region17: #{basic_block_forward.5} parent=11 // pred_check
        %p192 = pneg %p80
      $region18: #{basic_block_forward.5} parent=11 // pred_check_branch
        %194 = sbr.rel (%p192) target = $region20
      $region19: #{basic_block_forward.5} parent=11 // pred_region
        _
      $region20: #{basic_block_forward.5} parent=11 // pred_fallthru
        _
      // Predicated region
      $region21: #{basic_block_forward.5} parent=11 // pred_check
        %p195 = pneg %p127
      $region22: #{basic_block_forward.5} parent=11 // pred_check_branch
        %197 = sbr.rel (%p195) target = $region24
      $region23: #{basic_block_forward.5} parent=11 // pred_region
        _
      $region24: #{basic_block_forward.5} parent=11 // pred_fallthru
        _
      // Predicated region
      $region25: #{basic_block_forward.5} parent=11 // pred_check
        %p198 = pneg %p148
      $region26: #{basic_block_forward.5} parent=11 // pred_check_branch
        %200 = sbr.rel (%p198) target = $region28
      $region27: #{basic_block_forward.5} parent=11 // pred_region
        _
      $region28: #{basic_block_forward.5} parent=11 // pred_fallthru
        _
    $region12: #{basic_block_forward.5} parent=5 // pred_fallthru
      _
    %p201 = scmp.lt.s32.totalorder %s12, 2
    // Predicated region
    $region29: #{basic_block_forward.5} parent=5 // pred_check
      %p202 = pneg %p201
    $region30: #{basic_block_forward.5} parent=5 // pred_check_branch
      %204 = sbr.rel (%p202) target = $region32
    $region31: #{basic_block_forward.5} parent=5 // pred_region
      // Predicated region
      $region33: #{basic_block_forward.5} parent=31 // pred_check
        %p205 = pneg %p32
      $region34: #{basic_block_forward.5} parent=31 // pred_check_branch
        %207 = sbr.rel (%p205) target = $region36
      $region35: #{basic_block_forward.5} parent=31 // pred_region
        %s208 = smul.u32 8, %s12
        %p209 = scmp.lt.s32.totalorder %s208, 15
        %s210 = scalar_select %p209, %s208, 15
        %s211 = smul.addr %s210, 8
        %s212 = scalar_lea.vmem %s0, %s211
        %s213 = smul.u32 8, %s12
      $region36: #{basic_block_forward.5} parent=31 // pred_fallthru
        _
      // Predicated region
      $region37: #{basic_block_forward.5} parent=31 // pred_check
        %p214 = pneg %p100
      $region38: #{basic_block_forward.5} parent=31 // pred_check_branch
        %216 = sbr.rel (%p214) target = $region40
      $region39: #{basic_block_forward.5} parent=31 // pred_region
        %s217 = smul.u32 8, %s12
        %p218 = scmp.lt.s32.totalorder %s217, 15
        %s219 = scalar_select %p218, %s217, 15
        %s220 = smul.addr %s219, 8
        %s221 = scalar_lea.vmem %s3, %s220
        %s222 = smul.u32 8, %s12
      $region40: #{basic_block_forward.5} parent=31 // pred_fallthru
        _
    $region32: #{basic_block_forward.5} parent=5 // pred_fallthru
      _
    %p223 = scmp.le.s32.totalorder 1, %s12
    %p224 = scmp.lt.s32.totalorder %s12, 3
    %p225 = pnand %p223, %p224
    %p226 = pneg %p225
    // Predicated region
    $region41: #{basic_block_forward.5} parent=5 // pred_check
      _
    $region42: #{basic_block_forward.5} parent=5 // pred_check_branch
      %228 = sbr.rel (%p225) target = $region44
    $region43: #{basic_block_forward.5} parent=5 // pred_region
      %s229 = ssub.s32 %s12, 1
      %s230 = smul.u32 8, %s17
      %p231 = scmp.lt.s32.totalorder %s230, 15
      %s232 = scalar_select %p231, %s230, 15
      %s233 = smul.addr %s232, 8
      %s234 = scalar_lea.vmem %s0, %s233
      %p235 = pneg %p38
      %p236 = pneg %p35
      %p237 = pneg %p59
      %p238 = pneg %p56
      %p239 = pneg %p80
      %p240 = pneg %p77
      %s241 = smul.u32 8, %s17
      %p242 = scmp.lt.s32.totalorder %s241, 15
      %s243 = scalar_select %p242, %s241, 15
      %s244 = smul.addr %s243, 8
      %s245 = scalar_lea.vmem %s3, %s244
      %p246 = pneg %p106
      %p247 = pneg %p103
      %p248 = pneg %p127
      %p249 = pneg %p124
      %p250 = pneg %p148
      %p251 = pneg %p145
      %p252 = pneg %p174
      %p253 = pneg %p171
      %s254 = smul.u32 8, %s17
      %p255 = scmp.lt.s32.totalorder %s254, 15
      %s256 = scalar_select %p255, %s254, 15
      %s257 = smul.addr %s256, 8
      %s258 = scalar_lea.vmem %s6, %s257
      %s259 = smul.u32 8, %s17
      %p260 = scmp.lt.s32.totalorder %s259, 15
      %s261 = scalar_select %p260, %s259, 15
      %s262 = smul.addr %s261, 8
      %s263 = scalar_lea.vmem %s0, %s262
      %s264 = smul.u32 8, %s17
      %s265 = smul.u32 8, %s17
      %p266 = scmp.lt.s32.totalorder %s265, 15
      %s267 = scalar_select %p266, %s265, 15
      %s268 = smul.addr %s267, 8
      %s269 = scalar_lea.vmem %s3, %s268
      %s270 = smul.u32 8, %s17
      %s271 = smul.u32 8, %s17
      %p272 = scmp.lt.s32.totalorder %s271, 15
      %s273 = scalar_select %p272, %s271, 15
      %s274 = smul.addr %s273, 8
      %s275 = scalar_lea.vmem %s6, %s274
      %s276 = smul.u32 8, %s17
      %v277 = vld [vmem:[%s263] sm:$0xff]
      %v278 = vld [vmem:[%s263 + $0x8] sm:$0xff]
      %v279 = vld [vmem:[%s263 + $0x10] sm:$0xff]
      %v280 = vld [vmem:[%s263 + $0x18] sm:$0xff]
      %v281 = vld [vmem:[%s263 + $0x20] sm:$0xff]
      %v282 = vld [vmem:[%s263 + $0x28] sm:$0xff]
      %v283 = vld [vmem:[%s263 + $0x30] sm:$0xff]
      %v284 = vld [vmem:[%s263 + $0x38] sm:$0xff]
      %v285 = vld [vmem:[%s1] sm:$0x1]
      %v286 = vlaneseq
      %v287 = vshrl.u32 %v286, 7
      %v288 = vsub.s32 0, %v287
      %v289 = vrot.slane %v285, %v288
      %v290 = vmul.f32 %v277, %v289
      %v291 = vmul.f32 %v278, %v289
      %v292 = vmul.f32 %v279, %v289
      %v293 = vmul.f32 %v280, %v289
      %v294 = vmul.f32 %v281, %v289
      %v295 = vmul.f32 %v282, %v289
      %v296 = vmul.f32 %v283, %v289
      %v297 = vmul.f32 %v284, %v289
      %v298 = vld [vmem:[%s2] sm:$0x1]
      %v299 = vlaneseq
      %v300 = vshrl.u32 %v299, 7
      %v301 = vsub.s32 0, %v300
      %v302 = vrot.slane %v298, %v301
      %v303 = vadd.f32 %v290, %v302
      %v304 = vadd.f32 %v291, %v302
      %v305 = vadd.f32 %v292, %v302
      %v306 = vadd.f32 %v293, %v302
      %v307 = vadd.f32 %v294, %v302
      %v308 = vadd.f32 %v295, %v302
      %v309 = vadd.f32 %v296, %v302
      %v310 = vadd.f32 %v297, %v302
      %v311 = vld [vmem:[%s269] sm:$0xff]
      %v312 = vld [vmem:[%s269 + $0x8] sm:$0xff]
      %v313 = vld [vmem:[%s269 + $0x10] sm:$0xff]
      %v314 = vld [vmem:[%s269 + $0x18] sm:$0xff]
      %v315 = vld [vmem:[%s269 + $0x20] sm:$0xff]
      %v316 = vld [vmem:[%s269 + $0x28] sm:$0xff]
      %v317 = vld [vmem:[%s269 + $0x30] sm:$0xff]
      %v318 = vld [vmem:[%s269 + $0x38] sm:$0xff]
      %v319 = vld [vmem:[%s4] sm:$0x1]
      %v320 = vlaneseq
      %v321 = vshrl.u32 %v320, 7
      %v322 = vsub.s32 0, %v321
      %v323 = vrot.slane %v319, %v322
      %v324 = vmul.f32 %v311, %v323
      %v325 = vmul.f32 %v312, %v323
      %v326 = vmul.f32 %v313, %v323
      %v327 = vmul.f32 %v314, %v323
      %v328 = vmul.f32 %v315, %v323
      %v329 = vmul.f32 %v316, %v323
      %v330 = vmul.f32 %v317, %v323
      %v331 = vmul.f32 %v318, %v323
      %v332 = vld [vmem:[%s5] sm:$0x1]
      %v333 = vlaneseq
      %v334 = vshrl.u32 %v333, 7
      %v335 = vsub.s32 0, %v334
      %v336 = vrot.slane %v332, %v335
      %v337 = vadd.f32 %v324, %v336
      %v338 = vadd.f32 %v325, %v336
      %v339 = vadd.f32 %v326, %v336
      %v340 = vadd.f32 %v327, %v336
      %v341 = vadd.f32 %v328, %v336
      %v342 = vadd.f32 %v329, %v336
      %v343 = vadd.f32 %v330, %v336
      %v344 = vadd.f32 %v331, %v336
      %v345 = vadd.f32 %v303, %v337
      %v346 = vadd.f32 %v304, %v338
      %v347 = vadd.f32 %v305, %v339
      %v348 = vadd.f32 %v306, %v340
      %v349 = vadd.f32 %v307, %v341
      %v350 = vadd.f32 %v308, %v342
      %v351 = vadd.f32 %v309, %v343
      %v352 = vadd.f32 %v310, %v344
      %v353 = vmax.f32 %v345, 0.0
      %v354 = vmax.f32 %v346, 0.0
      %v355 = vmax.f32 %v347, 0.0
      %v356 = vmax.f32 %v348, 0.0
      %v357 = vmax.f32 %v349, 0.0
      %v358 = vmax.f32 %v350, 0.0
      %v359 = vmax.f32 %v351, 0.0
      %v360 = vmax.f32 %v352, 0.0
      %361 = vst [vmem:[%s275] sm:$0xff] %v353
      %362 = vst [vmem:[%s275 + $0x8] sm:$0xff] %v354
      %363 = vst [vmem:[%s275 + $0x10] sm:$0xff] %v355
      %364 = vst [vmem:[%s275 + $0x18] sm:$0xff] %v356
      %365 = vst [vmem:[%s275 + $0x20] sm:$0xff] %v357
      %366 = vst [vmem:[%s275 + $0x28] sm:$0xff] %v358
      %367 = vst [vmem:[%s275 + $0x30] sm:$0xff] %v359
      %368 = vst [vmem:[%s275 + $0x38] sm:$0xff] %v360
      %s369 = smul.u32 8, %s17
      %p370 = scmp.lt.s32.totalorder %s369, 15
      %s371 = scalar_select %p370, %s369, 15
      %s372 = smul.addr %s371, 8
      %s373 = scalar_lea.vmem %s6, %s372
      // Predicated region
      $region45: #{basic_block_forward.5} parent=43 // pred_check
        %p374 = pneg %p171
      $region46: #{basic_block_forward.5} parent=43 // pred_check_branch
        %376 = sbr.rel (%p374) target = $region48
      $region47: #{basic_block_forward.5} parent=43 // pred_region
        %s377 = smul.u32 8, %s17
      $region48: #{basic_block_forward.5} parent=43 // pred_fallthru
        _
    $region44: #{basic_block_forward.5} parent=5 // pred_fallthru
      _
    %p378 = scmp.le.s32.totalorder 2, %s12
    // Predicated region
    $region49: #{basic_block_forward.5} parent=5 // pred_check
      %p379 = pneg %p378
    $region50: #{basic_block_forward.5} parent=5 // pred_check_branch
      %381 = sbr.rel (%p379) target = $region52
    $region51: #{basic_block_forward.5} parent=5 // pred_region
      %s382 = ssub.s32 %s12, 2
      // Predicated region
      $region53: #{basic_block_forward.5} parent=51 // pred_check
        %p383 = pneg %p177
      $region54: #{basic_block_forward.5} parent=51 // pred_check_branch
        %385 = sbr.rel (%p383) target = $region56
      $region55: #{basic_block_forward.5} parent=51 // pred_region
        %s386 = smul.u32 8, %s18
        %p387 = scmp.lt.s32.totalorder %s386, 15
        %s388 = scalar_select %p387, %s386, 15
        %s389 = smul.addr %s388, 8
        %s390 = scalar_lea.vmem %s6, %s389
      $region56: #{basic_block_forward.5} parent=51 // pred_fallthru
        _
    $region52: #{basic_block_forward.5} parent=5 // pred_fallthru
      _
  $region6: #{basic_block_forward.5} parent=0 // loop_footer
    %s16 = sadd.s32 1, %s12
  $region7: #{basic_block_forward.5} parent=0 // loop_footer_branch
    %11 = sbr.rel target = $region3
  $region8: #{basic_block_forward.5} parent=0 // loop_exit
    _

// kernel: basic_block_forward.3
$region0: #{basic_block_forward.3}
  #allocation0 [shape = 'u32[]', space=smem, size = 0x4, offset = 0x4, fixed_abs, tag = 'smem constant byte address 0x4 - core index']
  #allocation1 [shape = 'u32[144,128]{1,0:T(1,128)}', space=vmem, size = 0x12000, scoped, tag = 'internal scratch']
  %s0 = inlined_call_operand.vmem [shape: f32[2,9,9,128], index: 0, kind: input, shape index: {}]
  %s1 = inlined_call_operand.vmem [shape: bf16[2,2,128,128], index: 1, kind: input, shape index: {}]
  %s2 = inlined_call_operand.vmem [shape: bf16[128,128], index: 2, kind: input, shape index: {}]
  %s3 = inlined_call_operand.vmem [shape: f32[2,8,8,128], index: 3, kind: output, shape index: {0}]
  %s4 = inlined_call_operand.vmem [shape: f32[2,8,128], index: 4, kind: output, shape index: {1}]
  %s5 = inlined_call_operand.vmem [shape: f32[2,8,128], index: 5, kind: output, shape index: {2}]
  %s6 = inlined_call_operand.vmem [shape: f32[2,8,8,128], index: 6, kind: output, shape index: {3}]
  %s7 = inlined_call_operand.vmem [shape: f32[2,8,128], index: 7, kind: output, shape index: {4}]
  %s8 = inlined_call_operand.vmem [shape: f32[2,8,128], index: 8, kind: output, shape index: {5}]
  %9 = xla_tuple %s3, %s4, %s5, %s6, %s7, %s8
  %s10 = sld [smem:[#allocation0]]
  $region85: #{basic_block_forward.3} parent=0
    _
  %s12 = ssub.s32 1, %s10
  %s13 = scalar_select 0, %s12, %s10
  loop: start=0, step=1, limit=4
  $region2: #{basic_block_forward.3} parent=0 // loop_pre_header
    _
  $region3: #{basic_block_forward.3} parent=0 // loop_header
    %s15 = sphi 0, %s19
    %p16 = scmp.ge.s32.totalorder %s15, 4
    %s25 = sphi 0, %s27
    %s28 = sphi 0, %s25
    %s29 = sphi 0, %s28
    %s45 = sphi 0, %s29
    %s49 = sphi 0, %s49
    %s51 = sphi 0, %s49
    %s52 = sphi 0, %s51
    %s66 = sphi 0, %s52
    %s70 = sphi 0, %s70
    %s72 = sphi 0, %s70
    %s73 = sphi 0, %s72
    %s87 = sphi 0, %s73
    %s93 = sphi 0, %s95
    %s96 = sphi 0, %s93
    %s97 = sphi 0, %s96
    %s113 = sphi 0, %s97
    %s119 = sphi 0, %s121
    %s122 = sphi 0, %s119
    %s123 = sphi 0, %s122
    %s139 = sphi 0, %s123
    %s145 = sphi 0, %s147
    %s148 = sphi 0, %s145
    %s149 = sphi 0, %s148
    %s165 = sphi 0, %s149
    %s171 = sphi 0, %s173
    %s174 = sphi 0, %s171
    %s175 = sphi 0, %s174
    %s191 = sphi 0, %s175
    %s197 = sphi 0, %s199
    %s200 = sphi 0, %s197
    %s201 = sphi 0, %s200
    %s217 = sphi 0, %s201
    %s223 = sphi 0, %s225
    %s226 = sphi 0, %s223
    %s227 = sphi 0, %s226
    %s243 = sphi 0, %s227
  $region4: #{basic_block_forward.3} parent=0 // loop_header_branch
    %18 = sbr.rel (%p16) target = $region8
  $region5: #{basic_block_forward.3} parent=0 // loop_body
    %s20 = ssub.s32 %s15, 1
    %s21 = ssub.s32 %s15, 2
    %s22 = sadd.s32 %s15, 1
    %s23 = ssub.s32 %s15, %s22
    %p24 = scmp.eq.s32.totalorder %s23, 0
    %s26 = sadd.s32 %s25, 1
    %s27 = scalar_select %p24, %s25, %s26
    %p30 = pneg %p24
    %p31 = scmp.eq.s32.totalorder %s15, 1
    %p32 = por %p30, %p31
    %p33 = scmp.ne.s32.totalorder %s25, %s28
    %p34 = scmp.eq.s32.totalorder %s15, 0
    %p35 = por %p33, %p34
    %p36 = scmp.ne.s32.totalorder %s25, %s28
    %p37 = scmp.eq.s32.totalorder %s20, 1
    %p38 = por %p36, %p37
    %p39 = scmp.ne.s32.totalorder %s28, %s29
    %p40 = scmp.eq.s32.totalorder %s20, 0
    %p41 = por %p39, %p40
    %p42 = scmp.ne.s32.totalorder %s28, %s29
    %p43 = scmp.eq.s32.totalorder %s21, 1
    %p44 = por %p42, %p43
    %p46 = scmp.ne.s32.totalorder %s29, %s45
    %p47 = scmp.eq.s32.totalorder %s21, 0
    %p48 = por %p46, %p47
    %s50 = sadd.s32 %s49, 1
    %p53 = scmp.eq.s32.totalorder %s15, 1
    %p54 = scmp.ne.s32.totalorder %s49, %s51
    %p55 = scmp.eq.s32.totalorder %s15, 0
    %p56 = por %p54, %p55
    %p57 = scmp.ne.s32.totalorder %s49, %s51
    %p58 = scmp.eq.s32.totalorder %s20, 1
    %p59 = por %p57, %p58
    %p60 = scmp.ne.s32.totalorder %s51, %s52
    %p61 = scmp.eq.s32.totalorder %s20, 0
    %p62 = por %p60, %p61
    %p63 = scmp.ne.s32.totalorder %s51, %s52
    %p64 = scmp.eq.s32.totalorder %s21, 1
    %p65 = por %p63, %p64
    %p67 = scmp.ne.s32.totalorder %s52, %s66
    %p68 = scmp.eq.s32.totalorder %s21, 0
    %p69 = por %p67, %p68
    %s71 = sadd.s32 %s70, 1
    %p74 = scmp.eq.s32.totalorder %s15, 1
    %p75 = scmp.ne.s32.totalorder %s70, %s72
    %p76 = scmp.eq.s32.totalorder %s15, 0
    %p77 = por %p75, %p76
    %p78 = scmp.ne.s32.totalorder %s70, %s72
    %p79 = scmp.eq.s32.totalorder %s20, 1
    %p80 = por %p78, %p79
    %p81 = scmp.ne.s32.totalorder %s72, %s73
    %p82 = scmp.eq.s32.totalorder %s20, 0
    %p83 = por %p81, %p82
    %p84 = scmp.ne.s32.totalorder %s72, %s73
    %p85 = scmp.eq.s32.totalorder %s21, 1
    %p86 = por %p84, %p85
    %p88 = scmp.ne.s32.totalorder %s73, %s87
    %p89 = scmp.eq.s32.totalorder %s21, 0
    %p90 = por %p88, %p89
    %s91 = ssub.s32 %s15, %s22
    %p92 = scmp.eq.s32.totalorder %s91, 0
    %s94 = sadd.s32 %s93, 1
    %s95 = scalar_select %p92, %s93, %s94
    %p98 = pneg %p92
    %p99 = scmp.eq.s32.totalorder %s15, 1
    %p100 = por %p98, %p99
    %p101 = scmp.ne.s32.totalorder %s93, %s96
    %p102 = scmp.eq.s32.totalorder %s15, 0
    %p103 = por %p101, %p102
    %p104 = scmp.ne.s32.totalorder %s93, %s96
    %p105 = scmp.eq.s32.totalorder %s20, 1
    %p106 = por %p104, %p105
    %p107 = scmp.ne.s32.totalorder %s96, %s97
    %p108 = scmp.eq.s32.totalorder %s20, 0
    %p109 = por %p107, %p108
    %p110 = scmp.ne.s32.totalorder %s96, %s97
    %p111 = scmp.eq.s32.totalorder %s21, 1
    %p112 = por %p110, %p111
    %p114 = scmp.ne.s32.totalorder %s97, %s113
    %p115 = scmp.eq.s32.totalorder %s21, 0
    %p116 = por %p114, %p115
    %s117 = ssub.s32 %s15, %s22
    %p118 = scmp.eq.s32.totalorder %s117, 0
    %s120 = sadd.s32 %s119, 1
    %s121 = scalar_select %p118, %s119, %s120
    %p124 = pneg %p118
    %p125 = scmp.eq.s32.totalorder %s15, 1
    %p126 = por %p124, %p125
    %p127 = scmp.ne.s32.totalorder %s119, %s122
    %p128 = scmp.eq.s32.totalorder %s15, 0
    %p129 = por %p127, %p128
    %p130 = scmp.ne.s32.totalorder %s119, %s122
    %p131 = scmp.eq.s32.totalorder %s20, 1
    %p132 = por %p130, %p131
    %p133 = scmp.ne.s32.totalorder %s122, %s123
    %p134 = scmp.eq.s32.totalorder %s20, 0
    %p135 = por %p133, %p134
    %p136 = scmp.ne.s32.totalorder %s122, %s123
    %p137 = scmp.eq.s32.totalorder %s21, 1
    %p138 = por %p136, %p137
    %p140 = scmp.ne.s32.totalorder %s123, %s139
    %p141 = scmp.eq.s32.totalorder %s21, 0
    %p142 = por %p140, %p141
    %s143 = ssub.s32 %s15, %s22
    %p144 = scmp.eq.s32.totalorder %s143, 0
    %s146 = sadd.s32 %s145, 1
    %s147 = scalar_select %p144, %s145, %s146
    %p150 = pneg %p144
    %p151 = scmp.eq.s32.totalorder %s15, 1
    %p152 = por %p150, %p151
    %p153 = scmp.ne.s32.totalorder %s145, %s148
    %p154 = scmp.eq.s32.totalorder %s15, 0
    %p155 = por %p153, %p154
    %p156 = scmp.ne.s32.totalorder %s145, %s148
    %p157 = scmp.eq.s32.totalorder %s20, 1
    %p158 = por %p156, %p157
    %p159 = scmp.ne.s32.totalorder %s148, %s149
    %p160 = scmp.eq.s32.totalorder %s20, 0
    %p161 = por %p159, %p160
    %p162 = scmp.ne.s32.totalorder %s148, %s149
    %p163 = scmp.eq.s32.totalorder %s21, 1
    %p164 = por %p162, %p163
    %p166 = scmp.ne.s32.totalorder %s149, %s165
    %p167 = scmp.eq.s32.totalorder %s21, 0
    %p168 = por %p166, %p167
    %s169 = ssub.s32 %s15, %s22
    %p170 = scmp.eq.s32.totalorder %s169, 0
    %s172 = sadd.s32 %s171, 1
    %s173 = scalar_select %p170, %s171, %s172
    %p176 = pneg %p170
    %p177 = scmp.eq.s32.totalorder %s15, 1
    %p178 = por %p176, %p177
    %p179 = scmp.ne.s32.totalorder %s171, %s174
    %p180 = scmp.eq.s32.totalorder %s15, 0
    %p181 = por %p179, %p180
    %p182 = scmp.ne.s32.totalorder %s171, %s174
    %p183 = scmp.eq.s32.totalorder %s20, 1
    %p184 = por %p182, %p183
    %p185 = scmp.ne.s32.totalorder %s174, %s175
    %p186 = scmp.eq.s32.totalorder %s20, 0
    %p187 = por %p185, %p186
    %p188 = scmp.ne.s32.totalorder %s174, %s175
    %p189 = scmp.eq.s32.totalorder %s21, 1
    %p190 = por %p188, %p189
    %p192 = scmp.ne.s32.totalorder %s175, %s191
    %p193 = scmp.eq.s32.totalorder %s21, 0
    %p194 = por %p192, %p193
    %s195 = ssub.s32 %s15, %s22
    %p196 = scmp.eq.s32.totalorder %s195, 0
    %s198 = sadd.s32 %s197, 1
    %s199 = scalar_select %p196, %s197, %s198
    %p202 = pneg %p196
    %p203 = scmp.eq.s32.totalorder %s15, 1
    %p204 = por %p202, %p203
    %p205 = scmp.ne.s32.totalorder %s197, %s200
    %p206 = scmp.eq.s32.totalorder %s15, 0
    %p207 = por %p205, %p206
    %p208 = scmp.ne.s32.totalorder %s197, %s200
    %p209 = scmp.eq.s32.totalorder %s20, 1
    %p210 = por %p208, %p209
    %p211 = scmp.ne.s32.totalorder %s200, %s201
    %p212 = scmp.eq.s32.totalorder %s20, 0
    %p213 = por %p211, %p212
    %p214 = scmp.ne.s32.totalorder %s200, %s201
    %p215 = scmp.eq.s32.totalorder %s21, 1
    %p216 = por %p214, %p215
    %p218 = scmp.ne.s32.totalorder %s201, %s217
    %p219 = scmp.eq.s32.totalorder %s21, 0
    %p220 = por %p218, %p219
    %s221 = ssub.s32 %s15, %s22
    %p222 = scmp.eq.s32.totalorder %s221, 0
    %s224 = sadd.s32 %s223, 1
    %s225 = scalar_select %p222, %s223, %s224
    %p228 = pneg %p222
    %p229 = scmp.eq.s32.totalorder %s15, 1
    %p230 = por %p228, %p229
    %p231 = scmp.ne.s32.totalorder %s223, %s226
    %p232 = scmp.eq.s32.totalorder %s15, 0
    %p233 = por %p231, %p232
    %p234 = scmp.ne.s32.totalorder %s223, %s226
    %p235 = scmp.eq.s32.totalorder %s20, 1
    %p236 = por %p234, %p235
    %p237 = scmp.ne.s32.totalorder %s226, %s227
    %p238 = scmp.eq.s32.totalorder %s20, 0
    %p239 = por %p237, %p238
    %p240 = scmp.ne.s32.totalorder %s226, %s227
    %p241 = scmp.eq.s32.totalorder %s21, 1
    %p242 = por %p240, %p241
    %p244 = scmp.ne.s32.totalorder %s227, %s243
    %p245 = scmp.eq.s32.totalorder %s21, 0
    %p246 = por %p244, %p245
    %p247 = scmp.le.s32.totalorder 1, %s15
    %p248 = scmp.lt.s32.totalorder %s15, 3
    %p249 = pnand %p247, %p248
    %p250 = pneg %p249
    // Predicated region
    $region9: #{basic_block_forward.3} parent=5 // pred_check
      _
    $region10: #{basic_block_forward.3} parent=5 // pred_check_branch
      %252 = sbr.rel (%p249) target = $region12
    $region11: #{basic_block_forward.3} parent=5 // pred_region
      %s253 = ssub.s32 %s15, 1
      // Predicated region
      $region13: #{basic_block_forward.3} parent=11 // pred_check
        %p254 = pneg %p62
      $region14: #{basic_block_forward.3} parent=11 // pred_check_branch
        %256 = sbr.rel (%p254) target = $region16
      $region15: #{basic_block_forward.3} parent=11 // pred_region
        _
      $region16: #{basic_block_forward.3} parent=11 // pred_fallthru
        _
      // Predicated region
      $region17: #{basic_block_forward.3} parent=11 // pred_check
        %p257 = pneg %p83
      $region18: #{basic_block_forward.3} parent=11 // pred_check_branch
        %259 = sbr.rel (%p257) target = $region20
      $region19: #{basic_block_forward.3} parent=11 // pred_region
        _
      $region20: #{basic_block_forward.3} parent=11 // pred_fallthru
        _
    $region12: #{basic_block_forward.3} parent=5 // pred_fallthru
      _
    %p260 = scmp.lt.s32.totalorder %s15, 2
    // Predicated region
    $region21: #{basic_block_forward.3} parent=5 // pred_check
      %p261 = pneg %p260
    $region22: #{basic_block_forward.3} parent=5 // pred_check_branch
      %263 = sbr.rel (%p261) target = $region24
    $region23: #{basic_block_forward.3} parent=5 // pred_region
      // Predicated region
      $region25: #{basic_block_forward.3} parent=23 // pred_check
        %p264 = pneg %p35
      $region26: #{basic_block_forward.3} parent=23 // pred_check_branch
        %266 = sbr.rel (%p264) target = $region28
      $region27: #{basic_block_forward.3} parent=23 // pred_region
        %p267 = scmp.lt.s32.totalorder %s15, 1
        %s268 = scalar_select %p267, %s15, 1
        %s269 = smul.addr %s268, 18
        %s270 = smul.addr %s269, 8
        %s271 = scalar_lea.vmem %s0, %s270
      $region28: #{basic_block_forward.3} parent=23 // pred_fallthru
        _
    $region24: #{basic_block_forward.3} parent=5 // pred_fallthru
      _
    %p272 = scmp.le.s32.totalorder 1, %s15
    %p273 = scmp.lt.s32.totalorder %s15, 3
    %p274 = pnand %p272, %p273
    %p275 = pneg %p274
    // Predicated region
    $region29: #{basic_block_forward.3} parent=5 // pred_check
      _
    $region30: #{basic_block_forward.3} parent=5 // pred_check_branch
      %277 = sbr.rel (%p274) target = $region32
    $region31: #{basic_block_forward.3} parent=5 // pred_region
      %s278 = ssub.s32 %s15, 1
      %p279 = scmp.lt.s32.totalorder %s20, 1
      %s280 = scalar_select %p279, %s20, 1
      %s281 = smul.addr %s280, 18
      %s282 = smul.addr %s281, 8
      %s283 = scalar_lea.vmem %s0, %s282
      %p284 = pneg %p41
      %p285 = pneg %p38
      %p286 = pneg %p62
      %p287 = pneg %p59
      %p288 = pneg %p83
      %p289 = pneg %p80
      %p290 = pneg %p109
      %p291 = pneg %p106
      %p292 = scmp.lt.s32.totalorder %s20, 1
      %s293 = scalar_select %p292, %s20, 1
      %s294 = smul.addr %s293, 8
      %s295 = smul.addr %s294, 8
      %s296 = scalar_lea.vmem %s3, %s295
      %p297 = pneg %p135
      %p298 = pneg %p132
      %p299 = scmp.lt.s32.totalorder %s20, 1
      %s300 = scalar_select %p299, %s20, 1
      %s301 = smul.addr %s300, 8
      %s302 = scalar_lea.vmem %s4, %s301
      %p303 = pneg %p161
      %p304 = pneg %p158
      %p305 = scmp.lt.s32.totalorder %s20, 1
      %s306 = scalar_select %p305, %s20, 1
      %s307 = smul.addr %s306, 8
      %s308 = scalar_lea.vmem %s5, %s307
      %p309 = pneg %p187
      %p310 = pneg %p184
      %p311 = scmp.lt.s32.totalorder %s20, 1
      %s312 = scalar_select %p311, %s20, 1
      %s313 = smul.addr %s312, 8
      %s314 = smul.addr %s313, 8
      %s315 = scalar_lea.vmem %s6, %s314
      %p316 = pneg %p213
      %p317 = pneg %p210
      %p318 = scmp.lt.s32.totalorder %s20, 1
      %s319 = scalar_select %p318, %s20, 1
      %s320 = smul.addr %s319, 8
      %s321 = scalar_lea.vmem %s7, %s320
      %p322 = pneg %p239
      %p323 = pneg %p236
      %p324 = scmp.lt.s32.totalorder %s20, 1
      %s325 = scalar_select %p324, %s20, 1
      %s326 = smul.addr %s325, 8
      %s327 = scalar_lea.vmem %s8, %s326
      %p328 = scmp.lt.s32.totalorder %s20, 1
      %s329 = scalar_select %p328, %s20, 1
      %s330 = smul.addr %s329, 18
      %s331 = smul.addr %s330, 8
      %s332 = scalar_lea.vmem %s0, %s331
      %p333 = scmp.lt.s32.totalorder %s20, 1
      %s334 = scalar_select %p333, %s20, 1
      %s335 = smul.addr %s334, 8
      %s336 = smul.addr %s335, 8
      %s337 = scalar_lea.vmem %s3, %s336
      %p338 = scmp.lt.s32.totalorder %s20, 1
      %s339 = scalar_select %p338, %s20, 1
      %s340 = smul.addr %s339, 8
      %s341 = scalar_lea.vmem %s4, %s340
      %p342 = scmp.lt.s32.totalorder %s20, 1
      %s343 = scalar_select %p342, %s20, 1
      %s344 = smul.addr %s343, 8
      %s345 = scalar_lea.vmem %s5, %s344
      %p346 = scmp.lt.s32.totalorder %s20, 1
      %s347 = scalar_select %p346, %s20, 1
      %s348 = smul.addr %s347, 8
      %s349 = smul.addr %s348, 8
      %s350 = scalar_lea.vmem %s6, %s349
      %p351 = scmp.lt.s32.totalorder %s20, 1
      %s352 = scalar_select %p351, %s20, 1
      %s353 = smul.addr %s352, 8
      %s354 = scalar_lea.vmem %s7, %s353
      %p355 = scmp.lt.s32.totalorder %s20, 1
      %s356 = scalar_select %p355, %s20, 1
      %s357 = smul.addr %s356, 8
      %s358 = scalar_lea.vmem %s8, %s357
      %v360 = vld [vmem:[%s332] sm:$0xff]
      %v361 = vld [vmem:[%s332 + $0x10] sm:$0xff]
      %v362 = vld [vmem:[%s332 + $0x20] sm:$0xff]
      %v363 = vld [vmem:[%s332 + $0x30] sm:$0xff]
      %v364 = vld [vmem:[%s332 + $0x40] sm:$0xff]
      %v365 = vld [vmem:[%s332 + $0x50] sm:$0xff]
      %v366 = vld [vmem:[%s332 + $0x60] sm:$0xff]
      %v367 = vld [vmem:[%s332 + $0x70] sm:$0xff]
      %v368 = vpack.c.bf16 %v361, %v360
      %v369 = vpack.c.bf16 %v363, %v362
      %v370 = vpack.c.bf16 %v365, %v364
      %v371 = vpack.c.bf16 %v367, %v366
      %v372 = vld [vmem:[%s1] sm:$0xf]
      %v373 = vld [vmem:[%s1 + $0x4] sm:$0xf]
      %v374 = vld [vmem:[%s1 + $0x8] sm:$0xf]
      %v375 = vld [vmem:[%s1 + $0xc] sm:$0xf]
      %v376 = vld [vmem:[%s1 + $0x10] sm:$0xf]
      %v377 = vld [vmem:[%s1 + $0x14] sm:$0xf]
      %v378 = vld [vmem:[%s1 + $0x18] sm:$0xf]
      %v379 = vld [vmem:[%s1 + $0x1c] sm:$0xf]
      %v380 = vld [vmem:[%s1 + $0x20] sm:$0xf]
      %v381 = vld [vmem:[%s1 + $0x24] sm:$0xf]
      %v382 = vld [vmem:[%s1 + $0x28] sm:$0xf]
      %v383 = vld [vmem:[%s1 + $0x2c] sm:$0xf]
      %v384 = vld [vmem:[%s1 + $0x30] sm:$0xf]
      %v385 = vld [vmem:[%s1 + $0x34] sm:$0xf]
      %v386 = vld [vmem:[%s1 + $0x38] sm:$0xf]
      %v387 = vld [vmem:[%s1 + $0x3c] sm:$0xf]
      %v388 = vld [vmem:[%s332 + $0x1] sm:$0xff]
      %v389 = vld [vmem:[%s332 + $0x11] sm:$0xff]
      %v390 = vld [vmem:[%s332 + $0x21] sm:$0xff]
      %v391 = vld [vmem:[%s332 + $0x31] sm:$0xff]
      %v392 = vld [vmem:[%s332 + $0x41] sm:$0xff]
      %v393 = vld [vmem:[%s332 + $0x51] sm:$0xff]
      %v394 = vld [vmem:[%s332 + $0x61] sm:$0xff]
      %v395 = vld [vmem:[%s332 + $0x71] sm:$0xff]
      %v396 = vpack.c.bf16 %v389, %v388
      %v397 = vpack.c.bf16 %v391, %v390
      %v398 = vpack.c.bf16 %v393, %v392
      %v399 = vpack.c.bf16 %v395, %v394
      %s400 = scalar_lea.vmem %s1, 64
      %v401 = vld [vmem:[%s400] sm:$0xf]
      %v402 = vld [vmem:[%s400 + $0x4] sm:$0xf]
      %v403 = vld [vmem:[%s400 + $0x8] sm:$0xf]
      %v404 = vld [vmem:[%s400 + $0xc] sm:$0xf]
      %v405 = vld [vmem:[%s400 + $0x10] sm:$0xf]
      %v406 = vld [vmem:[%s400 + $0x14] sm:$0xf]
      %v407 = vld [vmem:[%s400 + $0x18] sm:$0xf]
      %v408 = vld [vmem:[%s400 + $0x1c] sm:$0xf]
      %v409 = vld [vmem:[%s400 + $0x20] sm:$0xf]
      %v410 = vld [vmem:[%s400 + $0x24] sm:$0xf]
      %v411 = vld [vmem:[%s400 + $0x28] sm:$0xf]
      %v412 = vld [vmem:[%s400 + $0x2c] sm:$0xf]
      %v413 = vld [vmem:[%s400 + $0x30] sm:$0xf]
      %v414 = vld [vmem:[%s400 + $0x34] sm:$0xf]
      %v415 = vld [vmem:[%s400 + $0x38] sm:$0xf]
      %v416 = vld [vmem:[%s400 + $0x3c] sm:$0xf]
      %v433 = vunpack.c.l.b16 %v401
      %v434 = vunpack.c.l.b16 %v402
      %v435 = vunpack.c.l.b16 %v403
      %v436 = vunpack.c.l.b16 %v404
      %v437 = vunpack.c.l.b16 %v405
      %v438 = vunpack.c.l.b16 %v406
      %v439 = vunpack.c.l.b16 %v407
      %v440 = vunpack.c.l.b16 %v408
      %v441 = vunpack.c.l.b16 %v409
      %v442 = vunpack.c.l.b16 %v410
      %v443 = vunpack.c.l.b16 %v411
      %v444 = vunpack.c.l.b16 %v412
      %v445 = vunpack.c.l.b16 %v413
      %v446 = vunpack.c.l.b16 %v414
      %v447 = vunpack.c.l.b16 %v415
      %v448 = vunpack.c.l.b16 %v416
      %v449 = vpack.c.b16 %v434, %v433
      %v450 = vpack.c.b16 %v436, %v435
      %v451 = vpack.c.b16 %v438, %v437
      %v452 = vpack.c.b16 %v440, %v439
      %v453 = vpack.c.b16 %v442, %v441
      %v454 = vpack.c.b16 %v444, %v443
      %v455 = vpack.c.b16 %v446, %v445
      %v456 = vpack.c.b16 %v448, %v447
      %465 = vmatprep.subr.bf16.mxu0 0
      %466 = vmatpush1.bf16.msra.mxu0 %v449
      %467 = vmatprep.subr.bf16.mxu0 0
      %468 = vmatpush1.bf16.msra.mxu0 %v450
      %469 = vmatprep.subr.bf16.mxu0 0
      %470 = vmatpush1.bf16.msra.mxu0 %v451
      %471 = vmatprep.subr.bf16.mxu0 0
      %472 = vmatpush1.bf16.msra.mxu0 %v452
      %473 = vmatprep.subr.bf16.mxu0 0
      %474 = vmatpush1.bf16.msra.mxu0 %v453
      %475 = vmatprep.subr.bf16.mxu0 0
      %476 = vmatpush1.bf16.msra.mxu0 %v454
      %477 = vmatprep.subr.bf16.mxu0 0
      %478 = vmatpush1.bf16.msra.mxu0 %v455
      %479 = vmatprep.subr.bf16.mxu0 0
      %480 = vmatpush1.bf16.msra.mxu0 %v456
      %481 = vmatprep.subr.bf16.mxu0 0
      %482 = vmatpush1.bf16.msra.mxu0 0
      %483 = vmatprep.subr.bf16.mxu0 0
      %484 = vmatpush1.bf16.msra.mxu0 0
      %485 = vmatprep.subr.bf16.mxu0 0
      %486 = vmatpush1.bf16.msra.mxu0 0
      %487 = vmatprep.subr.bf16.mxu0 0
      %488 = vmatpush1.bf16.msra.mxu0 0
      %489 = vmatprep.subr.bf16.mxu0 0
      %490 = vmatpush1.bf16.msra.mxu0 0
      %491 = vmatprep.subr.bf16.mxu0 0
      %492 = vmatpush1.bf16.msra.mxu0 0
      %493 = vmatprep.subr.bf16.mxu0 0
      %494 = vmatpush1.bf16.msra.mxu0 0
      %495 = vmatprep.subr.bf16.mxu0 0
      %496 = vmatpush1.bf16.msra.mxu0 0
      %497 = vmatprep.mubr.bf16.mxu0 0
      %498 = vmatmul.mubr.bf16.gmra.mrb[0].mxu0 %v396
      %v499 = vpop.f32.mrb[0].mxu0
      %v500 = vadd.f32 0.0, %v499
      %v501 = vpop.f32.mrb[0].mxu0
      %v502 = vpop.f32.mrb[0].mxu0
      %v503 = vadd.f32 0.0, %v502
      %v504 = vpop.f32.mrb[0].mxu0
      %505 = vmatprep.mubr.bf16.mxu0 0
      %506 = vmatmul.mubr.bf16.gmra.mrb[0].mxu0 %v397
      %v507 = vpop.f32.mrb[0].mxu0
      %v508 = vadd.f32 0.0, %v507
      %v509 = vpop.f32.mrb[0].mxu0
      %v510 = vpop.f32.mrb[0].mxu0
      %v511 = vadd.f32 0.0, %v510
      %v512 = vpop.f32.mrb[0].mxu0
      %513 = vmatprep.mubr.bf16.mxu0 0
      %514 = vmatmul.mubr.bf16.gmra.mrb[0].mxu0 %v398
      %v515 = vpop.f32.mrb[0].mxu0
      %v516 = vadd.f32 0.0, %v515
      %v517 = vpop.f32.mrb[0].mxu0
      %v518 = vpop.f32.mrb[0].mxu0
      %v519 = vadd.f32 0.0, %v518
      %v520 = vpop.f32.mrb[0].mxu0
      %521 = vmatprep.mubr.bf16.mxu0 0
      %522 = vmatmul.mubr.bf16.gmra.mrb[0].mxu0 %v399
      %v523 = vpop.f32.mrb[0].mxu0
      %v524 = vadd.f32 0.0, %v523
      %v525 = vpop.f32.mrb[0].mxu0
      %v526 = vpop.f32.mrb[0].mxu0
      %v527 = vadd.f32 0.0, %v526
      %v528 = vpop.f32.mrb[0].mxu0
      %529 = vdwg.mxu0
      %v546 = vunpack.c.l.b16 %v372
      %v547 = vunpack.c.l.b16 %v373
      %v548 = vunpack.c.l.b16 %v374
      %v549 = vunpack.c.l.b16 %v375
      %v550 = vunpack.c.l.b16 %v376
      %v551 = vunpack.c.l.b16 %v377
      %v552 = vunpack.c.l.b16 %v378
      %v553 = vunpack.c.l.b16 %v379
      %v554 = vunpack.c.l.b16 %v380
      %v555 = vunpack.c.l.b16 %v381
      %v556 = vunpack.c.l.b16 %v382
      %v557 = vunpack.c.l.b16 %v383
      %v558 = vunpack.c.l.b16 %v384
      %v559 = vunpack.c.l.b16 %v385
      %v560 = vunpack.c.l.b16 %v386
      %v561 = vunpack.c.l.b16 %v387
      %v562 = vpack.c.b16 %v547, %v546
      %v563 = vpack.c.b16 %v549, %v548
      %v564 = vpack.c.b16 %v551, %v550
      %v565 = vpack.c.b16 %v553, %v552
      %v566 = vpack.c.b16 %v555, %v554
      %v567 = vpack.c.b16 %v557, %v556
      %v568 = vpack.c.b16 %v559, %v558
      %v569 = vpack.c.b16 %v561, %v560
      %578 = vmatprep.subr.bf16.mxu0 0
      %579 = vmatpush1.bf16.msra.mxu0 %v562
      %580 = vmatprep.subr.bf16.mxu0 0
      %581 = vmatpush1.bf16.msra.mxu0 %v563
      %582 = vmatprep.subr.bf16.mxu0 0
      %583 = vmatpush1.bf16.msra.mxu0 %v564
      %584 = vmatprep.subr.bf16.mxu0 0
      %585 = vmatpush1.bf16.msra.mxu0 %v565
      %586 = vmatprep.subr.bf16.mxu0 0
      %587 = vmatpush1.bf16.msra.mxu0 %v566
      %588 = vmatprep.subr.bf16.mxu0 0
      %589 = vmatpush1.bf16.msra.mxu0 %v567
      %590 = vmatprep.subr.bf16.mxu0 0
      %591 = vmatpush1.bf16.msra.mxu0 %v568
      %592 = vmatprep.subr.bf16.mxu0 0
      %593 = vmatpush1.bf16.msra.mxu0 %v569
      %594 = vmatprep.subr.bf16.mxu0 0
      %595 = vmatpush1.bf16.msra.mxu0 0
      %596 = vmatprep.subr.bf16.mxu0 0
      %597 = vmatpush1.bf16.msra.mxu0 0
      %598 = vmatprep.subr.bf16.mxu0 0
      %599 = vmatpush1.bf16.msra.mxu0 0
      %600 = vmatprep.subr.bf16.mxu0 0
      %601 = vmatpush1.bf16.msra.mxu0 0
      %602 = vmatprep.subr.bf16.mxu0 0
      %603 = vmatpush1.bf16.msra.mxu0 0
      %604 = vmatprep.subr.bf16.mxu0 0
      %605 = vmatpush1.bf16.msra.mxu0 0
      %606 = vmatprep.subr.bf16.mxu0 0
      %607 = vmatpush1.bf16.msra.mxu0 0
      %608 = vmatprep.subr.bf16.mxu0 0
      %609 = vmatpush1.bf16.msra.mxu0 0
      %610 = vmatprep.mubr.bf16.mxu0 0
      %611 = vmatmul.mubr.bf16.gmra.mrb[0].mxu0 %v368
      %v612 = vpop.f32.mrb[0].mxu0
      %v613 = vadd.f32 %v500, %v612
      %v614 = vpop.f32.mrb[0].mxu0
      %v615 = vpop.f32.mrb[0].mxu0
      %v616 = vadd.f32 %v503, %v615
      %v617 = vpop.f32.mrb[0].mxu0
      %618 = vmatprep.mubr.bf16.mxu0 0
      %619 = vmatmul.mubr.bf16.gmra.mrb[0].mxu0 %v369
      %v620 = vpop.f32.mrb[0].mxu0
      %v621 = vadd.f32 %v508, %v620
      %v622 = vpop.f32.mrb[0].mxu0
      %v623 = vpop.f32.mrb[0].mxu0
      %v624 = vadd.f32 %v511, %v623
      %v625 = vpop.f32.mrb[0].mxu0
      %626 = vmatprep.mubr.bf16.mxu0 0
      %627 = vmatmul.mubr.bf16.gmra.mrb[0].mxu0 %v370
      %v628 = vpop.f32.mrb[0].mxu0
      %v629 = vadd.f32 %v516, %v628
      %v630 = vpop.f32.mrb[0].mxu0
      %v631 = vpop.f32.mrb[0].mxu0
      %v632 = vadd.f32 %v519, %v631
      %v633 = vpop.f32.mrb[0].mxu0
      %634 = vmatprep.mubr.bf16.mxu0 0
      %635 = vmatmul.mubr.bf16.gmra.mrb[0].mxu0 %v371
      %v636 = vpop.f32.mrb[0].mxu0
      %v637 = vadd.f32 %v524, %v636
      %v638 = vpop.f32.mrb[0].mxu0
      %v639 = vpop.f32.mrb[0].mxu0
      %v640 = vadd.f32 %v527, %v639
      %v641 = vpop.f32.mrb[0].mxu0
      %642 = vdwg.mxu0
      %s643 = scalar_lea.vmem %s332, 16
      %v644 = vld [vmem:[%s643] sm:$0xff]
      %v645 = vld [vmem:[%s643 + $0x10] sm:$0xff]
      %v646 = vld [vmem:[%s643 + $0x20] sm:$0xff]
      %v647 = vld [vmem:[%s643 + $0x30] sm:$0xff]
      %v648 = vld [vmem:[%s643 + $0x40] sm:$0xff]
      %v649 = vld [vmem:[%s643 + $0x50] sm:$0xff]
      %v650 = vld [vmem:[%s643 + $0x60] sm:$0xff]
      %v651 = vld [vmem:[%s643 + $0x70] sm:$0xff]
      %v652 = vpack.c.bf16 %v645, %v644
      %v653 = vpack.c.bf16 %v647, %v646
      %v654 = vpack.c.bf16 %v649, %v648
      %v655 = vpack.c.bf16 %v651, %v650
      %s656 = scalar_lea.vmem %s1, 128
      %v657 = vld [vmem:[%s656] sm:$0xf]
      %v658 = vld [vmem:[%s656 + $0x4] sm:$0xf]
      %v659 = vld [vmem:[%s656 + $0x8] sm:$0xf]
      %v660 = vld [vmem:[%s656 + $0xc] sm:$0xf]
      %v661 = vld [vmem:[%s656 + $0x10] sm:$0xf]
      %v662 = vld [vmem:[%s656 + $0x14] sm:$0xf]
      %v663 = vld [vmem:[%s656 + $0x18] sm:$0xf]
      %v664 = vld [vmem:[%s656 + $0x1c] sm:$0xf]
      %v665 = vld [vmem:[%s656 + $0x20] sm:$0xf]
      %v666 = vld [vmem:[%s656 + $0x24] sm:$0xf]
      %v667 = vld [vmem:[%s656 + $0x28] sm:$0xf]
      %v668 = vld [vmem:[%s656 + $0x2c] sm:$0xf]
      %v669 = vld [vmem:[%s656 + $0x30] sm:$0xf]
      %v670 = vld [vmem:[%s656 + $0x34] sm:$0xf]
      %v671 = vld [vmem:[%s656 + $0x38] sm:$0xf]
      %v672 = vld [vmem:[%s656 + $0x3c] sm:$0xf]
      %v689 = vunpack.c.l.b16 %v657
      %v690 = vunpack.c.l.b16 %v658
      %v691 = vunpack.c.l.b16 %v659
      %v692 = vunpack.c.l.b16 %v660
      %v693 = vunpack.c.l.b16 %v661
      %v694 = vunpack.c.l.b16 %v662
      %v695 = vunpack.c.l.b16 %v663
      %v696 = vunpack.c.l.b16 %v664
      %v697 = vunpack.c.l.b16 %v665
      %v698 = vunpack.c.l.b16 %v666
      %v699 = vunpack.c.l.b16 %v667
      %v700 = vunpack.c.l.b16 %v668
      %v701 = vunpack.c.l.b16 %v669
      %v702 = vunpack.c.l.b16 %v670
      %v703 = vunpack.c.l.b16 %v671
      %v704 = vunpack.c.l.b16 %v672
      %v705 = vpack.c.b16 %v690, %v689
      %v706 = vpack.c.b16 %v692, %v691
      %v707 = vpack.c.b16 %v694, %v693
      %v708 = vpack.c.b16 %v696, %v695
      %v709 = vpack.c.b16 %v698, %v697
      %v710 = vpack.c.b16 %v700, %v699
      %v711 = vpack.c.b16 %v702, %v701
      %v712 = vpack.c.b16 %v704, %v703
      %721 = vmatprep.subr.bf16.mxu0 0
      %722 = vmatpush1.bf16.msra.mxu0 %v705
      %723 = vmatprep.subr.bf16.mxu0 0
      %724 = vmatpush1.bf16.msra.mxu0 %v706
      %725 = vmatprep.subr.bf16.mxu0 0
      %726 = vmatpush1.bf16.msra.mxu0 %v707
      %727 = vmatprep.subr.bf16.mxu0 0
      %728 = vmatpush1.bf16.msra.mxu0 %v708
      %729 = vmatprep.subr.bf16.mxu0 0
      %730 = vmatpush1.bf16.msra.mxu0 %v709
      %731 = vmatprep.subr.bf16.mxu0 0
      %732 = vmatpush1.bf16.msra.mxu0 %v710
      %733 = vmatprep.subr.bf16.mxu0 0
      %734 = vmatpush1.bf16.msra.mxu0 %v711
      %735 = vmatprep.subr.bf16.mxu0 0
      %736 = vmatpush1.bf16.msra.mxu0 %v712
      %737 = vmatprep.subr.bf16.mxu0 0
      %738 = vmatpush1.bf16.msra.mxu0 0
      %739 = vmatprep.subr.bf16.mxu0 0
      %740 = vmatpush1.bf16.msra.mxu0 0
      %741 = vmatprep.subr.bf16.mxu0 0
      %742 = vmatpush1.bf16.msra.mxu0 0
      %743 = vmatprep.subr.bf16.mxu0 0
      %744 = vmatpush1.bf16.msra.mxu0 0
      %745 = vmatprep.subr.bf16.mxu0 0
      %746 = vmatpush1.bf16.msra.mxu0 0
      %747 = vmatprep.subr.bf16.mxu0 0
      %748 = vmatpush1.bf16.msra.mxu0 0
      %749 = vmatprep.subr.bf16.mxu0 0
      %750 = vmatpush1.bf16.msra.mxu0 0
      %751 = vmatprep.subr.bf16.mxu0 0
      %752 = vmatpush1.bf16.msra.mxu0 0
      %753 = vmatprep.mubr.bf16.mxu0 0
      %754 = vmatmul.mubr.bf16.gmra.mrb[0].mxu0 %v652
      %v755 = vpop.f32.mrb[0].mxu0
      %v756 = vadd.f32 0.0, %v755
      %v757 = vpop.f32.mrb[0].mxu0
      %v758 = vpop.f32.mrb[0].mxu0
      %v759 = vadd.f32 0.0, %v758
      %v760 = vpop.f32.mrb[0].mxu0
      %761 = vmatprep.mubr.bf16.mxu0 0
      %762 = vmatmul.mubr.bf16.gmra.mrb[0].mxu0 %v653
      %v763 = vpop.f32.mrb[0].mxu0
      %v764 = vadd.f32 0.0, %v763
      %v765 = vpop.f32.mrb[0].mxu0
      %v766 = vpop.f32.mrb[0].mxu0
      %v767 = vadd.f32 0.0, %v766
      %v768 = vpop.f32.mrb[0].mxu0
      %769 = vmatprep.mubr.bf16.mxu0 0
      %770 = vmatmul.mubr.bf16.gmra.mrb[0].mxu0 %v654
      %v771 = vpop.f32.mrb[0].mxu0
      %v772 = vadd.f32 0.0, %v771
      %v773 = vpop.f32.mrb[0].mxu0
      %v774 = vpop.f32.mrb[0].mxu0
      %v775 = vadd.f32 0.0, %v774
      %v776 = vpop.f32.mrb[0].mxu0
      %777 = vmatprep.mubr.bf16.mxu0 0
      %778 = vmatmul.mubr.bf16.gmra.mrb[0].mxu0 %v655
      %v779 = vpop.f32.mrb[0].mxu0
      %v780 = vadd.f32 0.0, %v779
      %v781 = vpop.f32.mrb[0].mxu0
      %v782 = vpop.f32.mrb[0].mxu0
      %v783 = vadd.f32 0.0, %v782
      %v784 = vpop.f32.mrb[0].mxu0
      %785 = vdwg.mxu0
      %v786 = vadd.f32 %v613, %v756
      %v787 = vadd.f32 %v616, %v759
      %v788 = vadd.f32 %v621, %v764
      %v789 = vadd.f32 %v624, %v767
      %v790 = vadd.f32 %v629, %v772
      %v791 = vadd.f32 %v632, %v775
      %v792 = vadd.f32 %v637, %v780
      %v793 = vadd.f32 %v640, %v783
      %v794 = vld [vmem:[%s643 + $0x1] sm:$0xff]
      %v795 = vld [vmem:[%s643 + $0x11] sm:$0xff]
      %v796 = vld [vmem:[%s643 + $0x21] sm:$0xff]
      %v797 = vld [vmem:[%s643 + $0x31] sm:$0xff]
      %v798 = vld [vmem:[%s643 + $0x41] sm:$0xff]
      %v799 = vld [vmem:[%s643 + $0x51] sm:$0xff]
      %v800 = vld [vmem:[%s643 + $0x61] sm:$0xff]
      %v801 = vld [vmem:[%s643 + $0x71] sm:$0xff]
      %v802 = vpack.c.bf16 %v795, %v794
      %v803 = vpack.c.bf16 %v797, %v796
      %v804 = vpack.c.bf16 %v799, %v798
      %v805 = vpack.c.bf16 %v801, %v800
      %s806 = scalar_lea.vmem %s1, 192
      %v807 = vld [vmem:[%s806] sm:$0xf]
      %v808 = vld [vmem:[%s806 + $0x4] sm:$0xf]
      %v809 = vld [vmem:[%s806 + $0x8] sm:$0xf]
      %v810 = vld [vmem:[%s806 + $0xc] sm:$0xf]
      %v811 = vld [vmem:[%s806 + $0x10] sm:$0xf]
      %v812 = vld [vmem:[%s806 + $0x14] sm:$0xf]
      %v813 = vld [vmem:[%s806 + $0x18] sm:$0xf]
      %v814 = vld [vmem:[%s806 + $0x1c] sm:$0xf]
      %v815 = vld [vmem:[%s806 + $0x20] sm:$0xf]
      %v816 = vld [vmem:[%s806 + $0x24] sm:$0xf]
      %v817 = vld [vmem:[%s806 + $0x28] sm:$0xf]
      %v818 = vld [vmem:[%s806 + $0x2c] sm:$0xf]
      %v819 = vld [vmem:[%s806 + $0x30] sm:$0xf]
      %v820 = vld [vmem:[%s806 + $0x34] sm:$0xf]
      %v821 = vld [vmem:[%s806 + $0x38] sm:$0xf]
      %v822 = vld [vmem:[%s806 + $0x3c] sm:$0xf]
      %v839 = vunpack.c.l.b16 %v807
      %v840 = vunpack.c.l.b16 %v808
      %v841 = vunpack.c.l.b16 %v809
      %v842 = vunpack.c.l.b16 %v810
      %v843 = vunpack.c.l.b16 %v811
      %v844 = vunpack.c.l.b16 %v812
      %v845 = vunpack.c.l.b16 %v813
      %v846 = vunpack.c.l.b16 %v814
      %v847 = vunpack.c.l.b16 %v815
      %v848 = vunpack.c.l.b16 %v816
      %v849 = vunpack.c.l.b16 %v817
      %v850 = vunpack.c.l.b16 %v818
      %v851 = vunpack.c.l.b16 %v819
      %v852 = vunpack.c.l.b16 %v820
      %v853 = vunpack.c.l.b16 %v821
      %v854 = vunpack.c.l.b16 %v822
      %v855 = vpack.c.b16 %v840, %v839
      %v856 = vpack.c.b16 %v842, %v841
      %v857 = vpack.c.b16 %v844, %v843
      %v858 = vpack.c.b16 %v846, %v845
      %v859 = vpack.c.b16 %v848, %v847
      %v860 = vpack.c.b16 %v850, %v849
      %v861 = vpack.c.b16 %v852, %v851
      %v862 = vpack.c.b16 %v854, %v853
      %871 = vmatprep.subr.bf16.mxu0 0
      %872 = vmatpush1.bf16.msra.mxu0 %v855
      %873 = vmatprep.subr.bf16.mxu0 0
      %874 = vmatpush1.bf16.msra.mxu0 %v856
      %875 = vmatprep.subr.bf16.mxu0 0
      %876 = vmatpush1.bf16.msra.mxu0 %v857
      %877 = vmatprep.subr.bf16.mxu0 0
      %878 = vmatpush1.bf16.msra.mxu0 %v858
      %879 = vmatprep.subr.bf16.mxu0 0
      %880 = vmatpush1.bf16.msra.mxu0 %v859
      %881 = vmatprep.subr.bf16.mxu0 0
      %882 = vmatpush1.bf16.msra.mxu0 %v860
      %883 = vmatprep.subr.bf16.mxu0 0
      %884 = vmatpush1.bf16.msra.mxu0 %v861
      %885 = vmatprep.subr.bf16.mxu0 0
      %886 = vmatpush1.bf16.msra.mxu0 %v862
      %887 = vmatprep.subr.bf16.mxu0 0
      %888 = vmatpush1.bf16.msra.mxu0 0
      %889 = vmatprep.subr.bf16.mxu0 0
      %890 = vmatpush1.bf16.msra.mxu0 0
      %891 = vmatprep.subr.bf16.mxu0 0
      %892 = vmatpush1.bf16.msra.mxu0 0
      %893 = vmatprep.subr.bf16.mxu0 0
      %894 = vmatpush1.bf16.msra.mxu0 0
      %895 = vmatprep.subr.bf16.mxu0 0
      %896 = vmatpush1.bf16.msra.mxu0 0
      %897 = vmatprep.subr.bf16.mxu0 0
      %898 = vmatpush1.bf16.msra.mxu0 0
      %899 = vmatprep.subr.bf16.mxu0 0
      %900 = vmatpush1.bf16.msra.mxu0 0
      %901 = vmatprep.subr.bf16.mxu0 0
      %902 = vmatpush1.bf16.msra.mxu0 0
      %903 = vmatprep.mubr.bf16.mxu0 0
      %904 = vmatmul.mubr.bf16.gmra.mrb[0].mxu0 %v802
      %v905 = vpop.f32.mrb[0].mxu0
      %v906 = vadd.f32 0.0, %v905
      %v907 = vpop.f32.mrb[0].mxu0
      %v908 = vpop.f32.mrb[0].mxu0
      %v909 = vadd.f32 0.0, %v908
      %v910 = vpop.f32.mrb[0].mxu0
      %911 = vmatprep.mubr.bf16.mxu0 0
      %912 = vmatmul.mubr.bf16.gmra.mrb[0].mxu0 %v803
      %v913 = vpop.f32.mrb[0].mxu0
      %v914 = vadd.f32 0.0, %v913
      %v915 = vpop.f32.mrb[0].mxu0
      %v916 = vpop.f32.mrb[0].mxu0
      %v917 = vadd.f32 0.0, %v916
      %v918 = vpop.f32.mrb[0].mxu0
      %919 = vmatprep.mubr.bf16.mxu0 0
      %920 = vmatmul.mubr.bf16.gmra.mrb[0].mxu0 %v804
      %v921 = vpop.f32.mrb[0].mxu0
      %v922 = vadd.f32 0.0, %v921
      %v923 = vpop.f32.mrb[0].mxu0
      %v924 = vpop.f32.mrb[0].mxu0
      %v925 = vadd.f32 0.0, %v924
      %v926 = vpop.f32.mrb[0].mxu0
      %927 = vmatprep.mubr.bf16.mxu0 0
      %928 = vmatmul.mubr.bf16.gmra.mrb[0].mxu0 %v805
      %v929 = vpop.f32.mrb[0].mxu0
      %v930 = vadd.f32 0.0, %v929
      %v931 = vpop.f32.mrb[0].mxu0
      %v932 = vpop.f32.mrb[0].mxu0
      %v933 = vadd.f32 0.0, %v932
      %v934 = vpop.f32.mrb[0].mxu0
      %935 = vdwg.mxu0
      %v936 = vadd.f32 %v786, %v906
      %v937 = vadd.f32 %v787, %v909
      %v938 = vadd.f32 %v788, %v914
      %v939 = vadd.f32 %v789, %v917
      %v940 = vadd.f32 %v790, %v922
      %v941 = vadd.f32 %v791, %v925
      %v942 = vadd.f32 %v792, %v930
      %v943 = vadd.f32 %v793, %v933
      %944 = vst [vmem:[%s337] sm:$0xff] %v936
      %945 = vst [vmem:[%s337 + $0x8] sm:$0xff] %v937
      %946 = vst [vmem:[%s337 + $0x10] sm:$0xff] %v938
      %947 = vst [vmem:[%s337 + $0x18] sm:$0xff] %v939
      %948 = vst [vmem:[%s337 + $0x20] sm:$0xff] %v940
      %949 = vst [vmem:[%s337 + $0x28] sm:$0xff] %v941
      %950 = vst [vmem:[%s337 + $0x30] sm:$0xff] %v942
      %951 = vst [vmem:[%s337 + $0x38] sm:$0xff] %v943
      %v952 = vadd.f32 %v936, %v937
      %v953 = vadd.f32 %v952, %v938
      %v954 = vadd.f32 %v953, %v939
      %v955 = vadd.f32 %v954, %v940
      %v956 = vadd.f32 %v955, %v941
      %v957 = vadd.f32 %v956, %v942
      %v958 = vadd.f32 %v957, %v943
      %v959 = vrot.slane %v958, 4
      %v960 = vadd.f32 %v958, %v959
      %v961 = vrot.slane %v960, 2
      %v962 = vadd.f32 %v960, %v961
      %v963 = vrot.slane %v962, 1
      %v964 = vadd.f32 %v962, %v963
      %v965 = vmul.f32 %v936, %v936
      %v966 = vmul.f32 %v937, %v937
      %v967 = vmul.f32 %v938, %v938
      %v968 = vmul.f32 %v939, %v939
      %v969 = vmul.f32 %v940, %v940
      %v970 = vmul.f32 %v941, %v941
      %v971 = vmul.f32 %v942, %v942
      %v972 = vmul.f32 %v943, %v943
      %v973 = vadd.f32 %v965, %v966
      %v974 = vadd.f32 %v973, %v967
      %v975 = vadd.f32 %v974, %v968
      %v976 = vadd.f32 %v975, %v969
      %v977 = vadd.f32 %v976, %v970
      %v978 = vadd.f32 %v977, %v971
      %v979 = vadd.f32 %v978, %v972
      %v980 = vrot.slane %v979, 4
      %v981 = vadd.f32 %v979, %v980
      %v982 = vrot.slane %v981, 2
      %v983 = vadd.f32 %v981, %v982
      %v984 = vrot.slane %v983, 1
      %v985 = vadd.f32 %v983, %v984
      %986 = vst [vmem:[%s341] sm:$0xff] %v964
      %987 = vst [vmem:[%s345] sm:$0xff] %v985
      %v988 = vld [vmem:[%s332] sm:$0xff]
      %v989 = vld [vmem:[%s332 + $0x10] sm:$0xff]
      %v990 = vld [vmem:[%s332 + $0x20] sm:$0xff]
      %v991 = vld [vmem:[%s332 + $0x30] sm:$0xff]
      %v992 = vld [vmem:[%s332 + $0x40] sm:$0xff]
      %v993 = vld [vmem:[%s332 + $0x50] sm:$0xff]
      %v994 = vld [vmem:[%s332 + $0x60] sm:$0xff]
      %v995 = vld [vmem:[%s332 + $0x70] sm:$0xff]
      %v996 = vpack.c.bf16 %v989, %v988
      %v997 = vpack.c.bf16 %v991, %v990
      %v998 = vpack.c.bf16 %v993, %v992
      %v999 = vpack.c.bf16 %v995, %v994
      %v1000 = vld [vmem:[%s2] sm:$0xf]
      %v1001 = vld [vmem:[%s2 + $0x4] sm:$0xf]
      %v1002 = vld [vmem:[%s2 + $0x8] sm:$0xf]
      %v1003 = vld [vmem:[%s2 + $0xc] sm:$0xf]
      %v1004 = vld [vmem:[%s2 + $0x10] sm:$0xf]
      %v1005 = vld [vmem:[%s2 + $0x14] sm:$0xf]
      %v1006 = vld [vmem:[%s2 + $0x18] sm:$0xf]
      %v1007 = vld [vmem:[%s2 + $0x1c] sm:$0xf]
      %v1008 = vld [vmem:[%s2 + $0x20] sm:$0xf]
      %v1009 = vld [vmem:[%s2 + $0x24] sm:$0xf]
      %v1010 = vld [vmem:[%s2 + $0x28] sm:$0xf]
      %v1011 = vld [vmem:[%s2 + $0x2c] sm:$0xf]
      %v1012 = vld [vmem:[%s2 + $0x30] sm:$0xf]
      %v1013 = vld [vmem:[%s2 + $0x34] sm:$0xf]
      %v1014 = vld [vmem:[%s2 + $0x38] sm:$0xf]
      %v1015 = vld [vmem:[%s2 + $0x3c] sm:$0xf]
      %v1032 = vunpack.c.l.b16 %v1000
      %v1033 = vunpack.c.l.b16 %v1001
      %v1034 = vunpack.c.l.b16 %v1002
      %v1035 = vunpack.c.l.b16 %v1003
      %v1036 = vunpack.c.l.b16 %v1004
      %v1037 = vunpack.c.l.b16 %v1005
      %v1038 = vunpack.c.l.b16 %v1006
      %v1039 = vunpack.c.l.b16 %v1007
      %v1040 = vunpack.c.l.b16 %v1008
      %v1041 = vunpack.c.l.b16 %v1009
      %v1042 = vunpack.c.l.b16 %v1010
      %v1043 = vunpack.c.l.b16 %v1011
      %v1044 = vunpack.c.l.b16 %v1012
      %v1045 = vunpack.c.l.b16 %v1013
      %v1046 = vunpack.c.l.b16 %v1014
      %v1047 = vunpack.c.l.b16 %v1015
      %v1048 = vpack.c.b16 %v1033, %v1032
      %v1049 = vpack.c.b16 %v1035, %v1034
      %v1050 = vpack.c.b16 %v1037, %v1036
      %v1051 = vpack.c.b16 %v1039, %v1038
      %v1052 = vpack.c.b16 %v1041, %v1040
      %v1053 = vpack.c.b16 %v1043, %v1042
      %v1054 = vpack.c.b16 %v1045, %v1044
      %v1055 = vpack.c.b16 %v1047, %v1046
      %1064 = vmatprep.subr.bf16.mxu0 0
      %1065 = vmatpush1.bf16.msra.mxu0 %v1048
      %1066 = vmatprep.subr.bf16.mxu0 0
      %1067 = vmatpush1.bf16.msra.mxu0 %v1049
      %1068 = vmatprep.subr.bf16.mxu0 0
      %1069 = vmatpush1.bf16.msra.mxu0 %v1050
      %1070 = vmatprep.subr.bf16.mxu0 0
      %1071 = vmatpush1.bf16.msra.mxu0 %v1051
      %1072 = vmatprep.subr.bf16.mxu0 0
      %1073 = vmatpush1.bf16.msra.mxu0 %v1052
      %1074 = vmatprep.subr.bf16.mxu0 0
      %1075 = vmatpush1.bf16.msra.mxu0 %v1053
      %1076 = vmatprep.subr.bf16.mxu0 0
      %1077 = vmatpush1.bf16.msra.mxu0 %v1054
      %1078 = vmatprep.subr.bf16.mxu0 0
      %1079 = vmatpush1.bf16.msra.mxu0 %v1055
      %1080 = vmatprep.subr.bf16.mxu0 0
      %1081 = vmatpush1.bf16.msra.mxu0 0
      %1082 = vmatprep.subr.bf16.mxu0 0
      %1083 = vmatpush1.bf16.msra.mxu0 0
      %1084 = vmatprep.subr.bf16.mxu0 0
      %1085 = vmatpush1.bf16.msra.mxu0 0
      %1086 = vmatprep.subr.bf16.mxu0 0
      %1087 = vmatpush1.bf16.msra.mxu0 0
      %1088 = vmatprep.subr.bf16.mxu0 0
      %1089 = vmatpush1.bf16.msra.mxu0 0
      %1090 = vmatprep.subr.bf16.mxu0 0
      %1091 = vmatpush1.bf16.msra.mxu0 0
      %1092 = vmatprep.subr.bf16.mxu0 0
      %1093 = vmatpush1.bf16.msra.mxu0 0
      %1094 = vmatprep.subr.bf16.mxu0 0
      %1095 = vmatpush1.bf16.msra.mxu0 0
      %1096 = vmatprep.mubr.bf16.mxu0 0
      %1097 = vmatmul.mubr.bf16.gmra.mrb[0].mxu0 %v996
      %v1098 = vpop.f32.mrb[0].mxu0
      %v1099 = vadd.f32 0.0, %v1098
      %v1100 = vpop.f32.mrb[0].mxu0
      %v1101 = vpop.f32.mrb[0].mxu0
      %v1102 = vadd.f32 0.0, %v1101
      %v1103 = vpop.f32.mrb[0].mxu0
      %1104 = vmatprep.mubr.bf16.mxu0 0
      %1105 = vmatmul.mubr.bf16.gmra.mrb[0].mxu0 %v997
      %v1106 = vpop.f32.mrb[0].mxu0
      %v1107 = vadd.f32 0.0, %v1106
      %v1108 = vpop.f32.mrb[0].mxu0
      %v1109 = vpop.f32.mrb[0].mxu0
      %v1110 = vadd.f32 0.0, %v1109
      %v1111 = vpop.f32.mrb[0].mxu0
      %1112 = vmatprep.mubr.bf16.mxu0 0
      %1113 = vmatmul.mubr.bf16.gmra.mrb[0].mxu0 %v998
      %v1114 = vpop.f32.mrb[0].mxu0
      %v1115 = vadd.f32 0.0, %v1114
      %v1116 = vpop.f32.mrb[0].mxu0
      %v1117 = vpop.f32.mrb[0].mxu0
      %v1118 = vadd.f32 0.0, %v1117
      %v1119 = vpop.f32.mrb[0].mxu0
      %1120 = vmatprep.mubr.bf16.mxu0 0
      %1121 = vmatmul.mubr.bf16.gmra.mrb[0].mxu0 %v999
      %v1122 = vpop.f32.mrb[0].mxu0
      %v1123 = vadd.f32 0.0, %v1122
      %v1124 = vpop.f32.mrb[0].mxu0
      %v1125 = vpop.f32.mrb[0].mxu0
      %v1126 = vadd.f32 0.0, %v1125
      %v1127 = vpop.f32.mrb[0].mxu0
      %1128 = vdwg.mxu0
      %1129 = vst [vmem:[%s350] sm:$0xff] %v1099
      %1130 = vst [vmem:[%s350 + $0x8] sm:$0xff] %v1102
      %1131 = vst [vmem:[%s350 + $0x10] sm:$0xff] %v1107
      %1132 = vst [vmem:[%s350 + $0x18] sm:$0xff] %v1110
      %1133 = vst [vmem:[%s350 + $0x20] sm:$0xff] %v1115
      %1134 = vst [vmem:[%s350 + $0x28] sm:$0xff] %v1118
      %1135 = vst [vmem:[%s350 + $0x30] sm:$0xff] %v1123
      %1136 = vst [vmem:[%s350 + $0x38] sm:$0xff] %v1126
      %v1137 = vadd.f32 %v1099, %v1102
      %v1138 = vadd.f32 %v1137, %v1107
      %v1139 = vadd.f32 %v1138, %v1110
      %v1140 = vadd.f32 %v1139, %v1115
      %v1141 = vadd.f32 %v1140, %v1118
      %v1142 = vadd.f32 %v1141, %v1123
      %v1143 = vadd.f32 %v1142, %v1126
      %v1144 = vrot.slane %v1143, 4
      %v1145 = vadd.f32 %v1143, %v1144
      %v1146 = vrot.slane %v1145, 2
      %v1147 = vadd.f32 %v1145, %v1146
      %v1148 = vrot.slane %v1147, 1
      %v1149 = vadd.f32 %v1147, %v1148
      %v1150 = vmul.f32 %v1099, %v1099
      %v1151 = vmul.f32 %v1102, %v1102
      %v1152 = vmul.f32 %v1107, %v1107
      %v1153 = vmul.f32 %v1110, %v1110
      %v1154 = vmul.f32 %v1115, %v1115
      %v1155 = vmul.f32 %v1118, %v1118
      %v1156 = vmul.f32 %v1123, %v1123
      %v1157 = vmul.f32 %v1126, %v1126
      %v1158 = vadd.f32 %v1150, %v1151
      %v1159 = vadd.f32 %v1158, %v1152
      %v1160 = vadd.f32 %v1159, %v1153
      %v1161 = vadd.f32 %v1160, %v1154
      %v1162 = vadd.f32 %v1161, %v1155
      %v1163 = vadd.f32 %v1162, %v1156
      %v1164 = vadd.f32 %v1163, %v1157
      %v1165 = vrot.slane %v1164, 4
      %v1166 = vadd.f32 %v1164, %v1165
      %v1167 = vrot.slane %v1166, 2
      %v1168 = vadd.f32 %v1166, %v1167
      %v1169 = vrot.slane %v1168, 1
      %v1170 = vadd.f32 %v1168, %v1169
      %1171 = vst [vmem:[%s354] sm:$0xff] %v1149
      %1172 = vst [vmem:[%s358] sm:$0xff] %v1170
      %p1173 = scmp.lt.s32.totalorder %s20, 1
      %s1174 = scalar_select %p1173, %s20, 1
      %s1175 = smul.addr %s1174, 8
      %s1176 = smul.addr %s1175, 8
      %s1177 = scalar_lea.vmem %s3, %s1176
      %p1178 = scmp.lt.s32.totalorder %s20, 1
      %s1179 = scalar_select %p1178, %s20, 1
      %s1180 = smul.addr %s1179, 8
      %s1181 = scalar_lea.vmem %s4, %s1180
      %p1182 = scmp.lt.s32.totalorder %s20, 1
      %s1183 = scalar_select %p1182, %s20, 1
      %s1184 = smul.addr %s1183, 8
      %s1185 = scalar_lea.vmem %s5, %s1184
      %p1186 = scmp.lt.s32.totalorder %s20, 1
      %s1187 = scalar_select %p1186, %s20, 1
      %s1188 = smul.addr %s1187, 8
      %s1189 = smul.addr %s1188, 8
      %s1190 = scalar_lea.vmem %s6, %s1189
      %p1191 = scmp.lt.s32.totalorder %s20, 1
      %s1192 = scalar_select %p1191, %s20, 1
      %s1193 = smul.addr %s1192, 8
      %s1194 = scalar_lea.vmem %s7, %s1193
      %p1195 = scmp.lt.s32.totalorder %s20, 1
      %s1196 = scalar_select %p1195, %s20, 1
      %s1197 = smul.addr %s1196, 8
      %s1198 = scalar_lea.vmem %s8, %s1197
      // Predicated region
      $region33: #{basic_block_forward.3} parent=31 // pred_check
        %p1199 = pneg %p106
      $region34: #{basic_block_forward.3} parent=31 // pred_check_branch
        %1201 = sbr.rel (%p1199) target = $region36
      $region35: #{basic_block_forward.3} parent=31 // pred_region
        _
      $region36: #{basic_block_forward.3} parent=31 // pred_fallthru
        _
      // Predicated region
      $region37: #{basic_block_forward.3} parent=31 // pred_check
        %p1202 = pneg %p132
      $region38: #{basic_block_forward.3} parent=31 // pred_check_branch
        %1204 = sbr.rel (%p1202) target = $region40
      $region39: #{basic_block_forward.3} parent=31 // pred_region
        _
      $region40: #{basic_block_forward.3} parent=31 // pred_fallthru
        _
      // Predicated region
      $region41: #{basic_block_forward.3} parent=31 // pred_check
        %p1205 = pneg %p158
      $region42: #{basic_block_forward.3} parent=31 // pred_check_branch
        %1207 = sbr.rel (%p1205) target = $region44
      $region43: #{basic_block_forward.3} parent=31 // pred_region
        _
      $region44: #{basic_block_forward.3} parent=31 // pred_fallthru
        _
      // Predicated region
      $region45: #{basic_block_forward.3} parent=31 // pred_check
        %p1208 = pneg %p184
      $region46: #{basic_block_forward.3} parent=31 // pred_check_branch
        %1210 = sbr.rel (%p1208) target = $region48
      $region47: #{basic_block_forward.3} parent=31 // pred_region
        _
      $region48: #{basic_block_forward.3} parent=31 // pred_fallthru
        _
      // Predicated region
      $region49: #{basic_block_forward.3} parent=31 // pred_check
        %p1211 = pneg %p210
      $region50: #{basic_block_forward.3} parent=31 // pred_check_branch
        %1213 = sbr.rel (%p1211) target = $region52
      $region51: #{basic_block_forward.3} parent=31 // pred_region
        _
      $region52: #{basic_block_forward.3} parent=31 // pred_fallthru
        _
      // Predicated region
      $region53: #{basic_block_forward.3} parent=31 // pred_check
        %p1214 = pneg %p236
      $region54: #{basic_block_forward.3} parent=31 // pred_check_branch
        %1216 = sbr.rel (%p1214) target = $region56
      $region55: #{basic_block_forward.3} parent=31 // pred_region
        _
      $region56: #{basic_block_forward.3} parent=31 // pred_fallthru
        _
    $region32: #{basic_block_forward.3} parent=5 // pred_fallthru
      _
    %p1217 = scmp.le.s32.totalorder 2, %s15
    // Predicated region
    $region57: #{basic_block_forward.3} parent=5 // pred_check
      %p1218 = pneg %p1217
    $region58: #{basic_block_forward.3} parent=5 // pred_check_branch
      %1220 = sbr.rel (%p1218) target = $region60
    $region59: #{basic_block_forward.3} parent=5 // pred_region
      %s1221 = ssub.s32 %s15, 2
      // Predicated region
      $region61: #{basic_block_forward.3} parent=59 // pred_check
        %p1222 = pneg %p112
      $region62: #{basic_block_forward.3} parent=59 // pred_check_branch
        %1224 = sbr.rel (%p1222) target = $region64
      $region63: #{basic_block_forward.3} parent=59 // pred_region
        %p1225 = scmp.lt.s32.totalorder %s21, 1
        %s1226 = scalar_select %p1225, %s21, 1
        %s1227 = smul.addr %s1226, 8
        %s1228 = smul.addr %s1227, 8
        %s1229 = scalar_lea.vmem %s3, %s1228
      $region64: #{basic_block_forward.3} parent=59 // pred_fallthru
        _
      // Predicated region
      $region65: #{basic_block_forward.3} parent=59 // pred_check
        %p1230 = pneg %p138
      $region66: #{basic_block_forward.3} parent=59 // pred_check_branch
        %1232 = sbr.rel (%p1230) target = $region68
      $region67: #{basic_block_forward.3} parent=59 // pred_region
        %p1233 = scmp.lt.s32.totalorder %s21, 1
        %s1234 = scalar_select %p1233, %s21, 1
        %s1235 = smul.addr %s1234, 8
        %s1236 = scalar_lea.vmem %s4, %s1235
      $region68: #{basic_block_forward.3} parent=59 // pred_fallthru
        _
      // Predicated region
      $region69: #{basic_block_forward.3} parent=59 // pred_check
        %p1237 = pneg %p164
      $region70: #{basic_block_forward.3} parent=59 // pred_check_branch
        %1239 = sbr.rel (%p1237) target = $region72
      $region71: #{basic_block_forward.3} parent=59 // pred_region
        %p1240 = scmp.lt.s32.totalorder %s21, 1
        %s1241 = scalar_select %p1240, %s21, 1
        %s1242 = smul.addr %s1241, 8
        %s1243 = scalar_lea.vmem %s5, %s1242
      $region72: #{basic_block_forward.3} parent=59 // pred_fallthru
        _
      // Predicated region
      $region73: #{basic_block_forward.3} parent=59 // pred_check
        %p1244 = pneg %p190
      $region74: #{basic_block_forward.3} parent=59 // pred_check_branch
        %1246 = sbr.rel (%p1244) target = $region76
      $region75: #{basic_block_forward.3} parent=59 // pred_region
        %p1247 = scmp.lt.s32.totalorder %s21, 1
        %s1248 = scalar_select %p1247, %s21, 1
        %s1249 = smul.addr %s1248, 8
        %s1250 = smul.addr %s1249, 8
        %s1251 = scalar_lea.vmem %s6, %s1250
      $region76: #{basic_block_forward.3} parent=59 // pred_fallthru
        _
      // Predicated region
      $region77: #{basic_block_forward.3} parent=59 // pred_check
        %p1252 = pneg %p216
      $region78: #{basic_block_forward.3} parent=59 // pred_check_branch
        %1254 = sbr.rel (%p1252) target = $region80
      $region79: #{basic_block_forward.3} parent=59 // pred_region
        %p1255 = scmp.lt.s32.totalorder %s21, 1
        %s1256 = scalar_select %p1255, %s21, 1
        %s1257 = smul.addr %s1256, 8
        %s1258 = scalar_lea.vmem %s7, %s1257
      $region80: #{basic_block_forward.3} parent=59 // pred_fallthru
        _
      // Predicated region
      $region81: #{basic_block_forward.3} parent=59 // pred_check
        %p1259 = pneg %p242
      $region82: #{basic_block_forward.3} parent=59 // pred_check_branch
        %1261 = sbr.rel (%p1259) target = $region84
      $region83: #{basic_block_forward.3} parent=59 // pred_region
        %p1262 = scmp.lt.s32.totalorder %s21, 1
        %s1263 = scalar_select %p1262, %s21, 1
        %s1264 = smul.addr %s1263, 8
        %s1265 = scalar_lea.vmem %s8, %s1264
      $region84: #{basic_block_forward.3} parent=59 // pred_fallthru
        _
    $region60: #{basic_block_forward.3} parent=5 // pred_fallthru
      _
  $region6: #{basic_block_forward.3} parent=0 // loop_footer
    %s19 = sadd.s32 1, %s15
  $region7: #{basic_block_forward.3} parent=0 // loop_footer_branch
    %14 = sbr.rel target = $region3
  $region8: #{basic_block_forward.3} parent=0 // loop_exit
    _

// kernel: basic_block_forward.4
$region0: #{basic_block_forward.4}
  #allocation0 [shape = 'u32[]', space=smem, size = 0x4, offset = 0x4, fixed_abs, tag = 'smem constant byte address 0x4 - core index']
  #allocation1 [shape = 'u32[144,128]{1,0:T(1,128)}', space=vmem, size = 0x12000, scoped, tag = 'internal scratch']
  #allocation2 [shape = 'f32[10,10,128]{2,1,0:T(8,128)}', space=vmem, size = 0x14000, scoped, tag = 'scratch operand']
  %s0 = inlined_call_operand.vmem [shape: f32[2,8,8,128], index: 0, kind: input, shape index: {}]
  %s1 = inlined_call_operand.vmem [shape: f32[8,128], index: 1, kind: input, shape index: {}]
  %s2 = inlined_call_operand.vmem [shape: f32[8,128], index: 2, kind: input, shape index: {}]
  %s3 = inlined_call_operand.vmem [shape: bf16[3,3,128,128], index: 3, kind: input, shape index: {}]
  %s4 = inlined_call_operand.vmem [shape: f32[2,8,8,128], index: 4, kind: output, shape index: {0}]
  %s5 = inlined_call_operand.vmem [shape: f32[2,8,128], index: 5, kind: output, shape index: {1}]
  %s6 = inlined_call_operand.vmem [shape: f32[2,8,128], index: 6, kind: output, shape index: {2}]
  %7 = xla_tuple %s4, %s5, %s6
  %s8 = sld [smem:[#allocation0]]
  $region65: #{basic_block_forward.4} parent=0
    _
  %s10 = ssub.s32 1, %s8
  %s11 = scalar_select 0, %s10, %s8
  loop: start=0, step=1, limit=4
  $region2: #{basic_block_forward.4} parent=0 // loop_pre_header
    _
  $region3: #{basic_block_forward.4} parent=0 // loop_header
    %s13 = sphi 0, %s17
    %p14 = scmp.ge.s32.totalorder %s13, 4
    %s23 = sphi 0, %s25
    %s26 = sphi 0, %s23
    %s27 = sphi 0, %s26
    %s43 = sphi 0, %s27
    %s47 = sphi 0, %s47
    %s49 = sphi 0, %s47
    %s50 = sphi 0, %s49
    %s64 = sphi 0, %s50
    %s68 = sphi 0, %s68
    %s70 = sphi 0, %s68
    %s71 = sphi 0, %s70
    %s85 = sphi 0, %s71
    %s89 = sphi 0, %s89
    %s91 = sphi 0, %s89
    %s92 = sphi 0, %s91
    %s106 = sphi 0, %s92
    %s112 = sphi 0, %s114
    %s115 = sphi 0, %s112
    %s116 = sphi 0, %s115
    %s132 = sphi 0, %s116
    %s138 = sphi 0, %s140
    %s141 = sphi 0, %s138
    %s142 = sphi 0, %s141
    %s158 = sphi 0, %s142
    %s164 = sphi 0, %s166
    %s167 = sphi 0, %s164
    %s168 = sphi 0, %s167
    %s184 = sphi 0, %s168
  $region4: #{basic_block_forward.4} parent=0 // loop_header_branch
    %16 = sbr.rel (%p14) target = $region8
  $region5: #{basic_block_forward.4} parent=0 // loop_body
    %s18 = ssub.s32 %s13, 1
    %s19 = ssub.s32 %s13, 2
    %s20 = sadd.s32 %s13, 1
    %s21 = ssub.s32 %s13, %s20
    %p22 = scmp.eq.s32.totalorder %s21, 0
    %s24 = sadd.s32 %s23, 1
    %s25 = scalar_select %p22, %s23, %s24
    %p28 = pneg %p22
    %p29 = scmp.eq.s32.totalorder %s13, 1
    %p30 = por %p28, %p29
    %p31 = scmp.ne.s32.totalorder %s23, %s26
    %p32 = scmp.eq.s32.totalorder %s13, 0
    %p33 = por %p31, %p32
    %p34 = scmp.ne.s32.totalorder %s23, %s26
    %p35 = scmp.eq.s32.totalorder %s18, 1
    %p36 = por %p34, %p35
    %p37 = scmp.ne.s32.totalorder %s26, %s27
    %p38 = scmp.eq.s32.totalorder %s18, 0
    %p39 = por %p37, %p38
    %p40 = scmp.ne.s32.totalorder %s26, %s27
    %p41 = scmp.eq.s32.totalorder %s19, 1
    %p42 = por %p40, %p41
    %p44 = scmp.ne.s32.totalorder %s27, %s43
    %p45 = scmp.eq.s32.totalorder %s19, 0
    %p46 = por %p44, %p45
    %s48 = sadd.s32 %s47, 1
    %p51 = scmp.eq.s32.totalorder %s13, 1
    %p52 = scmp.ne.s32.totalorder %s47, %s49
    %p53 = scmp.eq.s32.totalorder %s13, 0
    %p54 = por %p52, %p53
    %p55 = scmp.ne.s32.totalorder %s47, %s49
    %p56 = scmp.eq.s32.totalorder %s18, 1
    %p57 = por %p55, %p56
    %p58 = scmp.ne.s32.totalorder %s49, %s50
    %p59 = scmp.eq.s32.totalorder %s18, 0
    %p60 = por %p58, %p59
    %p61 = scmp.ne.s32.totalorder %s49, %s50
    %p62 = scmp.eq.s32.totalorder %s19, 1
    %p63 = por %p61, %p62
    %p65 = scmp.ne.s32.totalorder %s50, %s64
    %p66 = scmp.eq.s32.totalorder %s19, 0
    %p67 = por %p65, %p66
    %s69 = sadd.s32 %s68, 1
    %p72 = scmp.eq.s32.totalorder %s13, 1
    %p73 = scmp.ne.s32.totalorder %s68, %s70
    %p74 = scmp.eq.s32.totalorder %s13, 0
    %p75 = por %p73, %p74
    %p76 = scmp.ne.s32.totalorder %s68, %s70
    %p77 = scmp.eq.s32.totalorder %s18, 1
    %p78 = por %p76, %p77
    %p79 = scmp.ne.s32.totalorder %s70, %s71
    %p80 = scmp.eq.s32.totalorder %s18, 0
    %p81 = por %p79, %p80
    %p82 = scmp.ne.s32.totalorder %s70, %s71
    %p83 = scmp.eq.s32.totalorder %s19, 1
    %p84 = por %p82, %p83
    %p86 = scmp.ne.s32.totalorder %s71, %s85
    %p87 = scmp.eq.s32.totalorder %s19, 0
    %p88 = por %p86, %p87
    %s90 = sadd.s32 %s89, 1
    %p93 = scmp.eq.s32.totalorder %s13, 1
    %p94 = scmp.ne.s32.totalorder %s89, %s91
    %p95 = scmp.eq.s32.totalorder %s13, 0
    %p96 = por %p94, %p95
    %p97 = scmp.ne.s32.totalorder %s89, %s91
    %p98 = scmp.eq.s32.totalorder %s18, 1
    %p99 = por %p97, %p98
    %p100 = scmp.ne.s32.totalorder %s91, %s92
    %p101 = scmp.eq.s32.totalorder %s18, 0
    %p102 = por %p100, %p101
    %p103 = scmp.ne.s32.totalorder %s91, %s92
    %p104 = scmp.eq.s32.totalorder %s19, 1
    %p105 = por %p103, %p104
    %p107 = scmp.ne.s32.totalorder %s92, %s106
    %p108 = scmp.eq.s32.totalorder %s19, 0
    %p109 = por %p107, %p108
    %s110 = ssub.s32 %s13, %s20
    %p111 = scmp.eq.s32.totalorder %s110, 0
    %s113 = sadd.s32 %s112, 1
    %s114 = scalar_select %p111, %s112, %s113
    %p117 = pneg %p111
    %p118 = scmp.eq.s32.totalorder %s13, 1
    %p119 = por %p117, %p118
    %p120 = scmp.ne.s32.totalorder %s112, %s115
    %p121 = scmp.eq.s32.totalorder %s13, 0
    %p122 = por %p120, %p121
    %p123 = scmp.ne.s32.totalorder %s112, %s115
    %p124 = scmp.eq.s32.totalorder %s18, 1
    %p125 = por %p123, %p124
    %p126 = scmp.ne.s32.totalorder %s115, %s116
    %p127 = scmp.eq.s32.totalorder %s18, 0
    %p128 = por %p126, %p127
    %p129 = scmp.ne.s32.totalorder %s115, %s116
    %p130 = scmp.eq.s32.totalorder %s19, 1
    %p131 = por %p129, %p130
    %p133 = scmp.ne.s32.totalorder %s116, %s132
    %p134 = scmp.eq.s32.totalorder %s19, 0
    %p135 = por %p133, %p134
    %s136 = ssub.s32 %s13, %s20
    %p137 = scmp.eq.s32.totalorder %s136, 0
    %s139 = sadd.s32 %s138, 1
    %s140 = scalar_select %p137, %s138, %s139
    %p143 = pneg %p137
    %p144 = scmp.eq.s32.totalorder %s13, 1
    %p145 = por %p143, %p144
    %p146 = scmp.ne.s32.totalorder %s138, %s141
    %p147 = scmp.eq.s32.totalorder %s13, 0
    %p148 = por %p146, %p147
    %p149 = scmp.ne.s32.totalorder %s138, %s141
    %p150 = scmp.eq.s32.totalorder %s18, 1
    %p151 = por %p149, %p150
    %p152 = scmp.ne.s32.totalorder %s141, %s142
    %p153 = scmp.eq.s32.totalorder %s18, 0
    %p154 = por %p152, %p153
    %p155 = scmp.ne.s32.totalorder %s141, %s142
    %p156 = scmp.eq.s32.totalorder %s19, 1
    %p157 = por %p155, %p156
    %p159 = scmp.ne.s32.totalorder %s142, %s158
    %p160 = scmp.eq.s32.totalorder %s19, 0
    %p161 = por %p159, %p160
    %s162 = ssub.s32 %s13, %s20
    %p163 = scmp.eq.s32.totalorder %s162, 0
    %s165 = sadd.s32 %s164, 1
    %s166 = scalar_select %p163, %s164, %s165
    %p169 = pneg %p163
    %p170 = scmp.eq.s32.totalorder %s13, 1
    %p171 = por %p169, %p170
    %p172 = scmp.ne.s32.totalorder %s164, %s167
    %p173 = scmp.eq.s32.totalorder %s13, 0
    %p174 = por %p172, %p173
    %p175 = scmp.ne.s32.totalorder %s164, %s167
    %p176 = scmp.eq.s32.totalorder %s18, 1
    %p177 = por %p175, %p176
    %p178 = scmp.ne.s32.totalorder %s167, %s168
    %p179 = scmp.eq.s32.totalorder %s18, 0
    %p180 = por %p178, %p179
    %p181 = scmp.ne.s32.totalorder %s167, %s168
    %p182 = scmp.eq.s32.totalorder %s19, 1
    %p183 = por %p181, %p182
    %p185 = scmp.ne.s32.totalorder %s168, %s184
    %p186 = scmp.eq.s32.totalorder %s19, 0
    %p187 = por %p185, %p186
    %p188 = scmp.le.s32.totalorder 1, %s13
    %p189 = scmp.lt.s32.totalorder %s13, 3
    %p190 = pnand %p188, %p189
    %p191 = pneg %p190
    // Predicated region
    $region9: #{basic_block_forward.4} parent=5 // pred_check
      _
    $region10: #{basic_block_forward.4} parent=5 // pred_check_branch
      %193 = sbr.rel (%p190) target = $region12
    $region11: #{basic_block_forward.4} parent=5 // pred_region
      %s194 = ssub.s32 %s13, 1
      // Predicated region
      $region13: #{basic_block_forward.4} parent=11 // pred_check
        %p195 = pneg %p60
      $region14: #{basic_block_forward.4} parent=11 // pred_check_branch
        %197 = sbr.rel (%p195) target = $region16
      $region15: #{basic_block_forward.4} parent=11 // pred_region
        _
      $region16: #{basic_block_forward.4} parent=11 // pred_fallthru
        _
      // Predicated region
      $region17: #{basic_block_forward.4} parent=11 // pred_check
        %p198 = pneg %p81
      $region18: #{basic_block_forward.4} parent=11 // pred_check_branch
        %200 = sbr.rel (%p198) target = $region20
      $region19: #{basic_block_forward.4} parent=11 // pred_region
        _
      $region20: #{basic_block_forward.4} parent=11 // pred_fallthru
        _
      // Predicated region
      $region21: #{basic_block_forward.4} parent=11 // pred_check
        %p201 = pneg %p102
      $region22: #{basic_block_forward.4} parent=11 // pred_check_branch
        %203 = sbr.rel (%p201) target = $region24
      $region23: #{basic_block_forward.4} parent=11 // pred_region
        _
      $region24: #{basic_block_forward.4} parent=11 // pred_fallthru
        _
    $region12: #{basic_block_forward.4} parent=5 // pred_fallthru
      _
    %p204 = scmp.lt.s32.totalorder %s13, 2
    // Predicated region
    $region25: #{basic_block_forward.4} parent=5 // pred_check
      %p205 = pneg %p204
    $region26: #{basic_block_forward.4} parent=5 // pred_check_branch
      %207 = sbr.rel (%p205) target = $region28
    $region27: #{basic_block_forward.4} parent=5 // pred_region
      // Predicated region
      $region29: #{basic_block_forward.4} parent=27 // pred_check
        %p208 = pneg %p33
      $region30: #{basic_block_forward.4} parent=27 // pred_check_branch
        %210 = sbr.rel (%p208) target = $region32
      $region31: #{basic_block_forward.4} parent=27 // pred_region
        %p211 = scmp.lt.s32.totalorder %s13, 1
        %s212 = scalar_select %p211, %s13, 1
        %s213 = smul.addr %s212, 8
        %s214 = smul.addr %s213, 8
        %s215 = scalar_lea.vmem %s0, %s214
      $region32: #{basic_block_forward.4} parent=27 // pred_fallthru
        _
    $region28: #{basic_block_forward.4} parent=5 // pred_fallthru
      _
    %p216 = scmp.le.s32.totalorder 1, %s13
    %p217 = scmp.lt.s32.totalorder %s13, 3
    %p218 = pnand %p216, %p217
    %p219 = pneg %p218
    // Predicated region
    $region33: #{basic_block_forward.4} parent=5 // pred_check
      _
    $region34: #{basic_block_forward.4} parent=5 // pred_check_branch
      %221 = sbr.rel (%p218) target = $region36
    $region35: #{basic_block_forward.4} parent=5 // pred_region
      %s222 = ssub.s32 %s13, 1
      %p223 = scmp.lt.s32.totalorder %s18, 1
      %s224 = scalar_select %p223, %s18, 1
      %s225 = smul.addr %s224, 8
      %s226 = smul.addr %s225, 8
      %s227 = scalar_lea.vmem %s0, %s226
      %p228 = pneg %p39
      %p229 = pneg %p36
      %p230 = pneg %p60
      %p231 = pneg %p57
      %p232 = pneg %p81
      %p233 = pneg %p78
      %p234 = pneg %p102
      %p235 = pneg %p99
      %p236 = pneg %p128
      %p237 = pneg %p125
      %p238 = scmp.lt.s32.totalorder %s18, 1
      %s239 = scalar_select %p238, %s18, 1
      %s240 = smul.addr %s239, 8
      %s241 = smul.addr %s240, 8
      %s242 = scalar_lea.vmem %s4, %s241
      %p243 = pneg %p154
      %p244 = pneg %p151
      %p245 = scmp.lt.s32.totalorder %s18, 1
      %s246 = scalar_select %p245, %s18, 1
      %s247 = smul.addr %s246, 8
      %s248 = scalar_lea.vmem %s5, %s247
      %p249 = pneg %p180
      %p250 = pneg %p177
      %p251 = scmp.lt.s32.totalorder %s18, 1
      %s252 = scalar_select %p251, %s18, 1
      %s253 = smul.addr %s252, 8
      %s254 = scalar_lea.vmem %s6, %s253
      %p255 = scmp.lt.s32.totalorder %s18, 1
      %s256 = scalar_select %p255, %s18, 1
      %s257 = smul.addr %s256, 8
      %s258 = smul.addr %s257, 8
      %s259 = scalar_lea.vmem %s0, %s258
      %p260 = scmp.lt.s32.totalorder %s18, 1
      %s261 = scalar_select %p260, %s18, 1
      %s262 = smul.addr %s261, 8
      %s263 = smul.addr %s262, 8
      %s264 = scalar_lea.vmem %s4, %s263
      %p265 = scmp.lt.s32.totalorder %s18, 1
      %s266 = scalar_select %p265, %s18, 1
      %s267 = smul.addr %s266, 8
      %s268 = scalar_lea.vmem %s5, %s267
      %p269 = scmp.lt.s32.totalorder %s18, 1
      %s270 = scalar_select %p269, %s18, 1
      %s271 = smul.addr %s270, 8
      %s272 = scalar_lea.vmem %s6, %s271
      %v274 = vld [vmem:[%s259] sm:$0xff]
      %v275 = vld [vmem:[%s259 + $0x8] sm:$0xff]
      %v276 = vld [vmem:[%s259 + $0x10] sm:$0xff]
      %v277 = vld [vmem:[%s259 + $0x18] sm:$0xff]
      %v278 = vld [vmem:[%s259 + $0x20] sm:$0xff]
      %v279 = vld [vmem:[%s259 + $0x28] sm:$0xff]
      %v280 = vld [vmem:[%s259 + $0x30] sm:$0xff]
      %v281 = vld [vmem:[%s259 + $0x38] sm:$0xff]
      %v282 = vld [vmem:[%s1] sm:$0x1]
      %v283 = vlaneseq
      %v284 = vshrl.u32 %v283, 7
      %v285 = vsub.s32 0, %v284
      %v286 = vrot.slane %v282, %v285
      %v287 = vmul.f32 %v274, %v286
      %v288 = vmul.f32 %v275, %v286
      %v289 = vmul.f32 %v276, %v286
      %v290 = vmul.f32 %v277, %v286
      %v291 = vmul.f32 %v278, %v286
      %v292 = vmul.f32 %v279, %v286
      %v293 = vmul.f32 %v280, %v286
      %v294 = vmul.f32 %v281, %v286
      %v295 = vld [vmem:[%s2] sm:$0x1]
      %v296 = vlaneseq
      %v297 = vshrl.u32 %v296, 7
      %v298 = vsub.s32 0, %v297
      %v299 = vrot.slane %v295, %v298
      %v300 = vadd.f32 %v287, %v299
      %v301 = vadd.f32 %v288, %v299
      %v302 = vadd.f32 %v289, %v299
      %v303 = vadd.f32 %v290, %v299
      %v304 = vadd.f32 %v291, %v299
      %v305 = vadd.f32 %v292, %v299
      %v306 = vadd.f32 %v293, %v299
      %v307 = vadd.f32 %v294, %v299
      %v308 = vmax.f32 %v300, 0.0
      %v309 = vmax.f32 %v301, 0.0
      %v310 = vmax.f32 %v302, 0.0
      %v311 = vmax.f32 %v303, 0.0
      %v312 = vmax.f32 %v304, 0.0
      %v313 = vmax.f32 %v305, 0.0
      %v314 = vmax.f32 %v306, 0.0
      %v315 = vmax.f32 %v307, 0.0
      %316 = vst [vmem:[#allocation2] sm:$0xff] 0.0
      %317 = vst [vmem:[#allocation2 + $0x8] sm:$0x3] 0.0
      %318 = vst [vmem:[#allocation2 + $0x10] sm:$0xff] 0.0
      %319 = vst [vmem:[#allocation2 + $0x18] sm:$0x3] 0.0
      %320 = vst [vmem:[#allocation2 + $0x20] sm:$0xff] 0.0
      %321 = vst [vmem:[#allocation2 + $0x28] sm:$0x3] 0.0
      %322 = vst [vmem:[#allocation2 + $0x30] sm:$0xff] 0.0
      %323 = vst [vmem:[#allocation2 + $0x38] sm:$0x3] 0.0
      %324 = vst [vmem:[#allocation2 + $0x40] sm:$0xff] 0.0
      %325 = vst [vmem:[#allocation2 + $0x48] sm:$0x3] 0.0
      %326 = vst [vmem:[#allocation2 + $0x50] sm:$0xff] 0.0
      %327 = vst [vmem:[#allocation2 + $0x58] sm:$0x3] 0.0
      %328 = vst [vmem:[#allocation2 + $0x60] sm:$0xff] 0.0
      %329 = vst [vmem:[#allocation2 + $0x68] sm:$0x3] 0.0
      %330 = vst [vmem:[#allocation2 + $0x70] sm:$0xff] 0.0
      %331 = vst [vmem:[#allocation2 + $0x78] sm:$0x3] 0.0
      %332 = vst [vmem:[#allocation2 + $0x80] sm:$0xff] 0.0
      %333 = vst [vmem:[#allocation2 + $0x88] sm:$0x3] 0.0
      %334 = vst [vmem:[#allocation2 + $0x90] sm:$0xff] 0.0
      %335 = vst [vmem:[#allocation2 + $0x98] sm:$0x3] 0.0
      %s336 = scalar_lea.vmem [#allocation2], 16
      %337 = vst [vmem:[%s336 + $0x1] sm:$0xff] %v308
      %338 = vst [vmem:[%s336 + $0x11] sm:$0xff] %v309
      %339 = vst [vmem:[%s336 + $0x21] sm:$0xff] %v310
      %340 = vst [vmem:[%s336 + $0x31] sm:$0xff] %v311
      %341 = vst [vmem:[%s336 + $0x41] sm:$0xff] %v312
      %342 = vst [vmem:[%s336 + $0x51] sm:$0xff] %v313
      %343 = vst [vmem:[%s336 + $0x61] sm:$0xff] %v314
      %344 = vst [vmem:[%s336 + $0x71] sm:$0xff] %v315
      %v345 = vld [vmem:[#allocation2] sm:$0xff]
      %v346 = vld [vmem:[#allocation2 + $0x10] sm:$0xff]
      %v347 = vld [vmem:[#allocation2 + $0x20] sm:$0xff]
      %v348 = vld [vmem:[#allocation2 + $0x30] sm:$0xff]
      %v349 = vld [vmem:[#allocation2 + $0x40] sm:$0xff]
      %v350 = vld [vmem:[#allocation2 + $0x50] sm:$0xff]
      %v351 = vld [vmem:[#allocation2 + $0x60] sm:$0xff]
      %v352 = vld [vmem:[#allocation2 + $0x70] sm:$0xff]
      %v353 = vpack.c.bf16 %v346, %v345
      %v354 = vpack.c.bf16 %v348, %v347
      %v355 = vpack.c.bf16 %v350, %v349
      %v356 = vpack.c.bf16 %v352, %v351
      %v357 = vld [vmem:[%s3] sm:$0xf]
      %v358 = vld [vmem:[%s3 + $0x4] sm:$0xf]
      %v359 = vld [vmem:[%s3 + $0x8] sm:$0xf]
      %v360 = vld [vmem:[%s3 + $0xc] sm:$0xf]
      %v361 = vld [vmem:[%s3 + $0x10] sm:$0xf]
      %v362 = vld [vmem:[%s3 + $0x14] sm:$0xf]
      %v363 = vld [vmem:[%s3 + $0x18] sm:$0xf]
      %v364 = vld [vmem:[%s3 + $0x1c] sm:$0xf]
      %v365 = vld [vmem:[%s3 + $0x20] sm:$0xf]
      %v366 = vld [vmem:[%s3 + $0x24] sm:$0xf]
      %v367 = vld [vmem:[%s3 + $0x28] sm:$0xf]
      %v368 = vld [vmem:[%s3 + $0x2c] sm:$0xf]
      %v369 = vld [vmem:[%s3 + $0x30] sm:$0xf]
      %v370 = vld [vmem:[%s3 + $0x34] sm:$0xf]
      %v371 = vld [vmem:[%s3 + $0x38] sm:$0xf]
      %v372 = vld [vmem:[%s3 + $0x3c] sm:$0xf]
      %v373 = vld [vmem:[#allocation2 + $0x1] sm:$0xff]
      %v374 = vld [vmem:[#allocation2 + $0x11] sm:$0xff]
      %v375 = vld [vmem:[#allocation2 + $0x21] sm:$0xff]
      %v376 = vld [vmem:[#allocation2 + $0x31] sm:$0xff]
      %v377 = vld [vmem:[#allocation2 + $0x41] sm:$0xff]
      %v378 = vld [vmem:[#allocation2 + $0x51] sm:$0xff]
      %v379 = vld [vmem:[#allocation2 + $0x61] sm:$0xff]
      %v380 = vld [vmem:[#allocation2 + $0x71] sm:$0xff]
      %v381 = vpack.c.bf16 %v374, %v373
      %v382 = vpack.c.bf16 %v376, %v375
      %v383 = vpack.c.bf16 %v378, %v377
      %v384 = vpack.c.bf16 %v380, %v379
      %s385 = scalar_lea.vmem %s3, 64
      %v386 = vld [vmem:[%s385] sm:$0xf]
      %v387 = vld [vmem:[%s385 + $0x4] sm:$0xf]
      %v388 = vld [vmem:[%s385 + $0x8] sm:$0xf]
      %v389 = vld [vmem:[%s385 + $0xc] sm:$0xf]
      %v390 = vld [vmem:[%s385 + $0x10] sm:$0xf]
      %v391 = vld [vmem:[%s385 + $0x14] sm:$0xf]
      %v392 = vld [vmem:[%s385 + $0x18] sm:$0xf]
      %v393 = vld [vmem:[%s385 + $0x1c] sm:$0xf]
      %v394 = vld [vmem:[%s385 + $0x20] sm:$0xf]
      %v395 = vld [vmem:[%s385 + $0x24] sm:$0xf]
      %v396 = vld [vmem:[%s385 + $0x28] sm:$0xf]
      %v397 = vld [vmem:[%s385 + $0x2c] sm:$0xf]
      %v398 = vld [vmem:[%s385 + $0x30] sm:$0xf]
      %v399 = vld [vmem:[%s385 + $0x34] sm:$0xf]
      %v400 = vld [vmem:[%s385 + $0x38] sm:$0xf]
      %v401 = vld [vmem:[%s385 + $0x3c] sm:$0xf]
      %v418 = vunpack.c.l.b16 %v386
      %v419 = vunpack.c.l.b16 %v387
      %v420 = vunpack.c.l.b16 %v388
      %v421 = vunpack.c.l.b16 %v389
      %v422 = vunpack.c.l.b16 %v390
      %v423 = vunpack.c.l.b16 %v391
      %v424 = vunpack.c.l.b16 %v392
      %v425 = vunpack.c.l.b16 %v393
      %v426 = vunpack.c.l.b16 %v394
      %v427 = vunpack.c.l.b16 %v395
      %v428 = vunpack.c.l.b16 %v396
      %v429 = vunpack.c.l.b16 %v397
      %v430 = vunpack.c.l.b16 %v398
      %v431 = vunpack.c.l.b16 %v399
      %v432 = vunpack.c.l.b16 %v400
      %v433 = vunpack.c.l.b16 %v401
      %v434 = vpack.c.b16 %v419, %v418
      %v435 = vpack.c.b16 %v421, %v420
      %v436 = vpack.c.b16 %v423, %v422
      %v437 = vpack.c.b16 %v425, %v424
      %v438 = vpack.c.b16 %v427, %v426
      %v439 = vpack.c.b16 %v429, %v428
      %v440 = vpack.c.b16 %v431, %v430
      %v441 = vpack.c.b16 %v433, %v432
      %450 = vmatprep.subr.bf16.mxu0 0
      %451 = vmatpush1.bf16.msra.mxu0 %v434
      %452 = vmatprep.subr.bf16.mxu0 0
      %453 = vmatpush1.bf16.msra.mxu0 %v435
      %454 = vmatprep.subr.bf16.mxu0 0
      %455 = vmatpush1.bf16.msra.mxu0 %v436
      %456 = vmatprep.subr.bf16.mxu0 0
      %457 = vmatpush1.bf16.msra.mxu0 %v437
      %458 = vmatprep.subr.bf16.mxu0 0
      %459 = vmatpush1.bf16.msra.mxu0 %v438
      %460 = vmatprep.subr.bf16.mxu0 0
      %461 = vmatpush1.bf16.msra.mxu0 %v439
      %462 = vmatprep.subr.bf16.mxu0 0
      %463 = vmatpush1.bf16.msra.mxu0 %v440
      %464 = vmatprep.subr.bf16.mxu0 0
      %465 = vmatpush1.bf16.msra.mxu0 %v441
      %466 = vmatprep.subr.bf16.mxu0 0
      %467 = vmatpush1.bf16.msra.mxu0 0
      %468 = vmatprep.subr.bf16.mxu0 0
      %469 = vmatpush1.bf16.msra.mxu0 0
      %470 = vmatprep.subr.bf16.mxu0 0
      %471 = vmatpush1.bf16.msra.mxu0 0
      %472 = vmatprep.subr.bf16.mxu0 0
      %473 = vmatpush1.bf16.msra.mxu0 0
      %474 = vmatprep.subr.bf16.mxu0 0
      %475 = vmatpush1.bf16.msra.mxu0 0
      %476 = vmatprep.subr.bf16.mxu0 0
      %477 = vmatpush1.bf16.msra.mxu0 0
      %478 = vmatprep.subr.bf16.mxu0 0
      %479 = vmatpush1.bf16.msra.mxu0 0
      %480 = vmatprep.subr.bf16.mxu0 0
      %481 = vmatpush1.bf16.msra.mxu0 0
      %482 = vmatprep.mubr.bf16.mxu0 0
      %483 = vmatmul.mubr.bf16.gmra.mrb[0].mxu0 %v381
      %v484 = vpop.f32.mrb[0].mxu0
      %v485 = vadd.f32 0.0, %v484
      %v486 = vpop.f32.mrb[0].mxu0
      %v487 = vpop.f32.mrb[0].mxu0
      %v488 = vadd.f32 0.0, %v487
      %v489 = vpop.f32.mrb[0].mxu0
      %490 = vmatprep.mubr.bf16.mxu0 0
      %491 = vmatmul.mubr.bf16.gmra.mrb[0].mxu0 %v382
      %v492 = vpop.f32.mrb[0].mxu0
      %v493 = vadd.f32 0.0, %v492
      %v494 = vpop.f32.mrb[0].mxu0
      %v495 = vpop.f32.mrb[0].mxu0
      %v496 = vadd.f32 0.0, %v495
      %v497 = vpop.f32.mrb[0].mxu0
      %498 = vmatprep.mubr.bf16.mxu0 0
      %499 = vmatmul.mubr.bf16.gmra.mrb[0].mxu0 %v383
      %v500 = vpop.f32.mrb[0].mxu0
      %v501 = vadd.f32 0.0, %v500
      %v502 = vpop.f32.mrb[0].mxu0
      %v503 = vpop.f32.mrb[0].mxu0
      %v504 = vadd.f32 0.0, %v503
      %v505 = vpop.f32.mrb[0].mxu0
      %506 = vmatprep.mubr.bf16.mxu0 0
      %507 = vmatmul.mubr.bf16.gmra.mrb[0].mxu0 %v384
      %v508 = vpop.f32.mrb[0].mxu0
      %v509 = vadd.f32 0.0, %v508
      %v510 = vpop.f32.mrb[0].mxu0
      %v511 = vpop.f32.mrb[0].mxu0
      %v512 = vadd.f32 0.0, %v511
      %v513 = vpop.f32.mrb[0].mxu0
      %514 = vdwg.mxu0
      %v531 = vunpack.c.l.b16 %v357
      %v532 = vunpack.c.l.b16 %v358
      %v533 = vunpack.c.l.b16 %v359
      %v534 = vunpack.c.l.b16 %v360
      %v535 = vunpack.c.l.b16 %v361
      %v536 = vunpack.c.l.b16 %v362
      %v537 = vunpack.c.l.b16 %v363
      %v538 = vunpack.c.l.b16 %v364
      %v539 = vunpack.c.l.b16 %v365
      %v540 = vunpack.c.l.b16 %v366
      %v541 = vunpack.c.l.b16 %v367
      %v542 = vunpack.c.l.b16 %v368
      %v543 = vunpack.c.l.b16 %v369
      %v544 = vunpack.c.l.b16 %v370
      %v545 = vunpack.c.l.b16 %v371
      %v546 = vunpack.c.l.b16 %v372
      %v547 = vpack.c.b16 %v532, %v531
      %v548 = vpack.c.b16 %v534, %v533
      %v549 = vpack.c.b16 %v536, %v535
      %v550 = vpack.c.b16 %v538, %v537
      %v551 = vpack.c.b16 %v540, %v539
      %v552 = vpack.c.b16 %v542, %v541
      %v553 = vpack.c.b16 %v544, %v543
      %v554 = vpack.c.b16 %v546, %v545
      %563 = vmatprep.subr.bf16.mxu0 0
      %564 = vmatpush1.bf16.msra.mxu0 %v547
      %565 = vmatprep.subr.bf16.mxu0 0
      %566 = vmatpush1.bf16.msra.mxu0 %v548
      %567 = vmatprep.subr.bf16.mxu0 0
      %568 = vmatpush1.bf16.msra.mxu0 %v549
      %569 = vmatprep.subr.bf16.mxu0 0
      %570 = vmatpush1.bf16.msra.mxu0 %v550
      %571 = vmatprep.subr.bf16.mxu0 0
      %572 = vmatpush1.bf16.msra.mxu0 %v551
      %573 = vmatprep.subr.bf16.mxu0 0
      %574 = vmatpush1.bf16.msra.mxu0 %v552
      %575 = vmatprep.subr.bf16.mxu0 0
      %576 = vmatpush1.bf16.msra.mxu0 %v553
      %577 = vmatprep.subr.bf16.mxu0 0
      %578 = vmatpush1.bf16.msra.mxu0 %v554
      %579 = vmatprep.subr.bf16.mxu0 0
      %580 = vmatpush1.bf16.msra.mxu0 0
      %581 = vmatprep.subr.bf16.mxu0 0
      %582 = vmatpush1.bf16.msra.mxu0 0
      %583 = vmatprep.subr.bf16.mxu0 0
      %584 = vmatpush1.bf16.msra.mxu0 0
      %585 = vmatprep.subr.bf16.mxu0 0
      %586 = vmatpush1.bf16.msra.mxu0 0
      %587 = vmatprep.subr.bf16.mxu0 0
      %588 = vmatpush1.bf16.msra.mxu0 0
      %589 = vmatprep.subr.bf16.mxu0 0
      %590 = vmatpush1.bf16.msra.mxu0 0
      %591 = vmatprep.subr.bf16.mxu0 0
      %592 = vmatpush1.bf16.msra.mxu0 0
      %593 = vmatprep.subr.bf16.mxu0 0
      %594 = vmatpush1.bf16.msra.mxu0 0
      %595 = vmatprep.mubr.bf16.mxu0 0
      %596 = vmatmul.mubr.bf16.gmra.mrb[0].mxu0 %v353
      %v597 = vpop.f32.mrb[0].mxu0
      %v598 = vadd.f32 %v485, %v597
      %v599 = vpop.f32.mrb[0].mxu0
      %v600 = vpop.f32.mrb[0].mxu0
      %v601 = vadd.f32 %v488, %v600
      %v602 = vpop.f32.mrb[0].mxu0
      %603 = vmatprep.mubr.bf16.mxu0 0
      %604 = vmatmul.mubr.bf16.gmra.mrb[0].mxu0 %v354
      %v605 = vpop.f32.mrb[0].mxu0
      %v606 = vadd.f32 %v493, %v605
      %v607 = vpop.f32.mrb[0].mxu0
      %v608 = vpop.f32.mrb[0].mxu0
      %v609 = vadd.f32 %v496, %v608
      %v610 = vpop.f32.mrb[0].mxu0
      %611 = vmatprep.mubr.bf16.mxu0 0
      %612 = vmatmul.mubr.bf16.gmra.mrb[0].mxu0 %v355
      %v613 = vpop.f32.mrb[0].mxu0
      %v614 = vadd.f32 %v501, %v613
      %v615 = vpop.f32.mrb[0].mxu0
      %v616 = vpop.f32.mrb[0].mxu0
      %v617 = vadd.f32 %v504, %v616
      %v618 = vpop.f32.mrb[0].mxu0
      %619 = vmatprep.mubr.bf16.mxu0 0
      %620 = vmatmul.mubr.bf16.gmra.mrb[0].mxu0 %v356
      %v621 = vpop.f32.mrb[0].mxu0
      %v622 = vadd.f32 %v509, %v621
      %v623 = vpop.f32.mrb[0].mxu0
      %v624 = vpop.f32.mrb[0].mxu0
      %v625 = vadd.f32 %v512, %v624
      %v626 = vpop.f32.mrb[0].mxu0
      %627 = vdwg.mxu0
      %v628 = vld [vmem:[#allocation2 + $0x2] sm:$0xff]
      %v629 = vld [vmem:[#allocation2 + $0x12] sm:$0xff]
      %v630 = vld [vmem:[#allocation2 + $0x22] sm:$0xff]
      %v631 = vld [vmem:[#allocation2 + $0x32] sm:$0xff]
      %v632 = vld [vmem:[#allocation2 + $0x42] sm:$0xff]
      %v633 = vld [vmem:[#allocation2 + $0x52] sm:$0xff]
      %v634 = vld [vmem:[#allocation2 + $0x62] sm:$0xff]
      %v635 = vld [vmem:[#allocation2 + $0x72] sm:$0xff]
      %v636 = vpack.c.bf16 %v629, %v628
      %v637 = vpack.c.bf16 %v631, %v630
      %v638 = vpack.c.bf16 %v633, %v632
      %v639 = vpack.c.bf16 %v635, %v634
      %s640 = scalar_lea.vmem %s3, 128
      %v641 = vld [vmem:[%s640] sm:$0xf]
      %v642 = vld [vmem:[%s640 + $0x4] sm:$0xf]
      %v643 = vld [vmem:[%s640 + $0x8] sm:$0xf]
      %v644 = vld [vmem:[%s640 + $0xc] sm:$0xf]
      %v645 = vld [vmem:[%s640 + $0x10] sm:$0xf]
      %v646 = vld [vmem:[%s640 + $0x14] sm:$0xf]
      %v647 = vld [vmem:[%s640 + $0x18] sm:$0xf]
      %v648 = vld [vmem:[%s640 + $0x1c] sm:$0xf]
      %v649 = vld [vmem:[%s640 + $0x20] sm:$0xf]
      %v650 = vld [vmem:[%s640 + $0x24] sm:$0xf]
      %v651 = vld [vmem:[%s640 + $0x28] sm:$0xf]
      %v652 = vld [vmem:[%s640 + $0x2c] sm:$0xf]
      %v653 = vld [vmem:[%s640 + $0x30] sm:$0xf]
      %v654 = vld [vmem:[%s640 + $0x34] sm:$0xf]
      %v655 = vld [vmem:[%s640 + $0x38] sm:$0xf]
      %v656 = vld [vmem:[%s640 + $0x3c] sm:$0xf]
      %v673 = vunpack.c.l.b16 %v641
      %v674 = vunpack.c.l.b16 %v642
      %v675 = vunpack.c.l.b16 %v643
      %v676 = vunpack.c.l.b16 %v644
      %v677 = vunpack.c.l.b16 %v645
      %v678 = vunpack.c.l.b16 %v646
      %v679 = vunpack.c.l.b16 %v647
      %v680 = vunpack.c.l.b16 %v648
      %v681 = vunpack.c.l.b16 %v649
      %v682 = vunpack.c.l.b16 %v650
      %v683 = vunpack.c.l.b16 %v651
      %v684 = vunpack.c.l.b16 %v652
      %v685 = vunpack.c.l.b16 %v653
      %v686 = vunpack.c.l.b16 %v654
      %v687 = vunpack.c.l.b16 %v655
      %v688 = vunpack.c.l.b16 %v656
      %v689 = vpack.c.b16 %v674, %v673
      %v690 = vpack.c.b16 %v676, %v675
      %v691 = vpack.c.b16 %v678, %v677
      %v692 = vpack.c.b16 %v680, %v679
      %v693 = vpack.c.b16 %v682, %v681
      %v694 = vpack.c.b16 %v684, %v683
      %v695 = vpack.c.b16 %v686, %v685
      %v696 = vpack.c.b16 %v688, %v687
      %705 = vmatprep.subr.bf16.mxu0 0
      %706 = vmatpush1.bf16.msra.mxu0 %v689
      %707 = vmatprep.subr.bf16.mxu0 0
      %708 = vmatpush1.bf16.msra.mxu0 %v690
      %709 = vmatprep.subr.bf16.mxu0 0
      %710 = vmatpush1.bf16.msra.mxu0 %v691
      %711 = vmatprep.subr.bf16.mxu0 0
      %712 = vmatpush1.bf16.msra.mxu0 %v692
      %713 = vmatprep.subr.bf16.mxu0 0
      %714 = vmatpush1.bf16.msra.mxu0 %v693
      %715 = vmatprep.subr.bf16.mxu0 0
      %716 = vmatpush1.bf16.msra.mxu0 %v694
      %717 = vmatprep.subr.bf16.mxu0 0
      %718 = vmatpush1.bf16.msra.mxu0 %v695
      %719 = vmatprep.subr.bf16.mxu0 0
      %720 = vmatpush1.bf16.msra.mxu0 %v696
      %721 = vmatprep.subr.bf16.mxu0 0
      %722 = vmatpush1.bf16.msra.mxu0 0
      %723 = vmatprep.subr.bf16.mxu0 0
      %724 = vmatpush1.bf16.msra.mxu0 0
      %725 = vmatprep.subr.bf16.mxu0 0
      %726 = vmatpush1.bf16.msra.mxu0 0
      %727 = vmatprep.subr.bf16.mxu0 0
      %728 = vmatpush1.bf16.msra.mxu0 0
      %729 = vmatprep.subr.bf16.mxu0 0
      %730 = vmatpush1.bf16.msra.mxu0 0
      %731 = vmatprep.subr.bf16.mxu0 0
      %732 = vmatpush1.bf16.msra.mxu0 0
      %733 = vmatprep.subr.bf16.mxu0 0
      %734 = vmatpush1.bf16.msra.mxu0 0
      %735 = vmatprep.subr.bf16.mxu0 0
      %736 = vmatpush1.bf16.msra.mxu0 0
      %737 = vmatprep.mubr.bf16.mxu0 0
      %738 = vmatmul.mubr.bf16.gmra.mrb[0].mxu0 %v636
      %v739 = vpop.f32.mrb[0].mxu0
      %v740 = vadd.f32 0.0, %v739
      %v741 = vpop.f32.mrb[0].mxu0
      %v742 = vpop.f32.mrb[0].mxu0
      %v743 = vadd.f32 0.0, %v742
      %v744 = vpop.f32.mrb[0].mxu0
      %745 = vmatprep.mubr.bf16.mxu0 0
      %746 = vmatmul.mubr.bf16.gmra.mrb[0].mxu0 %v637
      %v747 = vpop.f32.mrb[0].mxu0
      %v748 = vadd.f32 0.0, %v747
      %v749 = vpop.f32.mrb[0].mxu0
      %v750 = vpop.f32.mrb[0].mxu0
      %v751 = vadd.f32 0.0, %v750
      %v752 = vpop.f32.mrb[0].mxu0
      %753 = vmatprep.mubr.bf16.mxu0 0
      %754 = vmatmul.mubr.bf16.gmra.mrb[0].mxu0 %v638
      %v755 = vpop.f32.mrb[0].mxu0
      %v756 = vadd.f32 0.0, %v755
      %v757 = vpop.f32.mrb[0].mxu0
      %v758 = vpop.f32.mrb[0].mxu0
      %v759 = vadd.f32 0.0, %v758
      %v760 = vpop.f32.mrb[0].mxu0
      %761 = vmatprep.mubr.bf16.mxu0 0
      %762 = vmatmul.mubr.bf16.gmra.mrb[0].mxu0 %v639
      %v763 = vpop.f32.mrb[0].mxu0
      %v764 = vadd.f32 0.0, %v763
      %v765 = vpop.f32.mrb[0].mxu0
      %v766 = vpop.f32.mrb[0].mxu0
      %v767 = vadd.f32 0.0, %v766
      %v768 = vpop.f32.mrb[0].mxu0
      %769 = vdwg.mxu0
      %v770 = vadd.f32 %v598, %v740
      %v771 = vadd.f32 %v601, %v743
      %v772 = vadd.f32 %v606, %v748
      %v773 = vadd.f32 %v609, %v751
      %v774 = vadd.f32 %v614, %v756
      %v775 = vadd.f32 %v617, %v759
      %v776 = vadd.f32 %v622, %v764
      %v777 = vadd.f32 %v625, %v767
      %v778 = vld [vmem:[%s336] sm:$0xff]
      %v779 = vld [vmem:[%s336 + $0x10] sm:$0xff]
      %v780 = vld [vmem:[%s336 + $0x20] sm:$0xff]
      %v781 = vld [vmem:[%s336 + $0x30] sm:$0xff]
      %v782 = vld [vmem:[%s336 + $0x40] sm:$0xff]
      %v783 = vld [vmem:[%s336 + $0x50] sm:$0xff]
      %v784 = vld [vmem:[%s336 + $0x60] sm:$0xff]
      %v785 = vld [vmem:[%s336 + $0x70] sm:$0xff]
      %v786 = vpack.c.bf16 %v779, %v778
      %v787 = vpack.c.bf16 %v781, %v780
      %v788 = vpack.c.bf16 %v783, %v782
      %v789 = vpack.c.bf16 %v785, %v784
      %s790 = scalar_lea.vmem %s3, 192
      %v791 = vld [vmem:[%s790] sm:$0xf]
      %v792 = vld [vmem:[%s790 + $0x4] sm:$0xf]
      %v793 = vld [vmem:[%s790 + $0x8] sm:$0xf]
      %v794 = vld [vmem:[%s790 + $0xc] sm:$0xf]
      %v795 = vld [vmem:[%s790 + $0x10] sm:$0xf]
      %v796 = vld [vmem:[%s790 + $0x14] sm:$0xf]
      %v797 = vld [vmem:[%s790 + $0x18] sm:$0xf]
      %v798 = vld [vmem:[%s790 + $0x1c] sm:$0xf]
      %v799 = vld [vmem:[%s790 + $0x20] sm:$0xf]
      %v800 = vld [vmem:[%s790 + $0x24] sm:$0xf]
      %v801 = vld [vmem:[%s790 + $0x28] sm:$0xf]
      %v802 = vld [vmem:[%s790 + $0x2c] sm:$0xf]
      %v803 = vld [vmem:[%s790 + $0x30] sm:$0xf]
      %v804 = vld [vmem:[%s790 + $0x34] sm:$0xf]
      %v805 = vld [vmem:[%s790 + $0x38] sm:$0xf]
      %v806 = vld [vmem:[%s790 + $0x3c] sm:$0xf]
      %v823 = vunpack.c.l.b16 %v791
      %v824 = vunpack.c.l.b16 %v792
      %v825 = vunpack.c.l.b16 %v793
      %v826 = vunpack.c.l.b16 %v794
      %v827 = vunpack.c.l.b16 %v795
      %v828 = vunpack.c.l.b16 %v796
      %v829 = vunpack.c.l.b16 %v797
      %v830 = vunpack.c.l.b16 %v798
      %v831 = vunpack.c.l.b16 %v799
      %v832 = vunpack.c.l.b16 %v800
      %v833 = vunpack.c.l.b16 %v801
      %v834 = vunpack.c.l.b16 %v802
      %v835 = vunpack.c.l.b16 %v803
      %v836 = vunpack.c.l.b16 %v804
      %v837 = vunpack.c.l.b16 %v805
      %v838 = vunpack.c.l.b16 %v806
      %v839 = vpack.c.b16 %v824, %v823
      %v840 = vpack.c.b16 %v826, %v825
      %v841 = vpack.c.b16 %v828, %v827
      %v842 = vpack.c.b16 %v830, %v829
      %v843 = vpack.c.b16 %v832, %v831
      %v844 = vpack.c.b16 %v834, %v833
      %v845 = vpack.c.b16 %v836, %v835
      %v846 = vpack.c.b16 %v838, %v837
      %855 = vmatprep.subr.bf16.mxu0 0
      %856 = vmatpush1.bf16.msra.mxu0 %v839
      %857 = vmatprep.subr.bf16.mxu0 0
      %858 = vmatpush1.bf16.msra.mxu0 %v840
      %859 = vmatprep.subr.bf16.mxu0 0
      %860 = vmatpush1.bf16.msra.mxu0 %v841
      %861 = vmatprep.subr.bf16.mxu0 0
      %862 = vmatpush1.bf16.msra.mxu0 %v842
      %863 = vmatprep.subr.bf16.mxu0 0
      %864 = vmatpush1.bf16.msra.mxu0 %v843
      %865 = vmatprep.subr.bf16.mxu0 0
      %866 = vmatpush1.bf16.msra.mxu0 %v844
      %867 = vmatprep.subr.bf16.mxu0 0
      %868 = vmatpush1.bf16.msra.mxu0 %v845
      %869 = vmatprep.subr.bf16.mxu0 0
      %870 = vmatpush1.bf16.msra.mxu0 %v846
      %871 = vmatprep.subr.bf16.mxu0 0
      %872 = vmatpush1.bf16.msra.mxu0 0
      %873 = vmatprep.subr.bf16.mxu0 0
      %874 = vmatpush1.bf16.msra.mxu0 0
      %875 = vmatprep.subr.bf16.mxu0 0
      %876 = vmatpush1.bf16.msra.mxu0 0
      %877 = vmatprep.subr.bf16.mxu0 0
      %878 = vmatpush1.bf16.msra.mxu0 0
      %879 = vmatprep.subr.bf16.mxu0 0
      %880 = vmatpush1.bf16.msra.mxu0 0
      %881 = vmatprep.subr.bf16.mxu0 0
      %882 = vmatpush1.bf16.msra.mxu0 0
      %883 = vmatprep.subr.bf16.mxu0 0
      %884 = vmatpush1.bf16.msra.mxu0 0
      %885 = vmatprep.subr.bf16.mxu0 0
      %886 = vmatpush1.bf16.msra.mxu0 0
      %887 = vmatprep.mubr.bf16.mxu0 0
      %888 = vmatmul.mubr.bf16.gmra.mrb[0].mxu0 %v786
      %v889 = vpop.f32.mrb[0].mxu0
      %v890 = vadd.f32 0.0, %v889
      %v891 = vpop.f32.mrb[0].mxu0
      %v892 = vpop.f32.mrb[0].mxu0
      %v893 = vadd.f32 0.0, %v892
      %v894 = vpop.f32.mrb[0].mxu0
      %895 = vmatprep.mubr.bf16.mxu0 0
      %896 = vmatmul.mubr.bf16.gmra.mrb[0].mxu0 %v787
      %v897 = vpop.f32.mrb[0].mxu0
      %v898 = vadd.f32 0.0, %v897
      %v899 = vpop.f32.mrb[0].mxu0
      %v900 = vpop.f32.mrb[0].mxu0
      %v901 = vadd.f32 0.0, %v900
      %v902 = vpop.f32.mrb[0].mxu0
      %903 = vmatprep.mubr.bf16.mxu0 0
      %904 = vmatmul.mubr.bf16.gmra.mrb[0].mxu0 %v788
      %v905 = vpop.f32.mrb[0].mxu0
      %v906 = vadd.f32 0.0, %v905
      %v907 = vpop.f32.mrb[0].mxu0
      %v908 = vpop.f32.mrb[0].mxu0
      %v909 = vadd.f32 0.0, %v908
      %v910 = vpop.f32.mrb[0].mxu0
      %911 = vmatprep.mubr.bf16.mxu0 0
      %912 = vmatmul.mubr.bf16.gmra.mrb[0].mxu0 %v789
      %v913 = vpop.f32.mrb[0].mxu0
      %v914 = vadd.f32 0.0, %v913
      %v915 = vpop.f32.mrb[0].mxu0
      %v916 = vpop.f32.mrb[0].mxu0
      %v917 = vadd.f32 0.0, %v916
      %v918 = vpop.f32.mrb[0].mxu0
      %919 = vdwg.mxu0
      %v920 = vadd.f32 %v770, %v890
      %v921 = vadd.f32 %v771, %v893
      %v922 = vadd.f32 %v772, %v898
      %v923 = vadd.f32 %v773, %v901
      %v924 = vadd.f32 %v774, %v906
      %v925 = vadd.f32 %v775, %v909
      %v926 = vadd.f32 %v776, %v914
      %v927 = vadd.f32 %v777, %v917
      %v928 = vld [vmem:[%s336 + $0x1] sm:$0xff]
      %v929 = vld [vmem:[%s336 + $0x11] sm:$0xff]
      %v930 = vld [vmem:[%s336 + $0x21] sm:$0xff]
      %v931 = vld [vmem:[%s336 + $0x31] sm:$0xff]
      %v932 = vld [vmem:[%s336 + $0x41] sm:$0xff]
      %v933 = vld [vmem:[%s336 + $0x51] sm:$0xff]
      %v934 = vld [vmem:[%s336 + $0x61] sm:$0xff]
      %v935 = vld [vmem:[%s336 + $0x71] sm:$0xff]
      %v936 = vpack.c.bf16 %v929, %v928
      %v937 = vpack.c.bf16 %v931, %v930
      %v938 = vpack.c.bf16 %v933, %v932
      %v939 = vpack.c.bf16 %v935, %v934
      %s940 = scalar_lea.vmem %s3, 256
      %v941 = vld [vmem:[%s940] sm:$0xf]
      %v942 = vld [vmem:[%s940 + $0x4] sm:$0xf]
      %v943 = vld [vmem:[%s940 + $0x8] sm:$0xf]
      %v944 = vld [vmem:[%s940 + $0xc] sm:$0xf]
      %v945 = vld [vmem:[%s940 + $0x10] sm:$0xf]
      %v946 = vld [vmem:[%s940 + $0x14] sm:$0xf]
      %v947 = vld [vmem:[%s940 + $0x18] sm:$0xf]
      %v948 = vld [vmem:[%s940 + $0x1c] sm:$0xf]
      %v949 = vld [vmem:[%s940 + $0x20] sm:$0xf]
      %v950 = vld [vmem:[%s940 + $0x24] sm:$0xf]
      %v951 = vld [vmem:[%s940 + $0x28] sm:$0xf]
      %v952 = vld [vmem:[%s940 + $0x2c] sm:$0xf]
      %v953 = vld [vmem:[%s940 + $0x30] sm:$0xf]
      %v954 = vld [vmem:[%s940 + $0x34] sm:$0xf]
      %v955 = vld [vmem:[%s940 + $0x38] sm:$0xf]
      %v956 = vld [vmem:[%s940 + $0x3c] sm:$0xf]
      %v973 = vunpack.c.l.b16 %v941
      %v974 = vunpack.c.l.b16 %v942
      %v975 = vunpack.c.l.b16 %v943
      %v976 = vunpack.c.l.b16 %v944
      %v977 = vunpack.c.l.b16 %v945
      %v978 = vunpack.c.l.b16 %v946
      %v979 = vunpack.c.l.b16 %v947
      %v980 = vunpack.c.l.b16 %v948
      %v981 = vunpack.c.l.b16 %v949
      %v982 = vunpack.c.l.b16 %v950
      %v983 = vunpack.c.l.b16 %v951
      %v984 = vunpack.c.l.b16 %v952
      %v985 = vunpack.c.l.b16 %v953
      %v986 = vunpack.c.l.b16 %v954
      %v987 = vunpack.c.l.b16 %v955
      %v988 = vunpack.c.l.b16 %v956
      %v989 = vpack.c.b16 %v974, %v973
      %v990 = vpack.c.b16 %v976, %v975
      %v991 = vpack.c.b16 %v978, %v977
      %v992 = vpack.c.b16 %v980, %v979
      %v993 = vpack.c.b16 %v982, %v981
      %v994 = vpack.c.b16 %v984, %v983
      %v995 = vpack.c.b16 %v986, %v985
      %v996 = vpack.c.b16 %v988, %v987
      %1005 = vmatprep.subr.bf16.mxu0 0
      %1006 = vmatpush1.bf16.msra.mxu0 %v989
      %1007 = vmatprep.subr.bf16.mxu0 0
      %1008 = vmatpush1.bf16.msra.mxu0 %v990
      %1009 = vmatprep.subr.bf16.mxu0 0
      %1010 = vmatpush1.bf16.msra.mxu0 %v991
      %1011 = vmatprep.subr.bf16.mxu0 0
      %1012 = vmatpush1.bf16.msra.mxu0 %v992
      %1013 = vmatprep.subr.bf16.mxu0 0
      %1014 = vmatpush1.bf16.msra.mxu0 %v993
      %1015 = vmatprep.subr.bf16.mxu0 0
      %1016 = vmatpush1.bf16.msra.mxu0 %v994
      %1017 = vmatprep.subr.bf16.mxu0 0
      %1018 = vmatpush1.bf16.msra.mxu0 %v995
      %1019 = vmatprep.subr.bf16.mxu0 0
      %1020 = vmatpush1.bf16.msra.mxu0 %v996
      %1021 = vmatprep.subr.bf16.mxu0 0
      %1022 = vmatpush1.bf16.msra.mxu0 0
      %1023 = vmatprep.subr.bf16.mxu0 0
      %1024 = vmatpush1.bf16.msra.mxu0 0
      %1025 = vmatprep.subr.bf16.mxu0 0
      %1026 = vmatpush1.bf16.msra.mxu0 0
      %1027 = vmatprep.subr.bf16.mxu0 0
      %1028 = vmatpush1.bf16.msra.mxu0 0
      %1029 = vmatprep.subr.bf16.mxu0 0
      %1030 = vmatpush1.bf16.msra.mxu0 0
      %1031 = vmatprep.subr.bf16.mxu0 0
      %1032 = vmatpush1.bf16.msra.mxu0 0
      %1033 = vmatprep.subr.bf16.mxu0 0
      %1034 = vmatpush1.bf16.msra.mxu0 0
      %1035 = vmatprep.subr.bf16.mxu0 0
      %1036 = vmatpush1.bf16.msra.mxu0 0
      %1037 = vmatprep.mubr.bf16.mxu0 0
      %1038 = vmatmul.mubr.bf16.gmra.mrb[0].mxu0 %v936
      %v1039 = vpop.f32.mrb[0].mxu0
      %v1040 = vadd.f32 0.0, %v1039
      %v1041 = vpop.f32.mrb[0].mxu0
      %v1042 = vpop.f32.mrb[0].mxu0
      %v1043 = vadd.f32 0.0, %v1042
      %v1044 = vpop.f32.mrb[0].mxu0
      %1045 = vmatprep.mubr.bf16.mxu0 0
      %1046 = vmatmul.mubr.bf16.gmra.mrb[0].mxu0 %v937
      %v1047 = vpop.f32.mrb[0].mxu0
      %v1048 = vadd.f32 0.0, %v1047
      %v1049 = vpop.f32.mrb[0].mxu0
      %v1050 = vpop.f32.mrb[0].mxu0
      %v1051 = vadd.f32 0.0, %v1050
      %v1052 = vpop.f32.mrb[0].mxu0
      %1053 = vmatprep.mubr.bf16.mxu0 0
      %1054 = vmatmul.mubr.bf16.gmra.mrb[0].mxu0 %v938
      %v1055 = vpop.f32.mrb[0].mxu0
      %v1056 = vadd.f32 0.0, %v1055
      %v1057 = vpop.f32.mrb[0].mxu0
      %v1058 = vpop.f32.mrb[0].mxu0
      %v1059 = vadd.f32 0.0, %v1058
      %v1060 = vpop.f32.mrb[0].mxu0
      %1061 = vmatprep.mubr.bf16.mxu0 0
      %1062 = vmatmul.mubr.bf16.gmra.mrb[0].mxu0 %v939
      %v1063 = vpop.f32.mrb[0].mxu0
      %v1064 = vadd.f32 0.0, %v1063
      %v1065 = vpop.f32.mrb[0].mxu0
      %v1066 = vpop.f32.mrb[0].mxu0
      %v1067 = vadd.f32 0.0, %v1066
      %v1068 = vpop.f32.mrb[0].mxu0
      %1069 = vdwg.mxu0
      %v1070 = vadd.f32 %v920, %v1040
      %v1071 = vadd.f32 %v921, %v1043
      %v1072 = vadd.f32 %v922, %v1048
      %v1073 = vadd.f32 %v923, %v1051
      %v1074 = vadd.f32 %v924, %v1056
      %v1075 = vadd.f32 %v925, %v1059
      %v1076 = vadd.f32 %v926, %v1064
      %v1077 = vadd.f32 %v927, %v1067
      %v1078 = vld [vmem:[%s336 + $0x2] sm:$0xff]
      %v1079 = vld [vmem:[%s336 + $0x12] sm:$0xff]
      %v1080 = vld [vmem:[%s336 + $0x22] sm:$0xff]
      %v1081 = vld [vmem:[%s336 + $0x32] sm:$0xff]
      %v1082 = vld [vmem:[%s336 + $0x42] sm:$0xff]
      %v1083 = vld [vmem:[%s336 + $0x52] sm:$0xff]
      %v1084 = vld [vmem:[%s336 + $0x62] sm:$0xff]
      %v1085 = vld [vmem:[%s336 + $0x72] sm:$0xff]
      %v1086 = vpack.c.bf16 %v1079, %v1078
      %v1087 = vpack.c.bf16 %v1081, %v1080
      %v1088 = vpack.c.bf16 %v1083, %v1082
      %v1089 = vpack.c.bf16 %v1085, %v1084
      %s1090 = scalar_lea.vmem %s3, 320
      %v1091 = vld [vmem:[%s1090] sm:$0xf]
      %v1092 = vld [vmem:[%s1090 + $0x4] sm:$0xf]
      %v1093 = vld [vmem:[%s1090 + $0x8] sm:$0xf]
      %v1094 = vld [vmem:[%s1090 + $0xc] sm:$0xf]
      %v1095 = vld [vmem:[%s1090 + $0x10] sm:$0xf]
      %v1096 = vld [vmem:[%s1090 + $0x14] sm:$0xf]
      %v1097 = vld [vmem:[%s1090 + $0x18] sm:$0xf]
      %v1098 = vld [vmem:[%s1090 + $0x1c] sm:$0xf]
      %v1099 = vld [vmem:[%s1090 + $0x20] sm:$0xf]
      %v1100 = vld [vmem:[%s1090 + $0x24] sm:$0xf]
      %v1101 = vld [vmem:[%s1090 + $0x28] sm:$0xf]
      %v1102 = vld [vmem:[%s1090 + $0x2c] sm:$0xf]
      %v1103 = vld [vmem:[%s1090 + $0x30] sm:$0xf]
      %v1104 = vld [vmem:[%s1090 + $0x34] sm:$0xf]
      %v1105 = vld [vmem:[%s1090 + $0x38] sm:$0xf]
      %v1106 = vld [vmem:[%s1090 + $0x3c] sm:$0xf]
      %v1123 = vunpack.c.l.b16 %v1091
      %v1124 = vunpack.c.l.b16 %v1092
      %v1125 = vunpack.c.l.b16 %v1093
      %v1126 = vunpack.c.l.b16 %v1094
      %v1127 = vunpack.c.l.b16 %v1095
      %v1128 = vunpack.c.l.b16 %v1096
      %v1129 = vunpack.c.l.b16 %v1097
      %v1130 = vunpack.c.l.b16 %v1098
      %v1131 = vunpack.c.l.b16 %v1099
      %v1132 = vunpack.c.l.b16 %v1100
      %v1133 = vunpack.c.l.b16 %v1101
      %v1134 = vunpack.c.l.b16 %v1102
      %v1135 = vunpack.c.l.b16 %v1103
      %v1136 = vunpack.c.l.b16 %v1104
      %v1137 = vunpack.c.l.b16 %v1105
      %v1138 = vunpack.c.l.b16 %v1106
      %v1139 = vpack.c.b16 %v1124, %v1123
      %v1140 = vpack.c.b16 %v1126, %v1125
      %v1141 = vpack.c.b16 %v1128, %v1127
      %v1142 = vpack.c.b16 %v1130, %v1129
      %v1143 = vpack.c.b16 %v1132, %v1131
      %v1144 = vpack.c.b16 %v1134, %v1133
      %v1145 = vpack.c.b16 %v1136, %v1135
      %v1146 = vpack.c.b16 %v1138, %v1137
      %1155 = vmatprep.subr.bf16.mxu0 0
      %1156 = vmatpush1.bf16.msra.mxu0 %v1139
      %1157 = vmatprep.subr.bf16.mxu0 0
      %1158 = vmatpush1.bf16.msra.mxu0 %v1140
      %1159 = vmatprep.subr.bf16.mxu0 0
      %1160 = vmatpush1.bf16.msra.mxu0 %v1141
      %1161 = vmatprep.subr.bf16.mxu0 0
      %1162 = vmatpush1.bf16.msra.mxu0 %v1142
      %1163 = vmatprep.subr.bf16.mxu0 0
      %1164 = vmatpush1.bf16.msra.mxu0 %v1143
      %1165 = vmatprep.subr.bf16.mxu0 0
      %1166 = vmatpush1.bf16.msra.mxu0 %v1144
      %1167 = vmatprep.subr.bf16.mxu0 0
      %1168 = vmatpush1.bf16.msra.mxu0 %v1145
      %1169 = vmatprep.subr.bf16.mxu0 0
      %1170 = vmatpush1.bf16.msra.mxu0 %v1146
      %1171 = vmatprep.subr.bf16.mxu0 0
      %1172 = vmatpush1.bf16.msra.mxu0 0
      %1173 = vmatprep.subr.bf16.mxu0 0
      %1174 = vmatpush1.bf16.msra.mxu0 0
      %1175 = vmatprep.subr.bf16.mxu0 0
      %1176 = vmatpush1.bf16.msra.mxu0 0
      %1177 = vmatprep.subr.bf16.mxu0 0
      %1178 = vmatpush1.bf16.msra.mxu0 0
      %1179 = vmatprep.subr.bf16.mxu0 0
      %1180 = vmatpush1.bf16.msra.mxu0 0
      %1181 = vmatprep.subr.bf16.mxu0 0
      %1182 = vmatpush1.bf16.msra.mxu0 0
      %1183 = vmatprep.subr.bf16.mxu0 0
      %1184 = vmatpush1.bf16.msra.mxu0 0
      %1185 = vmatprep.subr.bf16.mxu0 0
      %1186 = vmatpush1.bf16.msra.mxu0 0
      %1187 = vmatprep.mubr.bf16.mxu0 0
      %1188 = vmatmul.mubr.bf16.gmra.mrb[0].mxu0 %v1086
      %v1189 = vpop.f32.mrb[0].mxu0
      %v1190 = vadd.f32 0.0, %v1189
      %v1191 = vpop.f32.mrb[0].mxu0
      %v1192 = vpop.f32.mrb[0].mxu0
      %v1193 = vadd.f32 0.0, %v1192
      %v1194 = vpop.f32.mrb[0].mxu0
      %1195 = vmatprep.mubr.bf16.mxu0 0
      %1196 = vmatmul.mubr.bf16.gmra.mrb[0].mxu0 %v1087
      %v1197 = vpop.f32.mrb[0].mxu0
      %v1198 = vadd.f32 0.0, %v1197
      %v1199 = vpop.f32.mrb[0].mxu0
      %v1200 = vpop.f32.mrb[0].mxu0
      %v1201 = vadd.f32 0.0, %v1200
      %v1202 = vpop.f32.mrb[0].mxu0
      %1203 = vmatprep.mubr.bf16.mxu0 0
      %1204 = vmatmul.mubr.bf16.gmra.mrb[0].mxu0 %v1088
      %v1205 = vpop.f32.mrb[0].mxu0
      %v1206 = vadd.f32 0.0, %v1205
      %v1207 = vpop.f32.mrb[0].mxu0
      %v1208 = vpop.f32.mrb[0].mxu0
      %v1209 = vadd.f32 0.0, %v1208
      %v1210 = vpop.f32.mrb[0].mxu0
      %1211 = vmatprep.mubr.bf16.mxu0 0
      %1212 = vmatmul.mubr.bf16.gmra.mrb[0].mxu0 %v1089
      %v1213 = vpop.f32.mrb[0].mxu0
      %v1214 = vadd.f32 0.0, %v1213
      %v1215 = vpop.f32.mrb[0].mxu0
      %v1216 = vpop.f32.mrb[0].mxu0
      %v1217 = vadd.f32 0.0, %v1216
      %v1218 = vpop.f32.mrb[0].mxu0
      %1219 = vdwg.mxu0
      %v1220 = vadd.f32 %v1070, %v1190
      %v1221 = vadd.f32 %v1071, %v1193
      %v1222 = vadd.f32 %v1072, %v1198
      %v1223 = vadd.f32 %v1073, %v1201
      %v1224 = vadd.f32 %v1074, %v1206
      %v1225 = vadd.f32 %v1075, %v1209
      %v1226 = vadd.f32 %v1076, %v1214
      %v1227 = vadd.f32 %v1077, %v1217
      %s1228 = scalar_lea.vmem [#allocation2], 32
      %v1229 = vld [vmem:[%s1228] sm:$0xff]
      %v1230 = vld [vmem:[%s1228 + $0x10] sm:$0xff]
      %v1231 = vld [vmem:[%s1228 + $0x20] sm:$0xff]
      %v1232 = vld [vmem:[%s1228 + $0x30] sm:$0xff]
      %v1233 = vld [vmem:[%s1228 + $0x40] sm:$0xff]
      %v1234 = vld [vmem:[%s1228 + $0x50] sm:$0xff]
      %v1235 = vld [vmem:[%s1228 + $0x60] sm:$0xff]
      %v1236 = vld [vmem:[%s1228 + $0x70] sm:$0xff]
      %v1237 = vpack.c.bf16 %v1230, %v1229
      %v1238 = vpack.c.bf16 %v1232, %v1231
      %v1239 = vpack.c.bf16 %v1234, %v1233
      %v1240 = vpack.c.bf16 %v1236, %v1235
      %s1241 = scalar_lea.vmem %s3, 384
      %v1242 = vld [vmem:[%s1241] sm:$0xf]
      %v1243 = vld [vmem:[%s1241 + $0x4] sm:$0xf]
      %v1244 = vld [vmem:[%s1241 + $0x8] sm:$0xf]
      %v1245 = vld [vmem:[%s1241 + $0xc] sm:$0xf]
      %v1246 = vld [vmem:[%s1241 + $0x10] sm:$0xf]
      %v1247 = vld [vmem:[%s1241 + $0x14] sm:$0xf]
      %v1248 = vld [vmem:[%s1241 + $0x18] sm:$0xf]
      %v1249 = vld [vmem:[%s1241 + $0x1c] sm:$0xf]
      %v1250 = vld [vmem:[%s1241 + $0x20] sm:$0xf]
      %v1251 = vld [vmem:[%s1241 + $0x24] sm:$0xf]
      %v1252 = vld [vmem:[%s1241 + $0x28] sm:$0xf]
      %v1253 = vld [vmem:[%s1241 + $0x2c] sm:$0xf]
      %v1254 = vld [vmem:[%s1241 + $0x30] sm:$0xf]
      %v1255 = vld [vmem:[%s1241 + $0x34] sm:$0xf]
      %v1256 = vld [vmem:[%s1241 + $0x38] sm:$0xf]
      %v1257 = vld [vmem:[%s1241 + $0x3c] sm:$0xf]
      %v1274 = vunpack.c.l.b16 %v1242
      %v1275 = vunpack.c.l.b16 %v1243
      %v1276 = vunpack.c.l.b16 %v1244
      %v1277 = vunpack.c.l.b16 %v1245
      %v1278 = vunpack.c.l.b16 %v1246
      %v1279 = vunpack.c.l.b16 %v1247
      %v1280 = vunpack.c.l.b16 %v1248
      %v1281 = vunpack.c.l.b16 %v1249
      %v1282 = vunpack.c.l.b16 %v1250
      %v1283 = vunpack.c.l.b16 %v1251
      %v1284 = vunpack.c.l.b16 %v1252
      %v1285 = vunpack.c.l.b16 %v1253
      %v1286 = vunpack.c.l.b16 %v1254
      %v1287 = vunpack.c.l.b16 %v1255
      %v1288 = vunpack.c.l.b16 %v1256
      %v1289 = vunpack.c.l.b16 %v1257
      %v1290 = vpack.c.b16 %v1275, %v1274
      %v1291 = vpack.c.b16 %v1277, %v1276
      %v1292 = vpack.c.b16 %v1279, %v1278
      %v1293 = vpack.c.b16 %v1281, %v1280
      %v1294 = vpack.c.b16 %v1283, %v1282
      %v1295 = vpack.c.b16 %v1285, %v1284
      %v1296 = vpack.c.b16 %v1287, %v1286
      %v1297 = vpack.c.b16 %v1289, %v1288
      %1306 = vmatprep.subr.bf16.mxu0 0
      %1307 = vmatpush1.bf16.msra.mxu0 %v1290
      %1308 = vmatprep.subr.bf16.mxu0 0
      %1309 = vmatpush1.bf16.msra.mxu0 %v1291
      %1310 = vmatprep.subr.bf16.mxu0 0
      %1311 = vmatpush1.bf16.msra.mxu0 %v1292
      %1312 = vmatprep.subr.bf16.mxu0 0
      %1313 = vmatpush1.bf16.msra.mxu0 %v1293
      %1314 = vmatprep.subr.bf16.mxu0 0
      %1315 = vmatpush1.bf16.msra.mxu0 %v1294
      %1316 = vmatprep.subr.bf16.mxu0 0
      %1317 = vmatpush1.bf16.msra.mxu0 %v1295
      %1318 = vmatprep.subr.bf16.mxu0 0
      %1319 = vmatpush1.bf16.msra.mxu0 %v1296
      %1320 = vmatprep.subr.bf16.mxu0 0
      %1321 = vmatpush1.bf16.msra.mxu0 %v1297
      %1322 = vmatprep.subr.bf16.mxu0 0
      %1323 = vmatpush1.bf16.msra.mxu0 0
      %1324 = vmatprep.subr.bf16.mxu0 0
      %1325 = vmatpush1.bf16.msra.mxu0 0
      %1326 = vmatprep.subr.bf16.mxu0 0
      %1327 = vmatpush1.bf16.msra.mxu0 0
      %1328 = vmatprep.subr.bf16.mxu0 0
      %1329 = vmatpush1.bf16.msra.mxu0 0
      %1330 = vmatprep.subr.bf16.mxu0 0
      %1331 = vmatpush1.bf16.msra.mxu0 0
      %1332 = vmatprep.subr.bf16.mxu0 0
      %1333 = vmatpush1.bf16.msra.mxu0 0
      %1334 = vmatprep.subr.bf16.mxu0 0
      %1335 = vmatpush1.bf16.msra.mxu0 0
      %1336 = vmatprep.subr.bf16.mxu0 0
      %1337 = vmatpush1.bf16.msra.mxu0 0
      %1338 = vmatprep.mubr.bf16.mxu0 0
      %1339 = vmatmul.mubr.bf16.gmra.mrb[0].mxu0 %v1237
      %v1340 = vpop.f32.mrb[0].mxu0
      %v1341 = vadd.f32 0.0, %v1340
      %v1342 = vpop.f32.mrb[0].mxu0
      %v1343 = vpop.f32.mrb[0].mxu0
      %v1344 = vadd.f32 0.0, %v1343
      %v1345 = vpop.f32.mrb[0].mxu0
      %1346 = vmatprep.mubr.bf16.mxu0 0
      %1347 = vmatmul.mubr.bf16.gmra.mrb[0].mxu0 %v1238
      %v1348 = vpop.f32.mrb[0].mxu0
      %v1349 = vadd.f32 0.0, %v1348
      %v1350 = vpop.f32.mrb[0].mxu0
      %v1351 = vpop.f32.mrb[0].mxu0
      %v1352 = vadd.f32 0.0, %v1351
      %v1353 = vpop.f32.mrb[0].mxu0
      %1354 = vmatprep.mubr.bf16.mxu0 0
      %1355 = vmatmul.mubr.bf16.gmra.mrb[0].mxu0 %v1239
      %v1356 = vpop.f32.mrb[0].mxu0
      %v1357 = vadd.f32 0.0, %v1356
      %v1358 = vpop.f32.mrb[0].mxu0
      %v1359 = vpop.f32.mrb[0].mxu0
      %v1360 = vadd.f32 0.0, %v1359
      %v1361 = vpop.f32.mrb[0].mxu0
      %1362 = vmatprep.mubr.bf16.mxu0 0
      %1363 = vmatmul.mubr.bf16.gmra.mrb[0].mxu0 %v1240
      %v1364 = vpop.f32.mrb[0].mxu0
      %v1365 = vadd.f32 0.0, %v1364
      %v1366 = vpop.f32.mrb[0].mxu0
      %v1367 = vpop.f32.mrb[0].mxu0
      %v1368 = vadd.f32 0.0, %v1367
      %v1369 = vpop.f32.mrb[0].mxu0
      %1370 = vdwg.mxu0
      %v1371 = vadd.f32 %v1220, %v1341
      %v1372 = vadd.f32 %v1221, %v1344
      %v1373 = vadd.f32 %v1222, %v1349
      %v1374 = vadd.f32 %v1223, %v1352
      %v1375 = vadd.f32 %v1224, %v1357
      %v1376 = vadd.f32 %v1225, %v1360
      %v1377 = vadd.f32 %v1226, %v1365
      %v1378 = vadd.f32 %v1227, %v1368
      %v1379 = vld [vmem:[%s1228 + $0x1] sm:$0xff]
      %v1380 = vld [vmem:[%s1228 + $0x11] sm:$0xff]
      %v1381 = vld [vmem:[%s1228 + $0x21] sm:$0xff]
      %v1382 = vld [vmem:[%s1228 + $0x31] sm:$0xff]
      %v1383 = vld [vmem:[%s1228 + $0x41] sm:$0xff]
      %v1384 = vld [vmem:[%s1228 + $0x51] sm:$0xff]
      %v1385 = vld [vmem:[%s1228 + $0x61] sm:$0xff]
      %v1386 = vld [vmem:[%s1228 + $0x71] sm:$0xff]
      %v1387 = vpack.c.bf16 %v1380, %v1379
      %v1388 = vpack.c.bf16 %v1382, %v1381
      %v1389 = vpack.c.bf16 %v1384, %v1383
      %v1390 = vpack.c.bf16 %v1386, %v1385
      %s1391 = scalar_lea.vmem %s3, 448
      %v1392 = vld [vmem:[%s1391] sm:$0xf]
      %v1393 = vld [vmem:[%s1391 + $0x4] sm:$0xf]
      %v1394 = vld [vmem:[%s1391 + $0x8] sm:$0xf]
      %v1395 = vld [vmem:[%s1391 + $0xc] sm:$0xf]
      %v1396 = vld [vmem:[%s1391 + $0x10] sm:$0xf]
      %v1397 = vld [vmem:[%s1391 + $0x14] sm:$0xf]
      %v1398 = vld [vmem:[%s1391 + $0x18] sm:$0xf]
      %v1399 = vld [vmem:[%s1391 + $0x1c] sm:$0xf]
      %v1400 = vld [vmem:[%s1391 + $0x20] sm:$0xf]
      %v1401 = vld [vmem:[%s1391 + $0x24] sm:$0xf]
      %v1402 = vld [vmem:[%s1391 + $0x28] sm:$0xf]
      %v1403 = vld [vmem:[%s1391 + $0x2c] sm:$0xf]
      %v1404 = vld [vmem:[%s1391 + $0x30] sm:$0xf]
      %v1405 = vld [vmem:[%s1391 + $0x34] sm:$0xf]
      %v1406 = vld [vmem:[%s1391 + $0x38] sm:$0xf]
      %v1407 = vld [vmem:[%s1391 + $0x3c] sm:$0xf]
      %v1424 = vunpack.c.l.b16 %v1392
      %v1425 = vunpack.c.l.b16 %v1393
      %v1426 = vunpack.c.l.b16 %v1394
      %v1427 = vunpack.c.l.b16 %v1395
      %v1428 = vunpack.c.l.b16 %v1396
      %v1429 = vunpack.c.l.b16 %v1397
      %v1430 = vunpack.c.l.b16 %v1398
      %v1431 = vunpack.c.l.b16 %v1399
      %v1432 = vunpack.c.l.b16 %v1400
      %v1433 = vunpack.c.l.b16 %v1401
      %v1434 = vunpack.c.l.b16 %v1402
      %v1435 = vunpack.c.l.b16 %v1403
      %v1436 = vunpack.c.l.b16 %v1404
      %v1437 = vunpack.c.l.b16 %v1405
      %v1438 = vunpack.c.l.b16 %v1406
      %v1439 = vunpack.c.l.b16 %v1407
      %v1440 = vpack.c.b16 %v1425, %v1424
      %v1441 = vpack.c.b16 %v1427, %v1426
      %v1442 = vpack.c.b16 %v1429, %v1428
      %v1443 = vpack.c.b16 %v1431, %v1430
      %v1444 = vpack.c.b16 %v1433, %v1432
      %v1445 = vpack.c.b16 %v1435, %v1434
      %v1446 = vpack.c.b16 %v1437, %v1436
      %v1447 = vpack.c.b16 %v1439, %v1438
      %1456 = vmatprep.subr.bf16.mxu0 0
      %1457 = vmatpush1.bf16.msra.mxu0 %v1440
      %1458 = vmatprep.subr.bf16.mxu0 0
      %1459 = vmatpush1.bf16.msra.mxu0 %v1441
      %1460 = vmatprep.subr.bf16.mxu0 0
      %1461 = vmatpush1.bf16.msra.mxu0 %v1442
      %1462 = vmatprep.subr.bf16.mxu0 0
      %1463 = vmatpush1.bf16.msra.mxu0 %v1443
      %1464 = vmatprep.subr.bf16.mxu0 0
      %1465 = vmatpush1.bf16.msra.mxu0 %v1444
      %1466 = vmatprep.subr.bf16.mxu0 0
      %1467 = vmatpush1.bf16.msra.mxu0 %v1445
      %1468 = vmatprep.subr.bf16.mxu0 0
      %1469 = vmatpush1.bf16.msra.mxu0 %v1446
      %1470 = vmatprep.subr.bf16.mxu0 0
      %1471 = vmatpush1.bf16.msra.mxu0 %v1447
      %1472 = vmatprep.subr.bf16.mxu0 0
      %1473 = vmatpush1.bf16.msra.mxu0 0
      %1474 = vmatprep.subr.bf16.mxu0 0
      %1475 = vmatpush1.bf16.msra.mxu0 0
      %1476 = vmatprep.subr.bf16.mxu0 0
      %1477 = vmatpush1.bf16.msra.mxu0 0
      %1478 = vmatprep.subr.bf16.mxu0 0
      %1479 = vmatpush1.bf16.msra.mxu0 0
      %1480 = vmatprep.subr.bf16.mxu0 0
      %1481 = vmatpush1.bf16.msra.mxu0 0
      %1482 = vmatprep.subr.bf16.mxu0 0
      %1483 = vmatpush1.bf16.msra.mxu0 0
      %1484 = vmatprep.subr.bf16.mxu0 0
      %1485 = vmatpush1.bf16.msra.mxu0 0
      %1486 = vmatprep.subr.bf16.mxu0 0
      %1487 = vmatpush1.bf16.msra.mxu0 0
      %1488 = vmatprep.mubr.bf16.mxu0 0
      %1489 = vmatmul.mubr.bf16.gmra.mrb[0].mxu0 %v1387
      %v1490 = vpop.f32.mrb[0].mxu0
      %v1491 = vadd.f32 0.0, %v1490
      %v1492 = vpop.f32.mrb[0].mxu0
      %v1493 = vpop.f32.mrb[0].mxu0
      %v1494 = vadd.f32 0.0, %v1493
      %v1495 = vpop.f32.mrb[0].mxu0
      %1496 = vmatprep.mubr.bf16.mxu0 0
      %1497 = vmatmul.mubr.bf16.gmra.mrb[0].mxu0 %v1388
      %v1498 = vpop.f32.mrb[0].mxu0
      %v1499 = vadd.f32 0.0, %v1498
      %v1500 = vpop.f32.mrb[0].mxu0
      %v1501 = vpop.f32.mrb[0].mxu0
      %v1502 = vadd.f32 0.0, %v1501
      %v1503 = vpop.f32.mrb[0].mxu0
      %1504 = vmatprep.mubr.bf16.mxu0 0
      %1505 = vmatmul.mubr.bf16.gmra.mrb[0].mxu0 %v1389
      %v1506 = vpop.f32.mrb[0].mxu0
      %v1507 = vadd.f32 0.0, %v1506
      %v1508 = vpop.f32.mrb[0].mxu0
      %v1509 = vpop.f32.mrb[0].mxu0
      %v1510 = vadd.f32 0.0, %v1509
      %v1511 = vpop.f32.mrb[0].mxu0
      %1512 = vmatprep.mubr.bf16.mxu0 0
      %1513 = vmatmul.mubr.bf16.gmra.mrb[0].mxu0 %v1390
      %v1514 = vpop.f32.mrb[0].mxu0
      %v1515 = vadd.f32 0.0, %v1514
      %v1516 = vpop.f32.mrb[0].mxu0
      %v1517 = vpop.f32.mrb[0].mxu0
      %v1518 = vadd.f32 0.0, %v1517
      %v1519 = vpop.f32.mrb[0].mxu0
      %1520 = vdwg.mxu0
      %v1521 = vadd.f32 %v1371, %v1491
      %v1522 = vadd.f32 %v1372, %v1494
      %v1523 = vadd.f32 %v1373, %v1499
      %v1524 = vadd.f32 %v1374, %v1502
      %v1525 = vadd.f32 %v1375, %v1507
      %v1526 = vadd.f32 %v1376, %v1510
      %v1527 = vadd.f32 %v1377, %v1515
      %v1528 = vadd.f32 %v1378, %v1518
      %v1529 = vld [vmem:[%s1228 + $0x2] sm:$0xff]
      %v1530 = vld [vmem:[%s1228 + $0x12] sm:$0xff]
      %v1531 = vld [vmem:[%s1228 + $0x22] sm:$0xff]
      %v1532 = vld [vmem:[%s1228 + $0x32] sm:$0xff]
      %v1533 = vld [vmem:[%s1228 + $0x42] sm:$0xff]
      %v1534 = vld [vmem:[%s1228 + $0x52] sm:$0xff]
      %v1535 = vld [vmem:[%s1228 + $0x62] sm:$0xff]
      %v1536 = vld [vmem:[%s1228 + $0x72] sm:$0xff]
      %v1537 = vpack.c.bf16 %v1530, %v1529
      %v1538 = vpack.c.bf16 %v1532, %v1531
      %v1539 = vpack.c.bf16 %v1534, %v1533
      %v1540 = vpack.c.bf16 %v1536, %v1535
      %s1541 = scalar_lea.vmem %s3, 512
      %v1542 = vld [vmem:[%s1541] sm:$0xf]
      %v1543 = vld [vmem:[%s1541 + $0x4] sm:$0xf]
      %v1544 = vld [vmem:[%s1541 + $0x8] sm:$0xf]
      %v1545 = vld [vmem:[%s1541 + $0xc] sm:$0xf]
      %v1546 = vld [vmem:[%s1541 + $0x10] sm:$0xf]
      %v1547 = vld [vmem:[%s1541 + $0x14] sm:$0xf]
      %v1548 = vld [vmem:[%s1541 + $0x18] sm:$0xf]
      %v1549 = vld [vmem:[%s1541 + $0x1c] sm:$0xf]
      %v1550 = vld [vmem:[%s1541 + $0x20] sm:$0xf]
      %v1551 = vld [vmem:[%s1541 + $0x24] sm:$0xf]
      %v1552 = vld [vmem:[%s1541 + $0x28] sm:$0xf]
      %v1553 = vld [vmem:[%s1541 + $0x2c] sm:$0xf]
      %v1554 = vld [vmem:[%s1541 + $0x30] sm:$0xf]
      %v1555 = vld [vmem:[%s1541 + $0x34] sm:$0xf]
      %v1556 = vld [vmem:[%s1541 + $0x38] sm:$0xf]
      %v1557 = vld [vmem:[%s1541 + $0x3c] sm:$0xf]
      %v1574 = vunpack.c.l.b16 %v1542
      %v1575 = vunpack.c.l.b16 %v1543
      %v1576 = vunpack.c.l.b16 %v1544
      %v1577 = vunpack.c.l.b16 %v1545
      %v1578 = vunpack.c.l.b16 %v1546
      %v1579 = vunpack.c.l.b16 %v1547
      %v1580 = vunpack.c.l.b16 %v1548
      %v1581 = vunpack.c.l.b16 %v1549
      %v1582 = vunpack.c.l.b16 %v1550
      %v1583 = vunpack.c.l.b16 %v1551
      %v1584 = vunpack.c.l.b16 %v1552
      %v1585 = vunpack.c.l.b16 %v1553
      %v1586 = vunpack.c.l.b16 %v1554
      %v1587 = vunpack.c.l.b16 %v1555
      %v1588 = vunpack.c.l.b16 %v1556
      %v1589 = vunpack.c.l.b16 %v1557
      %v1590 = vpack.c.b16 %v1575, %v1574
      %v1591 = vpack.c.b16 %v1577, %v1576
      %v1592 = vpack.c.b16 %v1579, %v1578
      %v1593 = vpack.c.b16 %v1581, %v1580
      %v1594 = vpack.c.b16 %v1583, %v1582
      %v1595 = vpack.c.b16 %v1585, %v1584
      %v1596 = vpack.c.b16 %v1587, %v1586
      %v1597 = vpack.c.b16 %v1589, %v1588
      %1606 = vmatprep.subr.bf16.mxu0 0
      %1607 = vmatpush1.bf16.msra.mxu0 %v1590
      %1608 = vmatprep.subr.bf16.mxu0 0
      %1609 = vmatpush1.bf16.msra.mxu0 %v1591
      %1610 = vmatprep.subr.bf16.mxu0 0
      %1611 = vmatpush1.bf16.msra.mxu0 %v1592
      %1612 = vmatprep.subr.bf16.mxu0 0
      %1613 = vmatpush1.bf16.msra.mxu0 %v1593
      %1614 = vmatprep.subr.bf16.mxu0 0
      %1615 = vmatpush1.bf16.msra.mxu0 %v1594
      %1616 = vmatprep.subr.bf16.mxu0 0
      %1617 = vmatpush1.bf16.msra.mxu0 %v1595
      %1618 = vmatprep.subr.bf16.mxu0 0
      %1619 = vmatpush1.bf16.msra.mxu0 %v1596
      %1620 = vmatprep.subr.bf16.mxu0 0
      %1621 = vmatpush1.bf16.msra.mxu0 %v1597
      %1622 = vmatprep.subr.bf16.mxu0 0
      %1623 = vmatpush1.bf16.msra.mxu0 0
      %1624 = vmatprep.subr.bf16.mxu0 0
      %1625 = vmatpush1.bf16.msra.mxu0 0
      %1626 = vmatprep.subr.bf16.mxu0 0
      %1627 = vmatpush1.bf16.msra.mxu0 0
      %1628 = vmatprep.subr.bf16.mxu0 0
      %1629 = vmatpush1.bf16.msra.mxu0 0
      %1630 = vmatprep.subr.bf16.mxu0 0
      %1631 = vmatpush1.bf16.msra.mxu0 0
      %1632 = vmatprep.subr.bf16.mxu0 0
      %1633 = vmatpush1.bf16.msra.mxu0 0
      %1634 = vmatprep.subr.bf16.mxu0 0
      %1635 = vmatpush1.bf16.msra.mxu0 0
      %1636 = vmatprep.subr.bf16.mxu0 0
      %1637 = vmatpush1.bf16.msra.mxu0 0
      %1638 = vmatprep.mubr.bf16.mxu0 0
      %1639 = vmatmul.mubr.bf16.gmra.mrb[0].mxu0 %v1537
      %v1640 = vpop.f32.mrb[0].mxu0
      %v1641 = vadd.f32 0.0, %v1640
      %v1642 = vpop.f32.mrb[0].mxu0
      %v1643 = vpop.f32.mrb[0].mxu0
      %v1644 = vadd.f32 0.0, %v1643
      %v1645 = vpop.f32.mrb[0].mxu0
      %1646 = vmatprep.mubr.bf16.mxu0 0
      %1647 = vmatmul.mubr.bf16.gmra.mrb[0].mxu0 %v1538
      %v1648 = vpop.f32.mrb[0].mxu0
      %v1649 = vadd.f32 0.0, %v1648
      %v1650 = vpop.f32.mrb[0].mxu0
      %v1651 = vpop.f32.mrb[0].mxu0
      %v1652 = vadd.f32 0.0, %v1651
      %v1653 = vpop.f32.mrb[0].mxu0
      %1654 = vmatprep.mubr.bf16.mxu0 0
      %1655 = vmatmul.mubr.bf16.gmra.mrb[0].mxu0 %v1539
      %v1656 = vpop.f32.mrb[0].mxu0
      %v1657 = vadd.f32 0.0, %v1656
      %v1658 = vpop.f32.mrb[0].mxu0
      %v1659 = vpop.f32.mrb[0].mxu0
      %v1660 = vadd.f32 0.0, %v1659
      %v1661 = vpop.f32.mrb[0].mxu0
      %1662 = vmatprep.mubr.bf16.mxu0 0
      %1663 = vmatmul.mubr.bf16.gmra.mrb[0].mxu0 %v1540
      %v1664 = vpop.f32.mrb[0].mxu0
      %v1665 = vadd.f32 0.0, %v1664
      %v1666 = vpop.f32.mrb[0].mxu0
      %v1667 = vpop.f32.mrb[0].mxu0
      %v1668 = vadd.f32 0.0, %v1667
      %v1669 = vpop.f32.mrb[0].mxu0
      %1670 = vdwg.mxu0
      %v1671 = vadd.f32 %v1521, %v1641
      %v1672 = vadd.f32 %v1522, %v1644
      %v1673 = vadd.f32 %v1523, %v1649
      %v1674 = vadd.f32 %v1524, %v1652
      %v1675 = vadd.f32 %v1525, %v1657
      %v1676 = vadd.f32 %v1526, %v1660
      %v1677 = vadd.f32 %v1527, %v1665
      %v1678 = vadd.f32 %v1528, %v1668
      %1679 = vst [vmem:[%s264] sm:$0xff] %v1671
      %1680 = vst [vmem:[%s264 + $0x8] sm:$0xff] %v1672
      %1681 = vst [vmem:[%s264 + $0x10] sm:$0xff] %v1673
      %1682 = vst [vmem:[%s264 + $0x18] sm:$0xff] %v1674
      %1683 = vst [vmem:[%s264 + $0x20] sm:$0xff] %v1675
      %1684 = vst [vmem:[%s264 + $0x28] sm:$0xff] %v1676
      %1685 = vst [vmem:[%s264 + $0x30] sm:$0xff] %v1677
      %1686 = vst [vmem:[%s264 + $0x38] sm:$0xff] %v1678
      %v1687 = vadd.f32 %v1671, %v1672
      %v1688 = vadd.f32 %v1687, %v1673
      %v1689 = vadd.f32 %v1688, %v1674
      %v1690 = vadd.f32 %v1689, %v1675
      %v1691 = vadd.f32 %v1690, %v1676
      %v1692 = vadd.f32 %v1691, %v1677
      %v1693 = vadd.f32 %v1692, %v1678
      %v1694 = vrot.slane %v1693, 4
      %v1695 = vadd.f32 %v1693, %v1694
      %v1696 = vrot.slane %v1695, 2
      %v1697 = vadd.f32 %v1695, %v1696
      %v1698 = vrot.slane %v1697, 1
      %v1699 = vadd.f32 %v1697, %v1698
      %v1700 = vmul.f32 %v1671, %v1671
      %v1701 = vmul.f32 %v1672, %v1672
      %v1702 = vmul.f32 %v1673, %v1673
      %v1703 = vmul.f32 %v1674, %v1674
      %v1704 = vmul.f32 %v1675, %v1675
      %v1705 = vmul.f32 %v1676, %v1676
      %v1706 = vmul.f32 %v1677, %v1677
      %v1707 = vmul.f32 %v1678, %v1678
      %v1708 = vadd.f32 %v1700, %v1701
      %v1709 = vadd.f32 %v1708, %v1702
      %v1710 = vadd.f32 %v1709, %v1703
      %v1711 = vadd.f32 %v1710, %v1704
      %v1712 = vadd.f32 %v1711, %v1705
      %v1713 = vadd.f32 %v1712, %v1706
      %v1714 = vadd.f32 %v1713, %v1707
      %v1715 = vrot.slane %v1714, 4
      %v1716 = vadd.f32 %v1714, %v1715
      %v1717 = vrot.slane %v1716, 2
      %v1718 = vadd.f32 %v1716, %v1717
      %v1719 = vrot.slane %v1718, 1
      %v1720 = vadd.f32 %v1718, %v1719
      %1721 = vst [vmem:[%s268] sm:$0xff] %v1699
      %1722 = vst [vmem:[%s272] sm:$0xff] %v1720
      %p1723 = scmp.lt.s32.totalorder %s18, 1
      %s1724 = scalar_select %p1723, %s18, 1
      %s1725 = smul.addr %s1724, 8
      %s1726 = smul.addr %s1725, 8
      %s1727 = scalar_lea.vmem %s4, %s1726
      %p1728 = scmp.lt.s32.totalorder %s18, 1
      %s1729 = scalar_select %p1728, %s18, 1
      %s1730 = smul.addr %s1729, 8
      %s1731 = scalar_lea.vmem %s5, %s1730
      %p1732 = scmp.lt.s32.totalorder %s18, 1
      %s1733 = scalar_select %p1732, %s18, 1
      %s1734 = smul.addr %s1733, 8
      %s1735 = scalar_lea.vmem %s6, %s1734
      // Predicated region
      $region37: #{basic_block_forward.4} parent=35 // pred_check
        %p1736 = pneg %p125
      $region38: #{basic_block_forward.4} parent=35 // pred_check_branch
        %1738 = sbr.rel (%p1736) target = $region40
      $region39: #{basic_block_forward.4} parent=35 // pred_region
        _
      $region40: #{basic_block_forward.4} parent=35 // pred_fallthru
        _
      // Predicated region
      $region41: #{basic_block_forward.4} parent=35 // pred_check
        %p1739 = pneg %p151
      $region42: #{basic_block_forward.4} parent=35 // pred_check_branch
        %1741 = sbr.rel (%p1739) target = $region44
      $region43: #{basic_block_forward.4} parent=35 // pred_region
        _
      $region44: #{basic_block_forward.4} parent=35 // pred_fallthru
        _
      // Predicated region
      $region45: #{basic_block_forward.4} parent=35 // pred_check
        %p1742 = pneg %p177
      $region46: #{basic_block_forward.4} parent=35 // pred_check_branch
        %1744 = sbr.rel (%p1742) target = $region48
      $region47: #{basic_block_forward.4} parent=35 // pred_region
        _
      $region48: #{basic_block_forward.4} parent=35 // pred_fallthru
        _
    $region36: #{basic_block_forward.4} parent=5 // pred_fallthru
      _
    %p1745 = scmp.le.s32.totalorder 2, %s13
    // Predicated region
    $region49: #{basic_block_forward.4} parent=5 // pred_check
      %p1746 = pneg %p1745
    $region50: #{basic_block_forward.4} parent=5 // pred_check_branch
      %1748 = sbr.rel (%p1746) target = $region52
    $region51: #{basic_block_forward.4} parent=5 // pred_region
      %s1749 = ssub.s32 %s13, 2
      // Predicated region
      $region53: #{basic_block_forward.4} parent=51 // pred_check
        %p1750 = pneg %p131
      $region54: #{basic_block_forward.4} parent=51 // pred_check_branch
        %1752 = sbr.rel (%p1750) target = $region56
      $region55: #{basic_block_forward.4} parent=51 // pred_region
        %p1753 = scmp.lt.s32.totalorder %s19, 1
        %s1754 = scalar_select %p1753, %s19, 1
        %s1755 = smul.addr %s1754, 8
        %s1756 = smul.addr %s1755, 8
        %s1757 = scalar_lea.vmem %s4, %s1756
      $region56: #{basic_block_forward.4} parent=51 // pred_fallthru
        _
      // Predicated region
      $region57: #{basic_block_forward.4} parent=51 // pred_check
        %p1758 = pneg %p157
      $region58: #{basic_block_forward.4} parent=51 // pred_check_branch
        %1760 = sbr.rel (%p1758) target = $region60
      $region59: #{basic_block_forward.4} parent=51 // pred_region
        %p1761 = scmp.lt.s32.totalorder %s19, 1
        %s1762 = scalar_select %p1761, %s19, 1
        %s1763 = smul.addr %s1762, 8
        %s1764 = scalar_lea.vmem %s5, %s1763
      $region60: #{basic_block_forward.4} parent=51 // pred_fallthru
        _
      // Predicated region
      $region61: #{basic_block_forward.4} parent=51 // pred_check
        %p1765 = pneg %p183
      $region62: #{basic_block_forward.4} parent=51 // pred_check_branch
        %1767 = sbr.rel (%p1765) target = $region64
      $region63: #{basic_block_forward.4} parent=51 // pred_region
        %p1768 = scmp.lt.s32.totalorder %s19, 1
        %s1769 = scalar_select %p1768, %s19, 1
        %s1770 = smul.addr %s1769, 8
        %s1771 = scalar_lea.vmem %s6, %s1770
      $region64: #{basic_block_forward.4} parent=51 // pred_fallthru
        _
    $region52: #{basic_block_forward.4} parent=5 // pred_fallthru
      _
  $region6: #{basic_block_forward.4} parent=0 // loop_footer
    %s17 = sadd.s32 1, %s13
  $region7: #{basic_block_forward.4} parent=0 // loop_footer_branch
    %12 = sbr.rel target = $region3
  $region8: #{basic_block_forward.4} parent=0 // loop_exit
    _

</llo_original>
